<compile_context>
chip_gen: v7x
topology: tpu7x:2x2x1
jax: 0.10.0
libtpu: 0.0.40
codegen_flags: <defaults>
</compile_context>

<pallas_src>
import functools

import jax
import jax.numpy as jnp
from jax import lax
from jax.experimental import pallas as pl
from jax.experimental.pallas import tpu as pltpu

_HAS_BUFFERED = hasattr(pl, "Buffered")


def _spatial_attention_kernel(m_avg_ref, m_max_ref, x_ref, o_ref):
    # m_avg_ref : VMEM f32[HW, HW]  conv operator for the mean plane (1/C folded in)
    # m_max_ref : VMEM f32[HW, HW]  conv operator for the max plane
    # x_ref     : VMEM     [TB, C, HW]  lane-dense batch slab (native dtype)
    # o_ref     : VMEM     [TB, C, HW]
    x = x_ref[...]

    # Channel reductions on lane-dense data.  max is exact in the native
    # dtype; only the tiny (TB, HW) sum row is accumulated in f32.
    x_sum = jnp.sum(x.astype(jnp.float32), axis=1)            # (TB, HW)
    x_max = jnp.max(x, axis=1).astype(jnp.float32)            # (TB, HW)

    # Entire KxK "same" conv over both planes as two MXU matmuls sharing an
    # f32 accumulation.  HIGHEST precision: default precision truncates f32
    # operands to bf16 on the MXU (part of the previous tolerance failure)
    # and the conv is tiny relative to the HBM-bound elementwise path.
    conv = jnp.dot(x_sum, m_avg_ref[...],
                   precision=lax.Precision.HIGHEST,
                   preferred_element_type=jnp.float32)
    conv = conv + jnp.dot(x_max, m_max_ref[...],
                          precision=lax.Precision.HIGHEST,
                          preferred_element_type=jnp.float32)

    # Exact sigmoid (the approx reciprocal blew the 2e-3 tolerance).
    gate = 1.0 / (1.0 + jnp.exp(-conv))                        # (TB, HW) f32

    # Broadcast over channels + fused multiply + lane-dense unmasked store.
    o_ref[...] = (x * gate[:, None, :].astype(x.dtype)).astype(o_ref.dtype)


def precompute_conv_operators(conv_w, H, W, C):
    """Fold nn.Conv2d(2, 1, K, padding=K//2, bias=False) weights into two
    dense (H*W, H*W) operators such that

        conv_flat = sum_flat @ M_avg + max_flat @ M_max

    reproduces PyTorch's zero-padded cross-correlation exactly (the mean's
    1/C is folded into M_avg).  Depends only on (conv_w, H, W, C): build it
    once at model setup, NOT per forward call."""
    K = conv_w.shape[-1]
    PAD = K // 2
    w = conv_w.reshape(2, K, K).astype(jnp.float32)            # (plane, kh, kw)

    h_in = jnp.arange(H)[:, None, None, None]                  # h'
    w_in = jnp.arange(W)[None, :, None, None]                  # w'
    h_out = jnp.arange(H)[None, None, :, None]                 # h
    w_out = jnp.arange(W)[None, None, None, :]                 # w
    kh = h_in - h_out + PAD
    kw = w_in - w_out + PAD
    valid = (kh >= 0) & (kh < K) & (kw >= 0) & (kw < K)
    kh = jnp.clip(kh, 0, K - 1)
    kw = jnp.clip(kw, 0, K - 1)

    # M[p, h', w', h, w] = W[p, kh, kw] if the tap lies inside the kernel.
    m = jnp.where(valid[None], w[:, kh, kw], 0.0)              # (2, H, W, H, W)
    m = m.reshape(2, H * W, H * W)
    m_avg = m[0] * (1.0 / C)                                   # fold mean's 1/C
    m_max = m[1]
    # Kept in f32: bf16 operators would halve the DMA but are not worth the
    # accuracy risk against a tolerance that already failed once.
    return m_avg, m_max


def _pick_batch_tile(B, C, HW, itemsize):
    """Largest TB such that the double-buffered (TB, C, HW) in+out slabs fit
    a per-generation VMEM budget, B % TB == 0, and (when B >= 2) the grid
    keeps >= 2 steps so both v7x TensorCores get work."""
    try:
        vmem_cap = int(pltpu.get_tpu_info().vmem_capacity_bytes)
    except Exception:                 # e.g. interpret mode / non-TPU host
        vmem_cap = 64 * 1024 * 1024   # v7x per-core VMEM, the smallest
    # ~24 MiB slab budget on v7x (64 MiB), ~48 MiB on v5e/v6e (128 MiB).
    slab_budget = (min(vmem_cap, 128 * 1024 * 1024) * 3) // 8
    per_batch = 4 * C * HW * itemsize            # x + out, double buffered
    tb = max(1, min(B, slab_budget // per_batch))
    while tb > 1 and (B % tb != 0 or B // tb < 2):
        tb -= 1
    return int(tb)


@functools.partial(jax.jit, static_argnames=("tb", "single_buffer_operator"))
def _spatial_attention_flat(m_avg, m_max, x_flat, *, tb, single_buffer_operator):
    B, C, HW = x_flat.shape
    itemsize = x_flat.dtype.itemsize

    op_kwargs = {}
    op_buffers = 2
    if single_buffer_operator and _HAS_BUFFERED:
        # Grid-invariant operators: one VMEM buffer each is enough.
        op_kwargs["pipeline_mode"] = pl.Buffered(1)
        op_buffers = 1

    vmem_bytes = (4 * tb * C * HW * itemsize          # x + out, double buffered
                  + 2 * op_buffers * HW * HW * 4      # m_avg + m_max
                  + (4 << 20))                        # pipeline / compiler slack
    vmem_limit = int(max(16 << 20, min(vmem_bytes, 48 << 20)))

    cost = pl.CostEstimate(
        flops=int(4 * B * HW * HW + 4 * B * C * HW),
        transcendentals=int(B * HW),
        bytes_accessed=int(2 * B * C * HW * itemsize + 2 * HW * HW * 4),
    )

    return pl.pallas_call(
        _spatial_attention_kernel,
        out_shape=jax.ShapeDtypeStruct((B, C, HW), x_flat.dtype),
        grid=(B // tb,),
        in_specs=[
            pl.BlockSpec((HW, HW), lambda b: (0, 0), **op_kwargs),
            pl.BlockSpec((HW, HW), lambda b: (0, 0), **op_kwargs),
            pl.BlockSpec((tb, C, HW), lambda b: (b, 0, 0)),
        ],
        out_specs=pl.BlockSpec((tb, C, HW), lambda b: (b, 0, 0)),
        compiler_params=pltpu.CompilerParams(
            dimension_semantics=("parallel",),        # megacore over batch tiles
            vmem_limit_bytes=vmem_limit,
        ),
        cost_estimate=cost,
        # TODO(synk): offer input_output_aliases={2: 0} for callers that can
        # donate x (saves the separate HBM output allocation).
    )(m_avg, m_max, x_flat)


def spatial_attention(x, m_avg, m_max):
    """x: [B, C, H, W]; m_avg / m_max from precompute_conv_operators."""
    B, C, H, W = x.shape
    HW = H * W
    x_flat = x.reshape(B, C, HW)                      # lane-dense last dim
    tb = _pick_batch_tile(B, C, HW, x.dtype.itemsize)
    try:
        out_flat = _spatial_attention_flat(
            m_avg, m_max, x_flat, tb=tb, single_buffer_operator=True)
    except Exception:
        # pl.Buffered(1) unsupported in this JAX build: fall back to the
        # default double-buffered operator (one extra operator copy in VMEM).
        out_flat = _spatial_attention_flat(
            m_avg, m_max, x_flat, tb=tb, single_buffer_operator=False)
    return out_flat.reshape(B, C, H, W)


def spatial_attention_reference(x, conv_w):
    avg = jnp.mean(x, axis=1, keepdims=True)
    mx = jnp.max(x, axis=1, keepdims=True)
    feat = jnp.concatenate([avg, mx], axis=1)          # (B, 2, H, W)
    conv = lax.conv_general_dilated(
        feat, conv_w, window_strides=(1, 1), padding="SAME",
        dimension_numbers=("NCHW", "OIHW", "NCHW"),
        precision=lax.Precision.HIGHEST)
    return x * jax.nn.sigmoid(conv)


if __name__ == "__main__":
    key = jax.random.PRNGKey(0)
    kx, kw = jax.random.split(key)

    B, C, H, W = 2, 4, 16, 16
    K = 7
    x = jax.random.normal(kx, (B, C, H, W), dtype=jnp.float32)
    # Deterministic synthetic weight (nn.Conv2d(2, 1, 7, bias=False) shape).
    conv_w = 0.1 * jax.random.normal(kw, (1, 2, K, K), dtype=jnp.float32)

    # Fold the conv weights once (model-build time, not per forward call).
    m_avg, m_max = precompute_conv_operators(conv_w, H, W, C)

    out = spatial_attention(x, m_avg, m_max)
    out = jax.block_until_ready(out)

    ref = spatial_attention_reference(x, conv_w)
    assert out.shape == (B, C, H, W)
    max_err = float(jnp.max(jnp.abs(out - ref)))
    assert jnp.allclose(out, ref, atol=2e-3, rtol=2e-3), max_err

    print("KERNEL_OK")
</pallas_src>

<mosaic_0001>
module attributes {stable_mosaic.version = 11 : i64} {
  func.func @_spatial_attention_kernel(%arg0: i32, %arg1: memref<256x256xf32, #tpu.memory_space<vmem>>, %arg2: memref<256x256xf32, #tpu.memory_space<vmem>>, %arg3: memref<1x4x256xf32, #tpu.memory_space<vmem>>, %arg4: memref<1x4x256xf32, #tpu.memory_space<vmem>>) attributes {dimension_semantics = [#tpu.dimension_semantics<parallel>], iteration_bounds = array<i64: 2>, scalar_prefetch = 0 : i64, scratch_operands = 0 : i64, tpu.core_type = #tpu.core_type<tc>, window_params = [{pipeline_mode = #tpu.pipeline_mode<synchronous>, transform_indices = @transform_0, window_bounds = array<i64: 256, 256>}, {pipeline_mode = #tpu.pipeline_mode<synchronous>, transform_indices = @transform_1, window_bounds = array<i64: 256, 256>}, {transform_indices = @transform_2, window_bounds = array<i64: 1, 4, 256>}, {transform_indices = @transform_3, window_bounds = array<i64: 1, 4, 256>}]} {
    %c0 = arith.constant 0 : index
    %c0_0 = arith.constant 0 : index
    %c0_1 = arith.constant 0 : index
    %0 = vector.load %arg3[%c0, %c0_0, %c0_1] : memref<1x4x256xf32, #tpu.memory_space<vmem>>, vector<1x4x256xf32>
    %cst = arith.constant dense<0.000000e+00> : vector<1x256xf32>
    %1 = vector.multi_reduction <add>, %0, %cst [1] : vector<1x4x256xf32> to vector<1x256xf32>
    %cst_2 = arith.constant dense<0xFF800000> : vector<1x256xf32>
    %2 = vector.multi_reduction <maximumf>, %0, %cst_2 [1] : vector<1x4x256xf32> to vector<1x256xf32>
    %c0_3 = arith.constant 0 : index
    %c0_4 = arith.constant 0 : index
    %3 = vector.load %arg1[%c0_3, %c0_4] : memref<256x256xf32, #tpu.memory_space<vmem>>, vector<256x256xf32>
    %cst_5 = arith.constant dense<0.000000e+00> : vector<1x256xf32>
    %4 = tpu.matmul %1, %3, %cst_5 {dimension_numbers = #tpu.dot_dimension_numbers<[1], [0], [0], [1], [0, 0, 1, 1], [], []>, precision = #tpu.contract_precision<fp32>} : vector<1x256xf32>, vector<256x256xf32>, vector<1x256xf32> -> vector<1x256xf32>
    %c0_6 = arith.constant 0 : index
    %c0_7 = arith.constant 0 : index
    %5 = vector.load %arg2[%c0_6, %c0_7] : memref<256x256xf32, #tpu.memory_space<vmem>>, vector<256x256xf32>
    %cst_8 = arith.constant dense<0.000000e+00> : vector<1x256xf32>
    %6 = tpu.matmul %2, %5, %cst_8 {dimension_numbers = #tpu.dot_dimension_numbers<[1], [0], [0], [1], [0, 0, 1, 1], [], []>, precision = #tpu.contract_precision<fp32>} : vector<1x256xf32>, vector<256x256xf32>, vector<1x256xf32> -> vector<1x256xf32>
    %7 = arith.addf %4, %6 : vector<1x256xf32>
    %cst_9 = arith.constant 0.000000e+00 : f32
    %8 = vector.broadcast %cst_9 : f32 to vector<1x256xf32>
    %9 = arith.subf %8, %7 : vector<1x256xf32>
    %10 = math.exp %9 : vector<1x256xf32>
    %cst_10 = arith.constant 1.000000e+00 : f32
    %11 = vector.broadcast %cst_10 : f32 to vector<1x256xf32>
    %12 = arith.addf %11, %10 : vector<1x256xf32>
    %cst_11 = arith.constant 1.000000e+00 : f32
    %13 = vector.broadcast %cst_11 : f32 to vector<1x256xf32>
    %14 = arith.divf %13, %12 : vector<1x256xf32>
    %15 = vector.shape_cast %14 : vector<1x256xf32> to vector<1x1x256xf32>
    %16 = vector.broadcast %15 : vector<1x1x256xf32> to vector<1x4x256xf32>
    %17 = arith.mulf %0, %16 : vector<1x4x256xf32>
    %c0_12 = arith.constant 0 : index
    %c0_13 = arith.constant 0 : index
    %c0_14 = arith.constant 0 : index
    %18 = vector.load %arg4[%c0_12, %c0_13, %c0_14] : memref<1x4x256xf32, #tpu.memory_space<vmem>>, vector<1x4x256xf32>
    tpu.vector_store %arg4[%c0_12, %c0_13, %c0_14], %17 {strides = array<i32>} : memref<1x4x256xf32, #tpu.memory_space<vmem>>, vector<1x4x256xf32>,
    return
  }
  func.func @transform_0(%arg0: i32) -> (i32, i32) {
    %c0_i32 = arith.constant 0 : i32
    %c0_i32_0 = arith.constant 0 : i32
    %c0_i32_1 = arith.constant 0 : i32
    return %c0_i32, %c0_i32_0 : i32, i32
  }
  func.func @transform_1(%arg0: i32) -> (i32, i32) {
    %c0_i32 = arith.constant 0 : i32
    %c0_i32_0 = arith.constant 0 : i32
    %c0_i32_1 = arith.constant 0 : i32
    return %c0_i32, %c0_i32_0 : i32, i32
  }
  func.func @transform_2(%arg0: i32) -> (i32, i32, i32) {
    %c0_i32 = arith.constant 0 : i32
    %c0_i32_0 = arith.constant 0 : i32
    %c0_i32_1 = arith.constant 0 : i32
    return %arg0, %c0_i32, %c0_i32_0 : i32, i32, i32
  }
  func.func @transform_3(%arg0: i32) -> (i32, i32, i32) {
    %c0_i32 = arith.constant 0 : i32
    %c0_i32_0 = arith.constant 0 : i32
    %c0_i32_1 = arith.constant 0 : i32
    return %arg0, %c0_i32, %c0_i32_0 : i32, i32, i32
  }
}

module attributes {stable_mosaic.version = 11 : i64} {
  func.func @_spatial_attention_kernel(%arg0: i32, %arg1: memref<256x256xf32, #tpu.memory_space<vmem>>, %arg2: memref<256x256xf32, #tpu.memory_space<vmem>>, %arg3: memref<1x4x256xf32, #tpu.memory_space<vmem>>, %arg4: memref<1x4x256xf32, #tpu.memory_space<vmem>>) attributes {dimension_semantics = [#tpu.dimension_semantics<parallel>], iteration_bounds = array<i64: 2>, scalar_prefetch = 0 : i64, scratch_operands = 0 : i64, tpu.core_type = #tpu.core_type<tc>, window_params = [{pipeline_mode = #tpu.pipeline_mode<synchronous>, transform_indices = @transform_0, window_bounds = array<i64: 256, 256>}, {pipeline_mode = #tpu.pipeline_mode<synchronous>, transform_indices = @transform_1, window_bounds = array<i64: 256, 256>}, {transform_indices = @transform_2, window_bounds = array<i64: 1, 4, 256>}, {transform_indices = @transform_3, window_bounds = array<i64: 1, 4, 256>}]} {
    %c0 = arith.constant 0 : index
    %c0_0 = arith.constant 0 : index
    %c0_1 = arith.constant 0 : index
    %0 = vector.load %arg3[%c0, %c0_0, %c0_1] : memref<1x4x256xf32, #tpu.memory_space<vmem>>, vector<1x4x256xf32>
    %cst = arith.constant dense<0.000000e+00> : vector<1x256xf32>
    %1 = vector.multi_reduction <add>, %0, %cst [1] : vector<1x4x256xf32> to vector<1x256xf32>
    %cst_2 = arith.constant dense<0xFF800000> : vector<1x256xf32>
    %2 = vector.multi_reduction <maximumf>, %0, %cst_2 [1] : vector<1x4x256xf32> to vector<1x256xf32>
    %c0_3 = arith.constant 0 : index
    %c0_4 = arith.constant 0 : index
    %3 = vector.load %arg1[%c0_3, %c0_4] : memref<256x256xf32, #tpu.memory_space<vmem>>, vector<256x256xf32>
    %cst_5 = arith.constant dense<0.000000e+00> : vector<1x256xf32>
    %4 = tpu.matmul %1, %3, %cst_5 {dimension_numbers = #tpu.dot_dimension_numbers<[1], [0], [0], [1], [0, 0, 1, 1], [], []>, precision = #tpu.contract_precision<fp32>} : vector<1x256xf32>, vector<256x256xf32>, vector<1x256xf32> -> vector<1x256xf32>
    %c0_6 = arith.constant 0 : index
    %c0_7 = arith.constant 0 : index
    %5 = vector.load %arg2[%c0_6, %c0_7] : memref<256x256xf32, #tpu.memory_space<vmem>>, vector<256x256xf32>
    %cst_8 = arith.constant dense<0.000000e+00> : vector<1x256xf32>
    %6 = tpu.matmul %2, %5, %cst_8 {dimension_numbers = #tpu.dot_dimension_numbers<[1], [0], [0], [1], [0, 0, 1, 1], [], []>, precision = #tpu.contract_precision<fp32>} : vector<1x256xf32>, vector<256x256xf32>, vector<1x256xf32> -> vector<1x256xf32>
    %7 = arith.addf %4, %6 : vector<1x256xf32>
    %cst_9 = arith.constant 0.000000e+00 : f32
    %8 = vector.broadcast %cst_9 : f32 to vector<1x256xf32>
    %9 = arith.subf %8, %7 : vector<1x256xf32>
    %10 = math.exp %9 : vector<1x256xf32>
    %cst_10 = arith.constant 1.000000e+00 : f32
    %11 = vector.broadcast %cst_10 : f32 to vector<1x256xf32>
    %12 = arith.addf %11, %10 : vector<1x256xf32>
    %cst_11 = arith.constant 1.000000e+00 : f32
    %13 = vector.broadcast %cst_11 : f32 to vector<1x256xf32>
    %14 = arith.divf %13, %12 : vector<1x256xf32>
    %15 = vector.shape_cast %14 : vector<1x256xf32> to vector<1x1x256xf32>
    %16 = vector.broadcast %15 : vector<1x1x256xf32> to vector<1x4x256xf32>
    %17 = arith.mulf %0, %16 : vector<1x4x256xf32>
    %c0_12 = arith.constant 0 : index
    %c0_13 = arith.constant 0 : index
    %c0_14 = arith.constant 0 : index
    %18 = vector.load %arg4[%c0_12, %c0_13, %c0_14] : memref<1x4x256xf32, #tpu.memory_space<vmem>>, vector<1x4x256xf32>
    tpu.vector_store %arg4[%c0_12, %c0_13, %c0_14], %17 {strides = array<i32>} : memref<1x4x256xf32, #tpu.memory_space<vmem>>, vector<1x4x256xf32>,
    return
  }
  func.func @transform_0(%arg0: i32) -> (i32, i32) {
    %c0_i32 = arith.constant 0 : i32
    %c0_i32_0 = arith.constant 0 : i32
    %c0_i32_1 = arith.constant 0 : i32
    return %c0_i32, %c0_i32_0 : i32, i32
  }
  func.func @transform_1(%arg0: i32) -> (i32, i32) {
    %c0_i32 = arith.constant 0 : i32
    %c0_i32_0 = arith.constant 0 : i32
    %c0_i32_1 = arith.constant 0 : i32
    return %c0_i32, %c0_i32_0 : i32, i32
  }
  func.func @transform_2(%arg0: i32) -> (i32, i32, i32) {
    %c0_i32 = arith.constant 0 : i32
    %c0_i32_0 = arith.constant 0 : i32
    %c0_i32_1 = arith.constant 0 : i32
    return %arg0, %c0_i32, %c0_i32_0 : i32, i32, i32
  }
  func.func @transform_3(%arg0: i32) -> (i32, i32, i32) {
    %c0_i32 = arith.constant 0 : i32
    %c0_i32_0 = arith.constant 0 : i32
    %c0_i32_1 = arith.constant 0 : i32
    return %arg0, %c0_i32, %c0_i32_0 : i32, i32, i32
  }
}

</mosaic_0001>

<llo_original>
// kernel: _spatial_attention_flat.1
$region0: #{_spatial_attention_flat.1}
  #allocation0 [shape = 'u32[]', space=smem, size = 0x4, offset = 0x4, fixed_abs, tag = 'smem constant byte address 0x4 - core index']
  #allocation1 [shape = 'u32[144,128]{1,0:T(1,128)}', space=vmem, size = 0x12000, scoped, tag = 'internal scratch']
  %s0 = inlined_call_operand.hbm [shape: f32[256,256], index: 0, kind: input, shape index: {}]
  %s1 = inlined_call_operand.hbm [shape: f32[256,256], index: 1, kind: input, shape index: {}]
  %s2 = inlined_call_operand.hbm [shape: f32[2,4,256], index: 2, kind: input, shape index: {}]
  %s3 = inlined_call_operand.hbm [shape: f32[2,4,256], index: 3, kind: output, shape index: {}]
  %s4 = sld [smem:[#allocation0]]
  $region57: #{_spatial_attention_flat.1} parent=0
    _
  %s6 = ssub.s32 1, %s4
  %s7 = scalar_select 0, %s6, %s4
  $region1: #{_spatial_attention_flat.1} parent=0
    #allocation2 [shape = 'u8[262144]{0}', space=vmem, size = 0x40000, scoped, tag = 'input window, operand 0, single buffered']
    #allocation3 [shape = 's32[2]{0}', space=sflag, size = 0x8, scoped, tag = 'scoped memory for _spatial_attention_flat.1']
    #allocation4 [shape = 's32[2]{0}', space=sflag, size = 0x8, scoped, tag = 'scoped memory for _spatial_attention_flat.1']
    #allocation5 [shape = 'u8[262144]{0}', space=vmem, size = 0x40000, scoped, tag = 'input window, operand 1, single buffered']
    #allocation6 [shape = 's32[1]{0}', space=sflag, size = 0x4, scoped, tag = 'scoped memory for _spatial_attention_flat.1']
    #allocation7 [shape = 'u8[8192]{0}', space=vmem, size = 0x2000, scoped, tag = 'input window, operand 2']
    #allocation8 [shape = 'u8[8192]{0}', space=vmem, size = 0x2000, scoped, tag = 'output window, operand 0']
    %8 = vsyncpa [#allocation3], 0
    %9 = vsyncpa [#allocation6], 0
    %10 = vsyncpa [#allocation4], 0
    %s11 = scalar_lea.sflag [#allocation4], 1
    %12 = vsyncpa %s11, 0
    loop: start=0, step=1, limit=4
    $region2: #{_spatial_attention_flat.1} parent=1 // loop_pre_header
      _
    $region3: #{_spatial_attention_flat.1} parent=1 // loop_header
      %s14 = sphi 0, %s18
      %p15 = scmp.ge.s32.totalorder %s14, 4
      %s22 = sphi 0, %s22
      %s24 = sphi 0, %s22
      %s25 = sphi 0, %s24
      %s39 = sphi 0, %s25
      %s43 = sphi 0, %s43
      %s45 = sphi 0, %s43
      %s46 = sphi 0, %s45
      %s60 = sphi 0, %s46
      %s66 = sphi 0, %s68
      %s69 = sphi 0, %s66
      %s70 = sphi 0, %s69
      %s86 = sphi 0, %s70
      %s92 = sphi 0, %s94
      %s95 = sphi 0, %s92
      %s96 = sphi 0, %s95
      %s112 = sphi 0, %s96
    $region4: #{_spatial_attention_flat.1} parent=1 // loop_header_branch
      %17 = sbr.rel (%p15) target = $region8
    $region5: #{_spatial_attention_flat.1} parent=1 // loop_body
      %s19 = ssub.s32 %s14, 1
      %s20 = ssub.s32 %s14, 2
      %s21 = sadd.s32 %s14, 1
      %s23 = sadd.s32 %s22, 1
      %p26 = scmp.eq.s32.totalorder %s14, 1
      %p27 = scmp.ne.s32.totalorder %s22, %s24
      %p28 = scmp.eq.s32.totalorder %s14, 0
      %p29 = por %p27, %p28
      %p30 = scmp.ne.s32.totalorder %s22, %s24
      %p31 = scmp.eq.s32.totalorder %s19, 1
      %p32 = por %p30, %p31
      %p33 = scmp.ne.s32.totalorder %s24, %s25
      %p34 = scmp.eq.s32.totalorder %s19, 0
      %p35 = por %p33, %p34
      %p36 = scmp.ne.s32.totalorder %s24, %s25
      %p37 = scmp.eq.s32.totalorder %s20, 1
      %p38 = por %p36, %p37
      %p40 = scmp.ne.s32.totalorder %s25, %s39
      %p41 = scmp.eq.s32.totalorder %s20, 0
      %p42 = por %p40, %p41
      %s44 = sadd.s32 %s43, 1
      %p47 = scmp.eq.s32.totalorder %s14, 1
      %p48 = scmp.ne.s32.totalorder %s43, %s45
      %p49 = scmp.eq.s32.totalorder %s14, 0
      %p50 = por %p48, %p49
      %p51 = scmp.ne.s32.totalorder %s43, %s45
      %p52 = scmp.eq.s32.totalorder %s19, 1
      %p53 = por %p51, %p52
      %p54 = scmp.ne.s32.totalorder %s45, %s46
      %p55 = scmp.eq.s32.totalorder %s19, 0
      %p56 = por %p54, %p55
      %p57 = scmp.ne.s32.totalorder %s45, %s46
      %p58 = scmp.eq.s32.totalorder %s20, 1
      %p59 = por %p57, %p58
      %p61 = scmp.ne.s32.totalorder %s46, %s60
      %p62 = scmp.eq.s32.totalorder %s20, 0
      %p63 = por %p61, %p62
      %s64 = ssub.s32 %s14, %s21
      %p65 = scmp.eq.s32.totalorder %s64, 0
      %s67 = sadd.s32 %s66, 1
      %s68 = scalar_select %p65, %s66, %s67
      %p71 = pneg %p65
      %p72 = scmp.eq.s32.totalorder %s14, 1
      %p73 = por %p71, %p72
      %p74 = scmp.ne.s32.totalorder %s66, %s69
      %p75 = scmp.eq.s32.totalorder %s14, 0
      %p76 = por %p74, %p75
      %p77 = scmp.ne.s32.totalorder %s66, %s69
      %p78 = scmp.eq.s32.totalorder %s19, 1
      %p79 = por %p77, %p78
      %p80 = scmp.ne.s32.totalorder %s69, %s70
      %p81 = scmp.eq.s32.totalorder %s19, 0
      %p82 = por %p80, %p81
      %p83 = scmp.ne.s32.totalorder %s69, %s70
      %p84 = scmp.eq.s32.totalorder %s20, 1
      %p85 = por %p83, %p84
      %p87 = scmp.ne.s32.totalorder %s70, %s86
      %p88 = scmp.eq.s32.totalorder %s20, 0
      %p89 = por %p87, %p88
      %s90 = ssub.s32 %s14, %s21
      %p91 = scmp.eq.s32.totalorder %s90, 0
      %s93 = sadd.s32 %s92, 1
      %s94 = scalar_select %p91, %s92, %s93
      %p97 = pneg %p91
      %p98 = scmp.eq.s32.totalorder %s14, 1
      %p99 = por %p97, %p98
      %p100 = scmp.ne.s32.totalorder %s92, %s95
      %p101 = scmp.eq.s32.totalorder %s14, 0
      %p102 = por %p100, %p101
      %p103 = scmp.ne.s32.totalorder %s92, %s95
      %p104 = scmp.eq.s32.totalorder %s19, 1
      %p105 = por %p103, %p104
      %p106 = scmp.ne.s32.totalorder %s95, %s96
      %p107 = scmp.eq.s32.totalorder %s19, 0
      %p108 = por %p106, %p107
      %p109 = scmp.ne.s32.totalorder %s95, %s96
      %p110 = scmp.eq.s32.totalorder %s20, 1
      %p111 = por %p109, %p110
      %p113 = scmp.ne.s32.totalorder %s96, %s112
      %p114 = scmp.eq.s32.totalorder %s20, 0
      %p115 = por %p113, %p114
      %p116 = scmp.le.s32.totalorder 1, %s14
      %p117 = scmp.lt.s32.totalorder %s14, 3
      %p118 = pnand %p116, %p117
      %p119 = pneg %p118
      // Predicated region
      $region9: #{_spatial_attention_flat.1} parent=5 // pred_check
        _
      $region10: #{_spatial_attention_flat.1} parent=5 // pred_check_branch
        %121 = sbr.rel (%p118) target = $region12
      $region11: #{_spatial_attention_flat.1} parent=5 // pred_region
        %s122 = ssub.s32 %s14, 1
        // Predicated region
        $region13: #{_spatial_attention_flat.1} parent=11 // pred_check
          %p123 = pneg %p35
        $region14: #{_spatial_attention_flat.1} parent=11 // pred_check_branch
          %125 = sbr.rel (%p123) target = $region16
        $region15: #{_spatial_attention_flat.1} parent=11 // pred_region
          %s127 = ssub.s32 8192, 8192
          %128 = vsyncadd [#allocation3], %s127
          %s129 = sshll.u32 [#allocation2], 4
          %s130 = int_to_ptr.vmem [resolvable:$true] %s129
          %135 = dma.hbm_to_vmem [thread:$0]  %s0, 8192, %s130, [#allocation3], 256, 256, 16
        $region16: #{_spatial_attention_flat.1} parent=11 // pred_fallthru
          _
        // Predicated region
        $region17: #{_spatial_attention_flat.1} parent=11 // pred_check
          %p136 = pneg %p56
        $region18: #{_spatial_attention_flat.1} parent=11 // pred_check_branch
          %138 = sbr.rel (%p136) target = $region20
        $region19: #{_spatial_attention_flat.1} parent=11 // pred_region
          %s140 = ssub.s32 8192, 8192
          %141 = vsyncadd [#allocation6], %s140
          %s142 = sshll.u32 [#allocation5], 4
          %s143 = int_to_ptr.vmem [resolvable:$true] %s142
          %148 = dma.hbm_to_vmem [thread:$0]  %s1, 8192, %s143, [#allocation6], 256, 256, 16
        $region20: #{_spatial_attention_flat.1} parent=11 // pred_fallthru
          _
      $region12: #{_spatial_attention_flat.1} parent=5 // pred_fallthru
        _
      %p149 = scmp.lt.s32.totalorder %s14, 2
      // Predicated region
      $region21: #{_spatial_attention_flat.1} parent=5 // pred_check
        %p150 = pneg %p149
      $region22: #{_spatial_attention_flat.1} parent=5 // pred_check_branch
        %152 = sbr.rel (%p150) target = $region24
      $region23: #{_spatial_attention_flat.1} parent=5 // pred_region
        // Predicated region
        $region25: #{_spatial_attention_flat.1} parent=23 // pred_check
          %p153 = pneg %p76
        $region26: #{_spatial_attention_flat.1} parent=23 // pred_check_branch
          %155 = sbr.rel (%p153) target = $region28
        $region27: #{_spatial_attention_flat.1} parent=23 // pred_region
          %s156 = sand.u32 %s14, 1
          %s157 = scalar_lea.sflag [#allocation3], %s156
          %s158 = sand.u32 %s66, 1
          %s159 = smul.addr %s158, 8
          %s160 = scalar_lea.vmem [#allocation7], %s159
          %s162 = ssub.s32 128, 128
          %163 = vsyncadd %s157, %s162
          %s164 = smul.addr %s14, 2
          %s165 = smul.addr %s164, 64
          %s166 = scalar_lea.hbm %s2, %s165
          %s168 = sshll.u32 %s160, 4
          %s169 = int_to_ptr.vmem [resolvable:$true] %s168
          %171 = dma.hbm_to_vmem [thread:$0]  %s166, 128, %s169, %s157
        $region28: #{_spatial_attention_flat.1} parent=23 // pred_fallthru
          _
      $region24: #{_spatial_attention_flat.1} parent=5 // pred_fallthru
        _
      %p172 = scmp.le.s32.totalorder 1, %s14
      %p173 = scmp.lt.s32.totalorder %s14, 3
      %p174 = pnand %p172, %p173
      %p175 = pneg %p174
      // Predicated region
      $region29: #{_spatial_attention_flat.1} parent=5 // pred_check
        _
      $region30: #{_spatial_attention_flat.1} parent=5 // pred_check_branch
        %177 = sbr.rel (%p174) target = $region32
      $region31: #{_spatial_attention_flat.1} parent=5 // pred_region
        %s178 = ssub.s32 %s14, 1
        // Predicated region
        $region33: #{_spatial_attention_flat.1} parent=31 // pred_check
          %p179 = pneg %p35
        $region34: #{_spatial_attention_flat.1} parent=31 // pred_check_branch
          %181 = sbr.rel (%p179) target = $region36
        $region35: #{_spatial_attention_flat.1} parent=31 // pred_region
          %182 = dma.done [#allocation3], 8192
        $region36: #{_spatial_attention_flat.1} parent=31 // pred_fallthru
          _
        // Predicated region
        $region37: #{_spatial_attention_flat.1} parent=31 // pred_check
          %p183 = pneg %p56
        $region38: #{_spatial_attention_flat.1} parent=31 // pred_check_branch
          %185 = sbr.rel (%p183) target = $region40
        $region39: #{_spatial_attention_flat.1} parent=31 // pred_region
          %186 = dma.done [#allocation6], 8192
        $region40: #{_spatial_attention_flat.1} parent=31 // pred_fallthru
          _
        %s187 = sand.u32 %s19, 1
        %s188 = scalar_lea.sflag [#allocation3], %s187
        %s189 = sand.u32 %s69, 1
        %s190 = smul.addr %s189, 8
        %s191 = scalar_lea.vmem [#allocation7], %s190
        // Predicated region
        $region41: #{_spatial_attention_flat.1} parent=31 // pred_check
          %p192 = pneg %p82
        $region42: #{_spatial_attention_flat.1} parent=31 // pred_check_branch
          %194 = sbr.rel (%p192) target = $region44
        $region43: #{_spatial_attention_flat.1} parent=31 // pred_region
          %195 = dma.done %s188, 128
        $region44: #{_spatial_attention_flat.1} parent=31 // pred_fallthru
          _
        %p196 = pneg %p35
        %p197 = pneg %p32
        %p198 = pneg %p56
        %p199 = pneg %p53
        %s200 = sand.u32 %s19, 1
        %s201 = scalar_lea.sflag [#allocation3], %s200
        %s202 = sand.u32 %s69, 1
        %s203 = smul.addr %s202, 8
        %s204 = scalar_lea.vmem [#allocation7], %s203
        %p205 = pneg %p82
        %p206 = pneg %p79
        %p207 = pneg %p108
        %p208 = pneg %p105
        %s209 = sand.u32 %s95, 1
        %s210 = scalar_lea.sflag [#allocation4], %s209
        %s211 = sand.u32 %s95, 1
        %s212 = smul.addr %s211, 8
        %s213 = scalar_lea.vmem [#allocation8], %s212
        %v214 = vld [vmem:[%s191] sm:$0xff]
        %v216 = vcombine.high %v214, %v214
        %vm218 = vcmask 1043456
        %v219 = vsel %vm218, %v214, 0.0
        %v220 = vrot.slane %v219, 4
        %v221 = vadd.f32 %v219, %v220
        %v222 = vrot.slane %v221, 2
        %v223 = vadd.f32 %v221, %v222
        %v224 = vrot.slane %v223, 1
        %v225 = vadd.f32 %v223, %v224
        %v226 = vsel %vm218, %v216, 0.0
        %v227 = vrot.slane %v226, 4
        %v228 = vadd.f32 %v226, %v227
        %v229 = vrot.slane %v228, 2
        %v230 = vadd.f32 %v228, %v229
        %v231 = vrot.slane %v230, 1
        %v232 = vadd.f32 %v230, %v231
        %v233 = vsel %vm218, %v214, -inf
        %v234 = vrot.slane %v233, 4
        %v235 = vmax.f32 %v233, %v234
        %v236 = vrot.slane %v235, 2
        %v237 = vmax.f32 %v235, %v236
        %v238 = vrot.slane %v237, 1
        %v239 = vmax.f32 %v237, %v238
        %v240 = vsel %vm218, %v216, -inf
        %v241 = vrot.slane %v240, 4
        %v242 = vmax.f32 %v240, %v241
        %v243 = vrot.slane %v242, 2
        %v244 = vmax.f32 %v242, %v243
        %v245 = vrot.slane %v244, 1
        %v246 = vmax.f32 %v244, %v245
        %v247 = vld [vmem:[#allocation2] sm:$0xff]
        %v248 = vld [vmem:[#allocation2 + $0x8] sm:$0xff]
        %v249 = vld [vmem:[#allocation2 + $0x10] sm:$0xff]
        %v250 = vld [vmem:[#allocation2 + $0x18] sm:$0xff]
        %v251 = vld [vmem:[#allocation2 + $0x20] sm:$0xff]
        %v252 = vld [vmem:[#allocation2 + $0x28] sm:$0xff]
        %v253 = vld [vmem:[#allocation2 + $0x30] sm:$0xff]
        %v254 = vld [vmem:[#allocation2 + $0x38] sm:$0xff]
        %v255 = vld [vmem:[#allocation2 + $0x40] sm:$0xff]
        %v256 = vld [vmem:[#allocation2 + $0x48] sm:$0xff]
        %v257 = vld [vmem:[#allocation2 + $0x50] sm:$0xff]
        %v258 = vld [vmem:[#allocation2 + $0x58] sm:$0xff]
        %v259 = vld [vmem:[#allocation2 + $0x60] sm:$0xff]
        %v260 = vld [vmem:[#allocation2 + $0x68] sm:$0xff]
        %v261 = vld [vmem:[#allocation2 + $0x70] sm:$0xff]
        %v262 = vld [vmem:[#allocation2 + $0x78] sm:$0xff]
        %v263 = vld [vmem:[#allocation2 + $0x80] sm:$0xff]
        %v264 = vld [vmem:[#allocation2 + $0x88] sm:$0xff]
        %v265 = vld [vmem:[#allocation2 + $0x90] sm:$0xff]
        %v266 = vld [vmem:[#allocation2 + $0x98] sm:$0xff]
        %v267 = vld [vmem:[#allocation2 + $0xa0] sm:$0xff]
        %v268 = vld [vmem:[#allocation2 + $0xa8] sm:$0xff]
        %v269 = vld [vmem:[#allocation2 + $0xb0] sm:$0xff]
        %v270 = vld [vmem:[#allocation2 + $0xb8] sm:$0xff]
        %v271 = vld [vmem:[#allocation2 + $0xc0] sm:$0xff]
        %v272 = vld [vmem:[#allocation2 + $0xc8] sm:$0xff]
        %v273 = vld [vmem:[#allocation2 + $0xd0] sm:$0xff]
        %v274 = vld [vmem:[#allocation2 + $0xd8] sm:$0xff]
        %v275 = vld [vmem:[#allocation2 + $0xe0] sm:$0xff]
        %v276 = vld [vmem:[#allocation2 + $0xe8] sm:$0xff]
        %v277 = vld [vmem:[#allocation2 + $0xf0] sm:$0xff]
        %v278 = vld [vmem:[#allocation2 + $0xf8] sm:$0xff]
        %v279 = vld [vmem:[#allocation2 + $0x100] sm:$0xff]
        %v280 = vld [vmem:[#allocation2 + $0x108] sm:$0xff]
        %v281 = vld [vmem:[#allocation2 + $0x110] sm:$0xff]
        %v282 = vld [vmem:[#allocation2 + $0x118] sm:$0xff]
        %v283 = vld [vmem:[#allocation2 + $0x120] sm:$0xff]
        %v284 = vld [vmem:[#allocation2 + $0x128] sm:$0xff]
        %v285 = vld [vmem:[#allocation2 + $0x130] sm:$0xff]
        %v286 = vld [vmem:[#allocation2 + $0x138] sm:$0xff]
        %v287 = vld [vmem:[#allocation2 + $0x140] sm:$0xff]
        %v288 = vld [vmem:[#allocation2 + $0x148] sm:$0xff]
        %v289 = vld [vmem:[#allocation2 + $0x150] sm:$0xff]
        %v290 = vld [vmem:[#allocation2 + $0x158] sm:$0xff]
        %v291 = vld [vmem:[#allocation2 + $0x160] sm:$0xff]
        %v292 = vld [vmem:[#allocation2 + $0x168] sm:$0xff]
        %v293 = vld [vmem:[#allocation2 + $0x170] sm:$0xff]
        %v294 = vld [vmem:[#allocation2 + $0x178] sm:$0xff]
        %v295 = vld [vmem:[#allocation2 + $0x180] sm:$0xff]
        %v296 = vld [vmem:[#allocation2 + $0x188] sm:$0xff]
        %v297 = vld [vmem:[#allocation2 + $0x190] sm:$0xff]
        %v298 = vld [vmem:[#allocation2 + $0x198] sm:$0xff]
        %v299 = vld [vmem:[#allocation2 + $0x1a0] sm:$0xff]
        %v300 = vld [vmem:[#allocation2 + $0x1a8] sm:$0xff]
        %v301 = vld [vmem:[#allocation2 + $0x1b0] sm:$0xff]
        %v302 = vld [vmem:[#allocation2 + $0x1b8] sm:$0xff]
        %v303 = vld [vmem:[#allocation2 + $0x1c0] sm:$0xff]
        %v304 = vld [vmem:[#allocation2 + $0x1c8] sm:$0xff]
        %v305 = vld [vmem:[#allocation2 + $0x1d0] sm:$0xff]
        %v306 = vld [vmem:[#allocation2 + $0x1d8] sm:$0xff]
        %v307 = vld [vmem:[#allocation2 + $0x1e0] sm:$0xff]
        %v308 = vld [vmem:[#allocation2 + $0x1e8] sm:$0xff]
        %v309 = vld [vmem:[#allocation2 + $0x1f0] sm:$0xff]
        %v310 = vld [vmem:[#allocation2 + $0x1f8] sm:$0xff]
        %v311 = vld [vmem:[#allocation5] sm:$0xff]
        %v312 = vld [vmem:[#allocation5 + $0x8] sm:$0xff]
        %v313 = vld [vmem:[#allocation5 + $0x10] sm:$0xff]
        %v314 = vld [vmem:[#allocation5 + $0x18] sm:$0xff]
        %v315 = vld [vmem:[#allocation5 + $0x20] sm:$0xff]
        %v316 = vld [vmem:[#allocation5 + $0x28] sm:$0xff]
        %v317 = vld [vmem:[#allocation5 + $0x30] sm:$0xff]
        %v318 = vld [vmem:[#allocation5 + $0x38] sm:$0xff]
        %v319 = vld [vmem:[#allocation5 + $0x40] sm:$0xff]
        %v320 = vld [vmem:[#allocation5 + $0x48] sm:$0xff]
        %v321 = vld [vmem:[#allocation5 + $0x50] sm:$0xff]
        %v322 = vld [vmem:[#allocation5 + $0x58] sm:$0xff]
        %v323 = vld [vmem:[#allocation5 + $0x60] sm:$0xff]
        %v324 = vld [vmem:[#allocation5 + $0x68] sm:$0xff]
        %v325 = vld [vmem:[#allocation5 + $0x70] sm:$0xff]
        %v326 = vld [vmem:[#allocation5 + $0x78] sm:$0xff]
        %v327 = vld [vmem:[#allocation5 + $0x80] sm:$0xff]
        %v328 = vld [vmem:[#allocation5 + $0x88] sm:$0xff]
        %v329 = vld [vmem:[#allocation5 + $0x90] sm:$0xff]
        %v330 = vld [vmem:[#allocation5 + $0x98] sm:$0xff]
        %v331 = vld [vmem:[#allocation5 + $0xa0] sm:$0xff]
        %v332 = vld [vmem:[#allocation5 + $0xa8] sm:$0xff]
        %v333 = vld [vmem:[#allocation5 + $0xb0] sm:$0xff]
        %v334 = vld [vmem:[#allocation5 + $0xb8] sm:$0xff]
        %v335 = vld [vmem:[#allocation5 + $0xc0] sm:$0xff]
        %v336 = vld [vmem:[#allocation5 + $0xc8] sm:$0xff]
        %v337 = vld [vmem:[#allocation5 + $0xd0] sm:$0xff]
        %v338 = vld [vmem:[#allocation5 + $0xd8] sm:$0xff]
        %v339 = vld [vmem:[#allocation5 + $0xe0] sm:$0xff]
        %v340 = vld [vmem:[#allocation5 + $0xe8] sm:$0xff]
        %v341 = vld [vmem:[#allocation5 + $0xf0] sm:$0xff]
        %v342 = vld [vmem:[#allocation5 + $0xf8] sm:$0xff]
        %v343 = vld [vmem:[#allocation5 + $0x100] sm:$0xff]
        %v344 = vld [vmem:[#allocation5 + $0x108] sm:$0xff]
        %v345 = vld [vmem:[#allocation5 + $0x110] sm:$0xff]
        %v346 = vld [vmem:[#allocation5 + $0x118] sm:$0xff]
        %v347 = vld [vmem:[#allocation5 + $0x120] sm:$0xff]
        %v348 = vld [vmem:[#allocation5 + $0x128] sm:$0xff]
        %v349 = vld [vmem:[#allocation5 + $0x130] sm:$0xff]
        %v350 = vld [vmem:[#allocation5 + $0x138] sm:$0xff]
        %v351 = vld [vmem:[#allocation5 + $0x140] sm:$0xff]
        %v352 = vld [vmem:[#allocation5 + $0x148] sm:$0xff]
        %v353 = vld [vmem:[#allocation5 + $0x150] sm:$0xff]
        %v354 = vld [vmem:[#allocation5 + $0x158] sm:$0xff]
        %v355 = vld [vmem:[#allocation5 + $0x160] sm:$0xff]
        %v356 = vld [vmem:[#allocation5 + $0x168] sm:$0xff]
        %v357 = vld [vmem:[#allocation5 + $0x170] sm:$0xff]
        %v358 = vld [vmem:[#allocation5 + $0x178] sm:$0xff]
        %v359 = vld [vmem:[#allocation5 + $0x180] sm:$0xff]
        %v360 = vld [vmem:[#allocation5 + $0x188] sm:$0xff]
        %v361 = vld [vmem:[#allocation5 + $0x190] sm:$0xff]
        %v362 = vld [vmem:[#allocation5 + $0x198] sm:$0xff]
        %v363 = vld [vmem:[#allocation5 + $0x1a0] sm:$0xff]
        %v364 = vld [vmem:[#allocation5 + $0x1a8] sm:$0xff]
        %v365 = vld [vmem:[#allocation5 + $0x1b0] sm:$0xff]
        %v366 = vld [vmem:[#allocation5 + $0x1b8] sm:$0xff]
        %v367 = vld [vmem:[#allocation5 + $0x1c0] sm:$0xff]
        %v368 = vld [vmem:[#allocation5 + $0x1c8] sm:$0xff]
        %v369 = vld [vmem:[#allocation5 + $0x1d0] sm:$0xff]
        %v370 = vld [vmem:[#allocation5 + $0x1d8] sm:$0xff]
        %v371 = vld [vmem:[#allocation5 + $0x1e0] sm:$0xff]
        %v372 = vld [vmem:[#allocation5 + $0x1e8] sm:$0xff]
        %v373 = vld [vmem:[#allocation5 + $0x1f0] sm:$0xff]
        %v374 = vld [vmem:[#allocation5 + $0x1f8] sm:$0xff]
        %v375 = vand.u32 %v312, 4294901760
        %376 = vmatprep.subr.mxu0 %v375
        %v377 = vand.u32 %v311, 4294901760
        %378 = vmatpush1.msra.mxu0 %v377
        %v379 = vand.u32 %v314, 4294901760
        %380 = vmatprep.subr.mxu0 %v379
        %v381 = vand.u32 %v313, 4294901760
        %382 = vmatpush1.msra.mxu0 %v381
        %v383 = vand.u32 %v316, 4294901760
        %384 = vmatprep.subr.mxu0 %v383
        %v385 = vand.u32 %v315, 4294901760
        %386 = vmatpush1.msra.mxu0 %v385
        %v387 = vand.u32 %v318, 4294901760
        %388 = vmatprep.subr.mxu0 %v387
        %v389 = vand.u32 %v317, 4294901760
        %390 = vmatpush1.msra.mxu0 %v389
        %v391 = vand.u32 %v320, 4294901760
        %392 = vmatprep.subr.mxu0 %v391
        %v393 = vand.u32 %v319, 4294901760
        %394 = vmatpush1.msra.mxu0 %v393
        %v395 = vand.u32 %v322, 4294901760
        %396 = vmatprep.subr.mxu0 %v395
        %v397 = vand.u32 %v321, 4294901760
        %398 = vmatpush1.msra.mxu0 %v397
        %v399 = vand.u32 %v324, 4294901760
        %400 = vmatprep.subr.mxu0 %v399
        %v401 = vand.u32 %v323, 4294901760
        %402 = vmatpush1.msra.mxu0 %v401
        %v403 = vand.u32 %v326, 4294901760
        %404 = vmatprep.subr.mxu0 %v403
        %v405 = vand.u32 %v325, 4294901760
        %406 = vmatpush1.msra.mxu0 %v405
        %v407 = vand.u32 %v328, 4294901760
        %408 = vmatprep.subr.mxu0 %v407
        %v409 = vand.u32 %v327, 4294901760
        %410 = vmatpush1.msra.mxu0 %v409
        %v411 = vand.u32 %v330, 4294901760
        %412 = vmatprep.subr.mxu0 %v411
        %v413 = vand.u32 %v329, 4294901760
        %414 = vmatpush1.msra.mxu0 %v413
        %v415 = vand.u32 %v332, 4294901760
        %416 = vmatprep.subr.mxu0 %v415
        %v417 = vand.u32 %v331, 4294901760
        %418 = vmatpush1.msra.mxu0 %v417
        %v419 = vand.u32 %v334, 4294901760
        %420 = vmatprep.subr.mxu0 %v419
        %v421 = vand.u32 %v333, 4294901760
        %422 = vmatpush1.msra.mxu0 %v421
        %v423 = vand.u32 %v336, 4294901760
        %424 = vmatprep.subr.mxu0 %v423
        %v425 = vand.u32 %v335, 4294901760
        %426 = vmatpush1.msra.mxu0 %v425
        %v427 = vand.u32 %v338, 4294901760
        %428 = vmatprep.subr.mxu0 %v427
        %v429 = vand.u32 %v337, 4294901760
        %430 = vmatpush1.msra.mxu0 %v429
        %v431 = vand.u32 %v340, 4294901760
        %432 = vmatprep.subr.mxu0 %v431
        %v433 = vand.u32 %v339, 4294901760
        %434 = vmatpush1.msra.mxu0 %v433
        %v435 = vand.u32 %v342, 4294901760
        %436 = vmatprep.subr.mxu0 %v435
        %v437 = vand.u32 %v341, 4294901760
        %438 = vmatpush1.msra.mxu0 %v437
        %v439 = vand.u32 %v344, 4294901760
        %440 = vmatprep.subr.mxu0 %v439
        %v441 = vand.u32 %v343, 4294901760
        %442 = vmatpush1.msra.mxu0 %v441
        %v443 = vand.u32 %v346, 4294901760
        %444 = vmatprep.subr.mxu0 %v443
        %v445 = vand.u32 %v345, 4294901760
        %446 = vmatpush1.msra.mxu0 %v445
        %v447 = vand.u32 %v348, 4294901760
        %448 = vmatprep.subr.mxu0 %v447
        %v449 = vand.u32 %v347, 4294901760
        %450 = vmatpush1.msra.mxu0 %v449
        %v451 = vand.u32 %v350, 4294901760
        %452 = vmatprep.subr.mxu0 %v451
        %v453 = vand.u32 %v349, 4294901760
        %454 = vmatpush1.msra.mxu0 %v453
        %v455 = vand.u32 %v352, 4294901760
        %456 = vmatprep.subr.mxu0 %v455
        %v457 = vand.u32 %v351, 4294901760
        %458 = vmatpush1.msra.mxu0 %v457
        %v459 = vand.u32 %v354, 4294901760
        %460 = vmatprep.subr.mxu0 %v459
        %v461 = vand.u32 %v353, 4294901760
        %462 = vmatpush1.msra.mxu0 %v461
        %v463 = vand.u32 %v356, 4294901760
        %464 = vmatprep.subr.mxu0 %v463
        %v465 = vand.u32 %v355, 4294901760
        %466 = vmatpush1.msra.mxu0 %v465
        %v467 = vand.u32 %v358, 4294901760
        %468 = vmatprep.subr.mxu0 %v467
        %v469 = vand.u32 %v357, 4294901760
        %470 = vmatpush1.msra.mxu0 %v469
        %v471 = vand.u32 %v360, 4294901760
        %472 = vmatprep.subr.mxu0 %v471
        %v473 = vand.u32 %v359, 4294901760
        %474 = vmatpush1.msra.mxu0 %v473
        %v475 = vand.u32 %v362, 4294901760
        %476 = vmatprep.subr.mxu0 %v475
        %v477 = vand.u32 %v361, 4294901760
        %478 = vmatpush1.msra.mxu0 %v477
        %v479 = vand.u32 %v364, 4294901760
        %480 = vmatprep.subr.mxu0 %v479
        %v481 = vand.u32 %v363, 4294901760
        %482 = vmatpush1.msra.mxu0 %v481
        %v483 = vand.u32 %v366, 4294901760
        %484 = vmatprep.subr.mxu0 %v483
        %v485 = vand.u32 %v365, 4294901760
        %486 = vmatpush1.msra.mxu0 %v485
        %v487 = vand.u32 %v368, 4294901760
        %488 = vmatprep.subr.mxu0 %v487
        %v489 = vand.u32 %v367, 4294901760
        %490 = vmatpush1.msra.mxu0 %v489
        %v491 = vand.u32 %v370, 4294901760
        %492 = vmatprep.subr.mxu0 %v491
        %v493 = vand.u32 %v369, 4294901760
        %494 = vmatpush1.msra.mxu0 %v493
        %v495 = vand.u32 %v372, 4294901760
        %496 = vmatprep.subr.mxu0 %v495
        %v497 = vand.u32 %v371, 4294901760
        %498 = vmatpush1.msra.mxu0 %v497
        %v499 = vand.u32 %v374, 4294901760
        %500 = vmatprep.subr.mxu0 %v499
        %v501 = vand.u32 %v373, 4294901760
        %502 = vmatpush1.msra.mxu0 %v501
        %v503 = vand.u32 %v246, 4294901760
        %v504 = vsub.f32 %v246, %v503
        %v505 = vand.u32 %v504, 4294901760
        %v506 = vsub.f32 %v504, %v505
        %v507 = vand.u32 %v506, 4294901760
        %508 = vmatprep.mubr.f32.mxu0 %v507
        %v509 = vand.u32 %v239, 4294901760
        %v510 = vsub.f32 %v239, %v509
        %v511 = vand.u32 %v510, 4294901760
        %v512 = vsub.f32 %v510, %v511
        %v513 = vand.u32 %v512, 4294901760
        %514 = vmatmul.mubr.f32.gmra.mrb[0].mxu0 %v513
        %v515 = vpop.f32.mrb[0].mxu0
        %v516 = vadd.f32 0.0, %v515
        %v517 = vpop.f32.mrb[0].mxu0
        %v518 = vadd.f32 0.0, %v517
        %519 = vdwg.mxu0
        %v520 = vand.u32 %v312, 4294901760
        %v521 = vsub.f32 %v312, %v520
        %v522 = vand.u32 %v521, 4294901760
        %v523 = vsub.f32 %v521, %v522
        %v524 = vand.u32 %v523, 4294901760
        %525 = vmatprep.subr.mxu0 %v524
        %v526 = vand.u32 %v311, 4294901760
        %v527 = vsub.f32 %v311, %v526
        %v528 = vand.u32 %v527, 4294901760
        %v529 = vsub.f32 %v527, %v528
        %v530 = vand.u32 %v529, 4294901760
        %531 = vmatpush1.msra.mxu0 %v530
        %v532 = vand.u32 %v314, 4294901760
        %v533 = vsub.f32 %v314, %v532
        %v534 = vand.u32 %v533, 4294901760
        %v535 = vsub.f32 %v533, %v534
        %v536 = vand.u32 %v535, 4294901760
        %537 = vmatprep.subr.mxu0 %v536
        %v538 = vand.u32 %v313, 4294901760
        %v539 = vsub.f32 %v313, %v538
        %v540 = vand.u32 %v539, 4294901760
        %v541 = vsub.f32 %v539, %v540
        %v542 = vand.u32 %v541, 4294901760
        %543 = vmatpush1.msra.mxu0 %v542
        %v544 = vand.u32 %v316, 4294901760
        %v545 = vsub.f32 %v316, %v544
        %v546 = vand.u32 %v545, 4294901760
        %v547 = vsub.f32 %v545, %v546
        %v548 = vand.u32 %v547, 4294901760
        %549 = vmatprep.subr.mxu0 %v548
        %v550 = vand.u32 %v315, 4294901760
        %v551 = vsub.f32 %v315, %v550
        %v552 = vand.u32 %v551, 4294901760
        %v553 = vsub.f32 %v551, %v552
        %v554 = vand.u32 %v553, 4294901760
        %555 = vmatpush1.msra.mxu0 %v554
        %v556 = vand.u32 %v318, 4294901760
        %v557 = vsub.f32 %v318, %v556
        %v558 = vand.u32 %v557, 4294901760
        %v559 = vsub.f32 %v557, %v558
        %v560 = vand.u32 %v559, 4294901760
        %561 = vmatprep.subr.mxu0 %v560
        %v562 = vand.u32 %v317, 4294901760
        %v563 = vsub.f32 %v317, %v562
        %v564 = vand.u32 %v563, 4294901760
        %v565 = vsub.f32 %v563, %v564
        %v566 = vand.u32 %v565, 4294901760
        %567 = vmatpush1.msra.mxu0 %v566
        %v568 = vand.u32 %v320, 4294901760
        %v569 = vsub.f32 %v320, %v568
        %v570 = vand.u32 %v569, 4294901760
        %v571 = vsub.f32 %v569, %v570
        %v572 = vand.u32 %v571, 4294901760
        %573 = vmatprep.subr.mxu0 %v572
        %v574 = vand.u32 %v319, 4294901760
        %v575 = vsub.f32 %v319, %v574
        %v576 = vand.u32 %v575, 4294901760
        %v577 = vsub.f32 %v575, %v576
        %v578 = vand.u32 %v577, 4294901760
        %579 = vmatpush1.msra.mxu0 %v578
        %v580 = vand.u32 %v322, 4294901760
        %v581 = vsub.f32 %v322, %v580
        %v582 = vand.u32 %v581, 4294901760
        %v583 = vsub.f32 %v581, %v582
        %v584 = vand.u32 %v583, 4294901760
        %585 = vmatprep.subr.mxu0 %v584
        %v586 = vand.u32 %v321, 4294901760
        %v587 = vsub.f32 %v321, %v586
        %v588 = vand.u32 %v587, 4294901760
        %v589 = vsub.f32 %v587, %v588
        %v590 = vand.u32 %v589, 4294901760
        %591 = vmatpush1.msra.mxu0 %v590
        %v592 = vand.u32 %v324, 4294901760
        %v593 = vsub.f32 %v324, %v592
        %v594 = vand.u32 %v593, 4294901760
        %v595 = vsub.f32 %v593, %v594
        %v596 = vand.u32 %v595, 4294901760
        %597 = vmatprep.subr.mxu0 %v596
        %v598 = vand.u32 %v323, 4294901760
        %v599 = vsub.f32 %v323, %v598
        %v600 = vand.u32 %v599, 4294901760
        %v601 = vsub.f32 %v599, %v600
        %v602 = vand.u32 %v601, 4294901760
        %603 = vmatpush1.msra.mxu0 %v602
        %v604 = vand.u32 %v326, 4294901760
        %v605 = vsub.f32 %v326, %v604
        %v606 = vand.u32 %v605, 4294901760
        %v607 = vsub.f32 %v605, %v606
        %v608 = vand.u32 %v607, 4294901760
        %609 = vmatprep.subr.mxu0 %v608
        %v610 = vand.u32 %v325, 4294901760
        %v611 = vsub.f32 %v325, %v610
        %v612 = vand.u32 %v611, 4294901760
        %v613 = vsub.f32 %v611, %v612
        %v614 = vand.u32 %v613, 4294901760
        %615 = vmatpush1.msra.mxu0 %v614
        %v616 = vand.u32 %v328, 4294901760
        %v617 = vsub.f32 %v328, %v616
        %v618 = vand.u32 %v617, 4294901760
        %v619 = vsub.f32 %v617, %v618
        %v620 = vand.u32 %v619, 4294901760
        %621 = vmatprep.subr.mxu0 %v620
        %v622 = vand.u32 %v327, 4294901760
        %v623 = vsub.f32 %v327, %v622
        %v624 = vand.u32 %v623, 4294901760
        %v625 = vsub.f32 %v623, %v624
        %v626 = vand.u32 %v625, 4294901760
        %627 = vmatpush1.msra.mxu0 %v626
        %v628 = vand.u32 %v330, 4294901760
        %v629 = vsub.f32 %v330, %v628
        %v630 = vand.u32 %v629, 4294901760
        %v631 = vsub.f32 %v629, %v630
        %v632 = vand.u32 %v631, 4294901760
        %633 = vmatprep.subr.mxu0 %v632
        %v634 = vand.u32 %v329, 4294901760
        %v635 = vsub.f32 %v329, %v634
        %v636 = vand.u32 %v635, 4294901760
        %v637 = vsub.f32 %v635, %v636
        %v638 = vand.u32 %v637, 4294901760
        %639 = vmatpush1.msra.mxu0 %v638
        %v640 = vand.u32 %v332, 4294901760
        %v641 = vsub.f32 %v332, %v640
        %v642 = vand.u32 %v641, 4294901760
        %v643 = vsub.f32 %v641, %v642
        %v644 = vand.u32 %v643, 4294901760
        %645 = vmatprep.subr.mxu0 %v644
        %v646 = vand.u32 %v331, 4294901760
        %v647 = vsub.f32 %v331, %v646
        %v648 = vand.u32 %v647, 4294901760
        %v649 = vsub.f32 %v647, %v648
        %v650 = vand.u32 %v649, 4294901760
        %651 = vmatpush1.msra.mxu0 %v650
        %v652 = vand.u32 %v334, 4294901760
        %v653 = vsub.f32 %v334, %v652
        %v654 = vand.u32 %v653, 4294901760
        %v655 = vsub.f32 %v653, %v654
        %v656 = vand.u32 %v655, 4294901760
        %657 = vmatprep.subr.mxu0 %v656
        %v658 = vand.u32 %v333, 4294901760
        %v659 = vsub.f32 %v333, %v658
        %v660 = vand.u32 %v659, 4294901760
        %v661 = vsub.f32 %v659, %v660
        %v662 = vand.u32 %v661, 4294901760
        %663 = vmatpush1.msra.mxu0 %v662
        %v664 = vand.u32 %v336, 4294901760
        %v665 = vsub.f32 %v336, %v664
        %v666 = vand.u32 %v665, 4294901760
        %v667 = vsub.f32 %v665, %v666
        %v668 = vand.u32 %v667, 4294901760
        %669 = vmatprep.subr.mxu0 %v668
        %v670 = vand.u32 %v335, 4294901760
        %v671 = vsub.f32 %v335, %v670
        %v672 = vand.u32 %v671, 4294901760
        %v673 = vsub.f32 %v671, %v672
        %v674 = vand.u32 %v673, 4294901760
        %675 = vmatpush1.msra.mxu0 %v674
        %v676 = vand.u32 %v338, 4294901760
        %v677 = vsub.f32 %v338, %v676
        %v678 = vand.u32 %v677, 4294901760
        %v679 = vsub.f32 %v677, %v678
        %v680 = vand.u32 %v679, 4294901760
        %681 = vmatprep.subr.mxu0 %v680
        %v682 = vand.u32 %v337, 4294901760
        %v683 = vsub.f32 %v337, %v682
        %v684 = vand.u32 %v683, 4294901760
        %v685 = vsub.f32 %v683, %v684
        %v686 = vand.u32 %v685, 4294901760
        %687 = vmatpush1.msra.mxu0 %v686
        %v688 = vand.u32 %v340, 4294901760
        %v689 = vsub.f32 %v340, %v688
        %v690 = vand.u32 %v689, 4294901760
        %v691 = vsub.f32 %v689, %v690
        %v692 = vand.u32 %v691, 4294901760
        %693 = vmatprep.subr.mxu0 %v692
        %v694 = vand.u32 %v339, 4294901760
        %v695 = vsub.f32 %v339, %v694
        %v696 = vand.u32 %v695, 4294901760
        %v697 = vsub.f32 %v695, %v696
        %v698 = vand.u32 %v697, 4294901760
        %699 = vmatpush1.msra.mxu0 %v698
        %v700 = vand.u32 %v342, 4294901760
        %v701 = vsub.f32 %v342, %v700
        %v702 = vand.u32 %v701, 4294901760
        %v703 = vsub.f32 %v701, %v702
        %v704 = vand.u32 %v703, 4294901760
        %705 = vmatprep.subr.mxu0 %v704
        %v706 = vand.u32 %v341, 4294901760
        %v707 = vsub.f32 %v341, %v706
        %v708 = vand.u32 %v707, 4294901760
        %v709 = vsub.f32 %v707, %v708
        %v710 = vand.u32 %v709, 4294901760
        %711 = vmatpush1.msra.mxu0 %v710
        %v712 = vand.u32 %v344, 4294901760
        %v713 = vsub.f32 %v344, %v712
        %v714 = vand.u32 %v713, 4294901760
        %v715 = vsub.f32 %v713, %v714
        %v716 = vand.u32 %v715, 4294901760
        %717 = vmatprep.subr.mxu0 %v716
        %v718 = vand.u32 %v343, 4294901760
        %v719 = vsub.f32 %v343, %v718
        %v720 = vand.u32 %v719, 4294901760
        %v721 = vsub.f32 %v719, %v720
        %v722 = vand.u32 %v721, 4294901760
        %723 = vmatpush1.msra.mxu0 %v722
        %v724 = vand.u32 %v346, 4294901760
        %v725 = vsub.f32 %v346, %v724
        %v726 = vand.u32 %v725, 4294901760
        %v727 = vsub.f32 %v725, %v726
        %v728 = vand.u32 %v727, 4294901760
        %729 = vmatprep.subr.mxu0 %v728
        %v730 = vand.u32 %v345, 4294901760
        %v731 = vsub.f32 %v345, %v730
        %v732 = vand.u32 %v731, 4294901760
        %v733 = vsub.f32 %v731, %v732
        %v734 = vand.u32 %v733, 4294901760
        %735 = vmatpush1.msra.mxu0 %v734
        %v736 = vand.u32 %v348, 4294901760
        %v737 = vsub.f32 %v348, %v736
        %v738 = vand.u32 %v737, 4294901760
        %v739 = vsub.f32 %v737, %v738
        %v740 = vand.u32 %v739, 4294901760
        %741 = vmatprep.subr.mxu0 %v740
        %v742 = vand.u32 %v347, 4294901760
        %v743 = vsub.f32 %v347, %v742
        %v744 = vand.u32 %v743, 4294901760
        %v745 = vsub.f32 %v743, %v744
        %v746 = vand.u32 %v745, 4294901760
        %747 = vmatpush1.msra.mxu0 %v746
        %v748 = vand.u32 %v350, 4294901760
        %v749 = vsub.f32 %v350, %v748
        %v750 = vand.u32 %v749, 4294901760
        %v751 = vsub.f32 %v749, %v750
        %v752 = vand.u32 %v751, 4294901760
        %753 = vmatprep.subr.mxu0 %v752
        %v754 = vand.u32 %v349, 4294901760
        %v755 = vsub.f32 %v349, %v754
        %v756 = vand.u32 %v755, 4294901760
        %v757 = vsub.f32 %v755, %v756
        %v758 = vand.u32 %v757, 4294901760
        %759 = vmatpush1.msra.mxu0 %v758
        %v760 = vand.u32 %v352, 4294901760
        %v761 = vsub.f32 %v352, %v760
        %v762 = vand.u32 %v761, 4294901760
        %v763 = vsub.f32 %v761, %v762
        %v764 = vand.u32 %v763, 4294901760
        %765 = vmatprep.subr.mxu0 %v764
        %v766 = vand.u32 %v351, 4294901760
        %v767 = vsub.f32 %v351, %v766
        %v768 = vand.u32 %v767, 4294901760
        %v769 = vsub.f32 %v767, %v768
        %v770 = vand.u32 %v769, 4294901760
        %771 = vmatpush1.msra.mxu0 %v770
        %v772 = vand.u32 %v354, 4294901760
        %v773 = vsub.f32 %v354, %v772
        %v774 = vand.u32 %v773, 4294901760
        %v775 = vsub.f32 %v773, %v774
        %v776 = vand.u32 %v775, 4294901760
        %777 = vmatprep.subr.mxu0 %v776
        %v778 = vand.u32 %v353, 4294901760
        %v779 = vsub.f32 %v353, %v778
        %v780 = vand.u32 %v779, 4294901760
        %v781 = vsub.f32 %v779, %v780
        %v782 = vand.u32 %v781, 4294901760
        %783 = vmatpush1.msra.mxu0 %v782
        %v784 = vand.u32 %v356, 4294901760
        %v785 = vsub.f32 %v356, %v784
        %v786 = vand.u32 %v785, 4294901760
        %v787 = vsub.f32 %v785, %v786
        %v788 = vand.u32 %v787, 4294901760
        %789 = vmatprep.subr.mxu0 %v788
        %v790 = vand.u32 %v355, 4294901760
        %v791 = vsub.f32 %v355, %v790
        %v792 = vand.u32 %v791, 4294901760
        %v793 = vsub.f32 %v791, %v792
        %v794 = vand.u32 %v793, 4294901760
        %795 = vmatpush1.msra.mxu0 %v794
        %v796 = vand.u32 %v358, 4294901760
        %v797 = vsub.f32 %v358, %v796
        %v798 = vand.u32 %v797, 4294901760
        %v799 = vsub.f32 %v797, %v798
        %v800 = vand.u32 %v799, 4294901760
        %801 = vmatprep.subr.mxu0 %v800
        %v802 = vand.u32 %v357, 4294901760
        %v803 = vsub.f32 %v357, %v802
        %v804 = vand.u32 %v803, 4294901760
        %v805 = vsub.f32 %v803, %v804
        %v806 = vand.u32 %v805, 4294901760
        %807 = vmatpush1.msra.mxu0 %v806
        %v808 = vand.u32 %v360, 4294901760
        %v809 = vsub.f32 %v360, %v808
        %v810 = vand.u32 %v809, 4294901760
        %v811 = vsub.f32 %v809, %v810
        %v812 = vand.u32 %v811, 4294901760
        %813 = vmatprep.subr.mxu0 %v812
        %v814 = vand.u32 %v359, 4294901760
        %v815 = vsub.f32 %v359, %v814
        %v816 = vand.u32 %v815, 4294901760
        %v817 = vsub.f32 %v815, %v816
        %v818 = vand.u32 %v817, 4294901760
        %819 = vmatpush1.msra.mxu0 %v818
        %v820 = vand.u32 %v362, 4294901760
        %v821 = vsub.f32 %v362, %v820
        %v822 = vand.u32 %v821, 4294901760
        %v823 = vsub.f32 %v821, %v822
        %v824 = vand.u32 %v823, 4294901760
        %825 = vmatprep.subr.mxu0 %v824
        %v826 = vand.u32 %v361, 4294901760
        %v827 = vsub.f32 %v361, %v826
        %v828 = vand.u32 %v827, 4294901760
        %v829 = vsub.f32 %v827, %v828
        %v830 = vand.u32 %v829, 4294901760
        %831 = vmatpush1.msra.mxu0 %v830
        %v832 = vand.u32 %v364, 4294901760
        %v833 = vsub.f32 %v364, %v832
        %v834 = vand.u32 %v833, 4294901760
        %v835 = vsub.f32 %v833, %v834
        %v836 = vand.u32 %v835, 4294901760
        %837 = vmatprep.subr.mxu0 %v836
        %v838 = vand.u32 %v363, 4294901760
        %v839 = vsub.f32 %v363, %v838
        %v840 = vand.u32 %v839, 4294901760
        %v841 = vsub.f32 %v839, %v840
        %v842 = vand.u32 %v841, 4294901760
        %843 = vmatpush1.msra.mxu0 %v842
        %v844 = vand.u32 %v366, 4294901760
        %v845 = vsub.f32 %v366, %v844
        %v846 = vand.u32 %v845, 4294901760
        %v847 = vsub.f32 %v845, %v846
        %v848 = vand.u32 %v847, 4294901760
        %849 = vmatprep.subr.mxu0 %v848
        %v850 = vand.u32 %v365, 4294901760
        %v851 = vsub.f32 %v365, %v850
        %v852 = vand.u32 %v851, 4294901760
        %v853 = vsub.f32 %v851, %v852
        %v854 = vand.u32 %v853, 4294901760
        %855 = vmatpush1.msra.mxu0 %v854
        %v856 = vand.u32 %v368, 4294901760
        %v857 = vsub.f32 %v368, %v856
        %v858 = vand.u32 %v857, 4294901760
        %v859 = vsub.f32 %v857, %v858
        %v860 = vand.u32 %v859, 4294901760
        %861 = vmatprep.subr.mxu0 %v860
        %v862 = vand.u32 %v367, 4294901760
        %v863 = vsub.f32 %v367, %v862
        %v864 = vand.u32 %v863, 4294901760
        %v865 = vsub.f32 %v863, %v864
        %v866 = vand.u32 %v865, 4294901760
        %867 = vmatpush1.msra.mxu0 %v866
        %v868 = vand.u32 %v370, 4294901760
        %v869 = vsub.f32 %v370, %v868
        %v870 = vand.u32 %v869, 4294901760
        %v871 = vsub.f32 %v869, %v870
        %v872 = vand.u32 %v871, 4294901760
        %873 = vmatprep.subr.mxu0 %v872
        %v874 = vand.u32 %v369, 4294901760
        %v875 = vsub.f32 %v369, %v874
        %v876 = vand.u32 %v875, 4294901760
        %v877 = vsub.f32 %v875, %v876
        %v878 = vand.u32 %v877, 4294901760
        %879 = vmatpush1.msra.mxu0 %v878
        %v880 = vand.u32 %v372, 4294901760
        %v881 = vsub.f32 %v372, %v880
        %v882 = vand.u32 %v881, 4294901760
        %v883 = vsub.f32 %v881, %v882
        %v884 = vand.u32 %v883, 4294901760
        %885 = vmatprep.subr.mxu0 %v884
        %v886 = vand.u32 %v371, 4294901760
        %v887 = vsub.f32 %v371, %v886
        %v888 = vand.u32 %v887, 4294901760
        %v889 = vsub.f32 %v887, %v888
        %v890 = vand.u32 %v889, 4294901760
        %891 = vmatpush1.msra.mxu0 %v890
        %v892 = vand.u32 %v374, 4294901760
        %v893 = vsub.f32 %v374, %v892
        %v894 = vand.u32 %v893, 4294901760
        %v895 = vsub.f32 %v893, %v894
        %v896 = vand.u32 %v895, 4294901760
        %897 = vmatprep.subr.mxu0 %v896
        %v898 = vand.u32 %v373, 4294901760
        %v899 = vsub.f32 %v373, %v898
        %v900 = vand.u32 %v899, 4294901760
        %v901 = vsub.f32 %v899, %v900
        %v902 = vand.u32 %v901, 4294901760
        %903 = vmatpush1.msra.mxu0 %v902
        %v904 = vand.u32 %v246, 4294901760
        %905 = vmatprep.mubr.f32.mxu0 %v904
        %v906 = vand.u32 %v239, 4294901760
        %907 = vmatmul.mubr.f32.gmra.mrb[0].mxu0 %v906
        %v908 = vpop.f32.mrb[0].mxu0
        %v909 = vadd.f32 %v516, %v908
        %v910 = vpop.f32.mrb[0].mxu0
        %v911 = vadd.f32 %v518, %v910
        %912 = vdwg.mxu0
        %v913 = vand.u32 %v312, 4294901760
        %v914 = vsub.f32 %v312, %v913
        %915 = vmatprep.subr.mxu0 %v914
        %v916 = vand.u32 %v311, 4294901760
        %v917 = vsub.f32 %v311, %v916
        %918 = vmatpush1.msra.mxu0 %v917
        %v919 = vand.u32 %v314, 4294901760
        %v920 = vsub.f32 %v314, %v919
        %921 = vmatprep.subr.mxu0 %v920
        %v922 = vand.u32 %v313, 4294901760
        %v923 = vsub.f32 %v313, %v922
        %924 = vmatpush1.msra.mxu0 %v923
        %v925 = vand.u32 %v316, 4294901760
        %v926 = vsub.f32 %v316, %v925
        %927 = vmatprep.subr.mxu0 %v926
        %v928 = vand.u32 %v315, 4294901760
        %v929 = vsub.f32 %v315, %v928
        %930 = vmatpush1.msra.mxu0 %v929
        %v931 = vand.u32 %v318, 4294901760
        %v932 = vsub.f32 %v318, %v931
        %933 = vmatprep.subr.mxu0 %v932
        %v934 = vand.u32 %v317, 4294901760
        %v935 = vsub.f32 %v317, %v934
        %936 = vmatpush1.msra.mxu0 %v935
        %v937 = vand.u32 %v320, 4294901760
        %v938 = vsub.f32 %v320, %v937
        %939 = vmatprep.subr.mxu0 %v938
        %v940 = vand.u32 %v319, 4294901760
        %v941 = vsub.f32 %v319, %v940
        %942 = vmatpush1.msra.mxu0 %v941
        %v943 = vand.u32 %v322, 4294901760
        %v944 = vsub.f32 %v322, %v943
        %945 = vmatprep.subr.mxu0 %v944
        %v946 = vand.u32 %v321, 4294901760
        %v947 = vsub.f32 %v321, %v946
        %948 = vmatpush1.msra.mxu0 %v947
        %v949 = vand.u32 %v324, 4294901760
        %v950 = vsub.f32 %v324, %v949
        %951 = vmatprep.subr.mxu0 %v950
        %v952 = vand.u32 %v323, 4294901760
        %v953 = vsub.f32 %v323, %v952
        %954 = vmatpush1.msra.mxu0 %v953
        %v955 = vand.u32 %v326, 4294901760
        %v956 = vsub.f32 %v326, %v955
        %957 = vmatprep.subr.mxu0 %v956
        %v958 = vand.u32 %v325, 4294901760
        %v959 = vsub.f32 %v325, %v958
        %960 = vmatpush1.msra.mxu0 %v959
        %v961 = vand.u32 %v328, 4294901760
        %v962 = vsub.f32 %v328, %v961
        %963 = vmatprep.subr.mxu0 %v962
        %v964 = vand.u32 %v327, 4294901760
        %v965 = vsub.f32 %v327, %v964
        %966 = vmatpush1.msra.mxu0 %v965
        %v967 = vand.u32 %v330, 4294901760
        %v968 = vsub.f32 %v330, %v967
        %969 = vmatprep.subr.mxu0 %v968
        %v970 = vand.u32 %v329, 4294901760
        %v971 = vsub.f32 %v329, %v970
        %972 = vmatpush1.msra.mxu0 %v971
        %v973 = vand.u32 %v332, 4294901760
        %v974 = vsub.f32 %v332, %v973
        %975 = vmatprep.subr.mxu0 %v974
        %v976 = vand.u32 %v331, 4294901760
        %v977 = vsub.f32 %v331, %v976
        %978 = vmatpush1.msra.mxu0 %v977
        %v979 = vand.u32 %v334, 4294901760
        %v980 = vsub.f32 %v334, %v979
        %981 = vmatprep.subr.mxu0 %v980
        %v982 = vand.u32 %v333, 4294901760
        %v983 = vsub.f32 %v333, %v982
        %984 = vmatpush1.msra.mxu0 %v983
        %v985 = vand.u32 %v336, 4294901760
        %v986 = vsub.f32 %v336, %v985
        %987 = vmatprep.subr.mxu0 %v986
        %v988 = vand.u32 %v335, 4294901760
        %v989 = vsub.f32 %v335, %v988
        %990 = vmatpush1.msra.mxu0 %v989
        %v991 = vand.u32 %v338, 4294901760
        %v992 = vsub.f32 %v338, %v991
        %993 = vmatprep.subr.mxu0 %v992
        %v994 = vand.u32 %v337, 4294901760
        %v995 = vsub.f32 %v337, %v994
        %996 = vmatpush1.msra.mxu0 %v995
        %v997 = vand.u32 %v340, 4294901760
        %v998 = vsub.f32 %v340, %v997
        %999 = vmatprep.subr.mxu0 %v998
        %v1000 = vand.u32 %v339, 4294901760
        %v1001 = vsub.f32 %v339, %v1000
        %1002 = vmatpush1.msra.mxu0 %v1001
        %v1003 = vand.u32 %v342, 4294901760
        %v1004 = vsub.f32 %v342, %v1003
        %1005 = vmatprep.subr.mxu0 %v1004
        %v1006 = vand.u32 %v341, 4294901760
        %v1007 = vsub.f32 %v341, %v1006
        %1008 = vmatpush1.msra.mxu0 %v1007
        %v1009 = vand.u32 %v344, 4294901760
        %v1010 = vsub.f32 %v344, %v1009
        %1011 = vmatprep.subr.mxu0 %v1010
        %v1012 = vand.u32 %v343, 4294901760
        %v1013 = vsub.f32 %v343, %v1012
        %1014 = vmatpush1.msra.mxu0 %v1013
        %v1015 = vand.u32 %v346, 4294901760
        %v1016 = vsub.f32 %v346, %v1015
        %1017 = vmatprep.subr.mxu0 %v1016
        %v1018 = vand.u32 %v345, 4294901760
        %v1019 = vsub.f32 %v345, %v1018
        %1020 = vmatpush1.msra.mxu0 %v1019
        %v1021 = vand.u32 %v348, 4294901760
        %v1022 = vsub.f32 %v348, %v1021
        %1023 = vmatprep.subr.mxu0 %v1022
        %v1024 = vand.u32 %v347, 4294901760
        %v1025 = vsub.f32 %v347, %v1024
        %1026 = vmatpush1.msra.mxu0 %v1025
        %v1027 = vand.u32 %v350, 4294901760
        %v1028 = vsub.f32 %v350, %v1027
        %1029 = vmatprep.subr.mxu0 %v1028
        %v1030 = vand.u32 %v349, 4294901760
        %v1031 = vsub.f32 %v349, %v1030
        %1032 = vmatpush1.msra.mxu0 %v1031
        %v1033 = vand.u32 %v352, 4294901760
        %v1034 = vsub.f32 %v352, %v1033
        %1035 = vmatprep.subr.mxu0 %v1034
        %v1036 = vand.u32 %v351, 4294901760
        %v1037 = vsub.f32 %v351, %v1036
        %1038 = vmatpush1.msra.mxu0 %v1037
        %v1039 = vand.u32 %v354, 4294901760
        %v1040 = vsub.f32 %v354, %v1039
        %1041 = vmatprep.subr.mxu0 %v1040
        %v1042 = vand.u32 %v353, 4294901760
        %v1043 = vsub.f32 %v353, %v1042
        %1044 = vmatpush1.msra.mxu0 %v1043
        %v1045 = vand.u32 %v356, 4294901760
        %v1046 = vsub.f32 %v356, %v1045
        %1047 = vmatprep.subr.mxu0 %v1046
        %v1048 = vand.u32 %v355, 4294901760
        %v1049 = vsub.f32 %v355, %v1048
        %1050 = vmatpush1.msra.mxu0 %v1049
        %v1051 = vand.u32 %v358, 4294901760
        %v1052 = vsub.f32 %v358, %v1051
        %1053 = vmatprep.subr.mxu0 %v1052
        %v1054 = vand.u32 %v357, 4294901760
        %v1055 = vsub.f32 %v357, %v1054
        %1056 = vmatpush1.msra.mxu0 %v1055
        %v1057 = vand.u32 %v360, 4294901760
        %v1058 = vsub.f32 %v360, %v1057
        %1059 = vmatprep.subr.mxu0 %v1058
        %v1060 = vand.u32 %v359, 4294901760
        %v1061 = vsub.f32 %v359, %v1060
        %1062 = vmatpush1.msra.mxu0 %v1061
        %v1063 = vand.u32 %v362, 4294901760
        %v1064 = vsub.f32 %v362, %v1063
        %1065 = vmatprep.subr.mxu0 %v1064
        %v1066 = vand.u32 %v361, 4294901760
        %v1067 = vsub.f32 %v361, %v1066
        %1068 = vmatpush1.msra.mxu0 %v1067
        %v1069 = vand.u32 %v364, 4294901760
        %v1070 = vsub.f32 %v364, %v1069
        %1071 = vmatprep.subr.mxu0 %v1070
        %v1072 = vand.u32 %v363, 4294901760
        %v1073 = vsub.f32 %v363, %v1072
        %1074 = vmatpush1.msra.mxu0 %v1073
        %v1075 = vand.u32 %v366, 4294901760
        %v1076 = vsub.f32 %v366, %v1075
        %1077 = vmatprep.subr.mxu0 %v1076
        %v1078 = vand.u32 %v365, 4294901760
        %v1079 = vsub.f32 %v365, %v1078
        %1080 = vmatpush1.msra.mxu0 %v1079
        %v1081 = vand.u32 %v368, 4294901760
        %v1082 = vsub.f32 %v368, %v1081
        %1083 = vmatprep.subr.mxu0 %v1082
        %v1084 = vand.u32 %v367, 4294901760
        %v1085 = vsub.f32 %v367, %v1084
        %1086 = vmatpush1.msra.mxu0 %v1085
        %v1087 = vand.u32 %v370, 4294901760
        %v1088 = vsub.f32 %v370, %v1087
        %1089 = vmatprep.subr.mxu0 %v1088
        %v1090 = vand.u32 %v369, 4294901760
        %v1091 = vsub.f32 %v369, %v1090
        %1092 = vmatpush1.msra.mxu0 %v1091
        %v1093 = vand.u32 %v372, 4294901760
        %v1094 = vsub.f32 %v372, %v1093
        %1095 = vmatprep.subr.mxu0 %v1094
        %v1096 = vand.u32 %v371, 4294901760
        %v1097 = vsub.f32 %v371, %v1096
        %1098 = vmatpush1.msra.mxu0 %v1097
        %v1099 = vand.u32 %v374, 4294901760
        %v1100 = vsub.f32 %v374, %v1099
        %1101 = vmatprep.subr.mxu0 %v1100
        %v1102 = vand.u32 %v373, 4294901760
        %v1103 = vsub.f32 %v373, %v1102
        %1104 = vmatpush1.msra.mxu0 %v1103
        %v1105 = vand.u32 %v246, 4294901760
        %v1106 = vsub.f32 %v246, %v1105
        %1107 = vmatprep.mubr.f32.mxu0 %v1106
        %v1108 = vand.u32 %v239, 4294901760
        %v1109 = vsub.f32 %v239, %v1108
        %1110 = vmatmul.mubr.f32.gmra.mrb[0].mxu0 %v1109
        %v1111 = vpop.f32.mrb[0].mxu0
        %v1112 = vadd.f32 %v909, %v1111
        %v1113 = vpop.f32.mrb[0].mxu0
        %v1114 = vadd.f32 %v911, %v1113
        %1115 = vdwg.mxu0
        %v1116 = vand.u32 %v312, 4294901760
        %1117 = vmatprep.subr.mxu0 %v1116
        %v1118 = vand.u32 %v311, 4294901760
        %1119 = vmatpush1.msra.mxu0 %v1118
        %v1120 = vand.u32 %v314, 4294901760
        %1121 = vmatprep.subr.mxu0 %v1120
        %v1122 = vand.u32 %v313, 4294901760
        %1123 = vmatpush1.msra.mxu0 %v1122
        %v1124 = vand.u32 %v316, 4294901760
        %1125 = vmatprep.subr.mxu0 %v1124
        %v1126 = vand.u32 %v315, 4294901760
        %1127 = vmatpush1.msra.mxu0 %v1126
        %v1128 = vand.u32 %v318, 4294901760
        %1129 = vmatprep.subr.mxu0 %v1128
        %v1130 = vand.u32 %v317, 4294901760
        %1131 = vmatpush1.msra.mxu0 %v1130
        %v1132 = vand.u32 %v320, 4294901760
        %1133 = vmatprep.subr.mxu0 %v1132
        %v1134 = vand.u32 %v319, 4294901760
        %1135 = vmatpush1.msra.mxu0 %v1134
        %v1136 = vand.u32 %v322, 4294901760
        %1137 = vmatprep.subr.mxu0 %v1136
        %v1138 = vand.u32 %v321, 4294901760
        %1139 = vmatpush1.msra.mxu0 %v1138
        %v1140 = vand.u32 %v324, 4294901760
        %1141 = vmatprep.subr.mxu0 %v1140
        %v1142 = vand.u32 %v323, 4294901760
        %1143 = vmatpush1.msra.mxu0 %v1142
        %v1144 = vand.u32 %v326, 4294901760
        %1145 = vmatprep.subr.mxu0 %v1144
        %v1146 = vand.u32 %v325, 4294901760
        %1147 = vmatpush1.msra.mxu0 %v1146
        %v1148 = vand.u32 %v328, 4294901760
        %1149 = vmatprep.subr.mxu0 %v1148
        %v1150 = vand.u32 %v327, 4294901760
        %1151 = vmatpush1.msra.mxu0 %v1150
        %v1152 = vand.u32 %v330, 4294901760
        %1153 = vmatprep.subr.mxu0 %v1152
        %v1154 = vand.u32 %v329, 4294901760
        %1155 = vmatpush1.msra.mxu0 %v1154
        %v1156 = vand.u32 %v332, 4294901760
        %1157 = vmatprep.subr.mxu0 %v1156
        %v1158 = vand.u32 %v331, 4294901760
        %1159 = vmatpush1.msra.mxu0 %v1158
        %v1160 = vand.u32 %v334, 4294901760
        %1161 = vmatprep.subr.mxu0 %v1160
        %v1162 = vand.u32 %v333, 4294901760
        %1163 = vmatpush1.msra.mxu0 %v1162
        %v1164 = vand.u32 %v336, 4294901760
        %1165 = vmatprep.subr.mxu0 %v1164
        %v1166 = vand.u32 %v335, 4294901760
        %1167 = vmatpush1.msra.mxu0 %v1166
        %v1168 = vand.u32 %v338, 4294901760
        %1169 = vmatprep.subr.mxu0 %v1168
        %v1170 = vand.u32 %v337, 4294901760
        %1171 = vmatpush1.msra.mxu0 %v1170
        %v1172 = vand.u32 %v340, 4294901760
        %1173 = vmatprep.subr.mxu0 %v1172
        %v1174 = vand.u32 %v339, 4294901760
        %1175 = vmatpush1.msra.mxu0 %v1174
        %v1176 = vand.u32 %v342, 4294901760
        %1177 = vmatprep.subr.mxu0 %v1176
        %v1178 = vand.u32 %v341, 4294901760
        %1179 = vmatpush1.msra.mxu0 %v1178
        %v1180 = vand.u32 %v344, 4294901760
        %1181 = vmatprep.subr.mxu0 %v1180
        %v1182 = vand.u32 %v343, 4294901760
        %1183 = vmatpush1.msra.mxu0 %v1182
        %v1184 = vand.u32 %v346, 4294901760
        %1185 = vmatprep.subr.mxu0 %v1184
        %v1186 = vand.u32 %v345, 4294901760
        %1187 = vmatpush1.msra.mxu0 %v1186
        %v1188 = vand.u32 %v348, 4294901760
        %1189 = vmatprep.subr.mxu0 %v1188
        %v1190 = vand.u32 %v347, 4294901760
        %1191 = vmatpush1.msra.mxu0 %v1190
        %v1192 = vand.u32 %v350, 4294901760
        %1193 = vmatprep.subr.mxu0 %v1192
        %v1194 = vand.u32 %v349, 4294901760
        %1195 = vmatpush1.msra.mxu0 %v1194
        %v1196 = vand.u32 %v352, 4294901760
        %1197 = vmatprep.subr.mxu0 %v1196
        %v1198 = vand.u32 %v351, 4294901760
        %1199 = vmatpush1.msra.mxu0 %v1198
        %v1200 = vand.u32 %v354, 4294901760
        %1201 = vmatprep.subr.mxu0 %v1200
        %v1202 = vand.u32 %v353, 4294901760
        %1203 = vmatpush1.msra.mxu0 %v1202
        %v1204 = vand.u32 %v356, 4294901760
        %1205 = vmatprep.subr.mxu0 %v1204
        %v1206 = vand.u32 %v355, 4294901760
        %1207 = vmatpush1.msra.mxu0 %v1206
        %v1208 = vand.u32 %v358, 4294901760
        %1209 = vmatprep.subr.mxu0 %v1208
        %v1210 = vand.u32 %v357, 4294901760
        %1211 = vmatpush1.msra.mxu0 %v1210
        %v1212 = vand.u32 %v360, 4294901760
        %1213 = vmatprep.subr.mxu0 %v1212
        %v1214 = vand.u32 %v359, 4294901760
        %1215 = vmatpush1.msra.mxu0 %v1214
        %v1216 = vand.u32 %v362, 4294901760
        %1217 = vmatprep.subr.mxu0 %v1216
        %v1218 = vand.u32 %v361, 4294901760
        %1219 = vmatpush1.msra.mxu0 %v1218
        %v1220 = vand.u32 %v364, 4294901760
        %1221 = vmatprep.subr.mxu0 %v1220
        %v1222 = vand.u32 %v363, 4294901760
        %1223 = vmatpush1.msra.mxu0 %v1222
        %v1224 = vand.u32 %v366, 4294901760
        %1225 = vmatprep.subr.mxu0 %v1224
        %v1226 = vand.u32 %v365, 4294901760
        %1227 = vmatpush1.msra.mxu0 %v1226
        %v1228 = vand.u32 %v368, 4294901760
        %1229 = vmatprep.subr.mxu0 %v1228
        %v1230 = vand.u32 %v367, 4294901760
        %1231 = vmatpush1.msra.mxu0 %v1230
        %v1232 = vand.u32 %v370, 4294901760
        %1233 = vmatprep.subr.mxu0 %v1232
        %v1234 = vand.u32 %v369, 4294901760
        %1235 = vmatpush1.msra.mxu0 %v1234
        %v1236 = vand.u32 %v372, 4294901760
        %1237 = vmatprep.subr.mxu0 %v1236
        %v1238 = vand.u32 %v371, 4294901760
        %1239 = vmatpush1.msra.mxu0 %v1238
        %v1240 = vand.u32 %v374, 4294901760
        %1241 = vmatprep.subr.mxu0 %v1240
        %v1242 = vand.u32 %v373, 4294901760
        %1243 = vmatpush1.msra.mxu0 %v1242
        %v1244 = vand.u32 %v246, 4294901760
        %v1245 = vsub.f32 %v246, %v1244
        %v1246 = vand.u32 %v1245, 4294901760
        %1247 = vmatprep.mubr.f32.mxu0 %v1246
        %v1248 = vand.u32 %v239, 4294901760
        %v1249 = vsub.f32 %v239, %v1248
        %v1250 = vand.u32 %v1249, 4294901760
        %1251 = vmatmul.mubr.f32.gmra.mrb[0].mxu0 %v1250
        %v1252 = vpop.f32.mrb[0].mxu0
        %v1253 = vadd.f32 %v1112, %v1252
        %v1254 = vpop.f32.mrb[0].mxu0
        %v1255 = vadd.f32 %v1114, %v1254
        %1256 = vdwg.mxu0
        %v1257 = vand.u32 %v312, 4294901760
        %v1258 = vsub.f32 %v312, %v1257
        %v1259 = vand.u32 %v1258, 4294901760
        %1260 = vmatprep.subr.mxu0 %v1259
        %v1261 = vand.u32 %v311, 4294901760
        %v1262 = vsub.f32 %v311, %v1261
        %v1263 = vand.u32 %v1262, 4294901760
        %1264 = vmatpush1.msra.mxu0 %v1263
        %v1265 = vand.u32 %v314, 4294901760
        %v1266 = vsub.f32 %v314, %v1265
        %v1267 = vand.u32 %v1266, 4294901760
        %1268 = vmatprep.subr.mxu0 %v1267
        %v1269 = vand.u32 %v313, 4294901760
        %v1270 = vsub.f32 %v313, %v1269
        %v1271 = vand.u32 %v1270, 4294901760
        %1272 = vmatpush1.msra.mxu0 %v1271
        %v1273 = vand.u32 %v316, 4294901760
        %v1274 = vsub.f32 %v316, %v1273
        %v1275 = vand.u32 %v1274, 4294901760
        %1276 = vmatprep.subr.mxu0 %v1275
        %v1277 = vand.u32 %v315, 4294901760
        %v1278 = vsub.f32 %v315, %v1277
        %v1279 = vand.u32 %v1278, 4294901760
        %1280 = vmatpush1.msra.mxu0 %v1279
        %v1281 = vand.u32 %v318, 4294901760
        %v1282 = vsub.f32 %v318, %v1281
        %v1283 = vand.u32 %v1282, 4294901760
        %1284 = vmatprep.subr.mxu0 %v1283
        %v1285 = vand.u32 %v317, 4294901760
        %v1286 = vsub.f32 %v317, %v1285
        %v1287 = vand.u32 %v1286, 4294901760
        %1288 = vmatpush1.msra.mxu0 %v1287
        %v1289 = vand.u32 %v320, 4294901760
        %v1290 = vsub.f32 %v320, %v1289
        %v1291 = vand.u32 %v1290, 4294901760
        %1292 = vmatprep.subr.mxu0 %v1291
        %v1293 = vand.u32 %v319, 4294901760
        %v1294 = vsub.f32 %v319, %v1293
        %v1295 = vand.u32 %v1294, 4294901760
        %1296 = vmatpush1.msra.mxu0 %v1295
        %v1297 = vand.u32 %v322, 4294901760
        %v1298 = vsub.f32 %v322, %v1297
        %v1299 = vand.u32 %v1298, 4294901760
        %1300 = vmatprep.subr.mxu0 %v1299
        %v1301 = vand.u32 %v321, 4294901760
        %v1302 = vsub.f32 %v321, %v1301
        %v1303 = vand.u32 %v1302, 4294901760
        %1304 = vmatpush1.msra.mxu0 %v1303
        %v1305 = vand.u32 %v324, 4294901760
        %v1306 = vsub.f32 %v324, %v1305
        %v1307 = vand.u32 %v1306, 4294901760
        %1308 = vmatprep.subr.mxu0 %v1307
        %v1309 = vand.u32 %v323, 4294901760
        %v1310 = vsub.f32 %v323, %v1309
        %v1311 = vand.u32 %v1310, 4294901760
        %1312 = vmatpush1.msra.mxu0 %v1311
        %v1313 = vand.u32 %v326, 4294901760
        %v1314 = vsub.f32 %v326, %v1313
        %v1315 = vand.u32 %v1314, 4294901760
        %1316 = vmatprep.subr.mxu0 %v1315
        %v1317 = vand.u32 %v325, 4294901760
        %v1318 = vsub.f32 %v325, %v1317
        %v1319 = vand.u32 %v1318, 4294901760
        %1320 = vmatpush1.msra.mxu0 %v1319
        %v1321 = vand.u32 %v328, 4294901760
        %v1322 = vsub.f32 %v328, %v1321
        %v1323 = vand.u32 %v1322, 4294901760
        %1324 = vmatprep.subr.mxu0 %v1323
        %v1325 = vand.u32 %v327, 4294901760
        %v1326 = vsub.f32 %v327, %v1325
        %v1327 = vand.u32 %v1326, 4294901760
        %1328 = vmatpush1.msra.mxu0 %v1327
        %v1329 = vand.u32 %v330, 4294901760
        %v1330 = vsub.f32 %v330, %v1329
        %v1331 = vand.u32 %v1330, 4294901760
        %1332 = vmatprep.subr.mxu0 %v1331
        %v1333 = vand.u32 %v329, 4294901760
        %v1334 = vsub.f32 %v329, %v1333
        %v1335 = vand.u32 %v1334, 4294901760
        %1336 = vmatpush1.msra.mxu0 %v1335
        %v1337 = vand.u32 %v332, 4294901760
        %v1338 = vsub.f32 %v332, %v1337
        %v1339 = vand.u32 %v1338, 4294901760
        %1340 = vmatprep.subr.mxu0 %v1339
        %v1341 = vand.u32 %v331, 4294901760
        %v1342 = vsub.f32 %v331, %v1341
        %v1343 = vand.u32 %v1342, 4294901760
        %1344 = vmatpush1.msra.mxu0 %v1343
        %v1345 = vand.u32 %v334, 4294901760
        %v1346 = vsub.f32 %v334, %v1345
        %v1347 = vand.u32 %v1346, 4294901760
        %1348 = vmatprep.subr.mxu0 %v1347
        %v1349 = vand.u32 %v333, 4294901760
        %v1350 = vsub.f32 %v333, %v1349
        %v1351 = vand.u32 %v1350, 4294901760
        %1352 = vmatpush1.msra.mxu0 %v1351
        %v1353 = vand.u32 %v336, 4294901760
        %v1354 = vsub.f32 %v336, %v1353
        %v1355 = vand.u32 %v1354, 4294901760
        %1356 = vmatprep.subr.mxu0 %v1355
        %v1357 = vand.u32 %v335, 4294901760
        %v1358 = vsub.f32 %v335, %v1357
        %v1359 = vand.u32 %v1358, 4294901760
        %1360 = vmatpush1.msra.mxu0 %v1359
        %v1361 = vand.u32 %v338, 4294901760
        %v1362 = vsub.f32 %v338, %v1361
        %v1363 = vand.u32 %v1362, 4294901760
        %1364 = vmatprep.subr.mxu0 %v1363
        %v1365 = vand.u32 %v337, 4294901760
        %v1366 = vsub.f32 %v337, %v1365
        %v1367 = vand.u32 %v1366, 4294901760
        %1368 = vmatpush1.msra.mxu0 %v1367
        %v1369 = vand.u32 %v340, 4294901760
        %v1370 = vsub.f32 %v340, %v1369
        %v1371 = vand.u32 %v1370, 4294901760
        %1372 = vmatprep.subr.mxu0 %v1371
        %v1373 = vand.u32 %v339, 4294901760
        %v1374 = vsub.f32 %v339, %v1373
        %v1375 = vand.u32 %v1374, 4294901760
        %1376 = vmatpush1.msra.mxu0 %v1375
        %v1377 = vand.u32 %v342, 4294901760
        %v1378 = vsub.f32 %v342, %v1377
        %v1379 = vand.u32 %v1378, 4294901760
        %1380 = vmatprep.subr.mxu0 %v1379
        %v1381 = vand.u32 %v341, 4294901760
        %v1382 = vsub.f32 %v341, %v1381
        %v1383 = vand.u32 %v1382, 4294901760
        %1384 = vmatpush1.msra.mxu0 %v1383
        %v1385 = vand.u32 %v344, 4294901760
        %v1386 = vsub.f32 %v344, %v1385
        %v1387 = vand.u32 %v1386, 4294901760
        %1388 = vmatprep.subr.mxu0 %v1387
        %v1389 = vand.u32 %v343, 4294901760
        %v1390 = vsub.f32 %v343, %v1389
        %v1391 = vand.u32 %v1390, 4294901760
        %1392 = vmatpush1.msra.mxu0 %v1391
        %v1393 = vand.u32 %v346, 4294901760
        %v1394 = vsub.f32 %v346, %v1393
        %v1395 = vand.u32 %v1394, 4294901760
        %1396 = vmatprep.subr.mxu0 %v1395
        %v1397 = vand.u32 %v345, 4294901760
        %v1398 = vsub.f32 %v345, %v1397
        %v1399 = vand.u32 %v1398, 4294901760
        %1400 = vmatpush1.msra.mxu0 %v1399
        %v1401 = vand.u32 %v348, 4294901760
        %v1402 = vsub.f32 %v348, %v1401
        %v1403 = vand.u32 %v1402, 4294901760
        %1404 = vmatprep.subr.mxu0 %v1403
        %v1405 = vand.u32 %v347, 4294901760
        %v1406 = vsub.f32 %v347, %v1405
        %v1407 = vand.u32 %v1406, 4294901760
        %1408 = vmatpush1.msra.mxu0 %v1407
        %v1409 = vand.u32 %v350, 4294901760
        %v1410 = vsub.f32 %v350, %v1409
        %v1411 = vand.u32 %v1410, 4294901760
        %1412 = vmatprep.subr.mxu0 %v1411
        %v1413 = vand.u32 %v349, 4294901760
        %v1414 = vsub.f32 %v349, %v1413
        %v1415 = vand.u32 %v1414, 4294901760
        %1416 = vmatpush1.msra.mxu0 %v1415
        %v1417 = vand.u32 %v352, 4294901760
        %v1418 = vsub.f32 %v352, %v1417
        %v1419 = vand.u32 %v1418, 4294901760
        %1420 = vmatprep.subr.mxu0 %v1419
        %v1421 = vand.u32 %v351, 4294901760
        %v1422 = vsub.f32 %v351, %v1421
        %v1423 = vand.u32 %v1422, 4294901760
        %1424 = vmatpush1.msra.mxu0 %v1423
        %v1425 = vand.u32 %v354, 4294901760
        %v1426 = vsub.f32 %v354, %v1425
        %v1427 = vand.u32 %v1426, 4294901760
        %1428 = vmatprep.subr.mxu0 %v1427
        %v1429 = vand.u32 %v353, 4294901760
        %v1430 = vsub.f32 %v353, %v1429
        %v1431 = vand.u32 %v1430, 4294901760
        %1432 = vmatpush1.msra.mxu0 %v1431
        %v1433 = vand.u32 %v356, 4294901760
        %v1434 = vsub.f32 %v356, %v1433
        %v1435 = vand.u32 %v1434, 4294901760
        %1436 = vmatprep.subr.mxu0 %v1435
        %v1437 = vand.u32 %v355, 4294901760
        %v1438 = vsub.f32 %v355, %v1437
        %v1439 = vand.u32 %v1438, 4294901760
        %1440 = vmatpush1.msra.mxu0 %v1439
        %v1441 = vand.u32 %v358, 4294901760
        %v1442 = vsub.f32 %v358, %v1441
        %v1443 = vand.u32 %v1442, 4294901760
        %1444 = vmatprep.subr.mxu0 %v1443
        %v1445 = vand.u32 %v357, 4294901760
        %v1446 = vsub.f32 %v357, %v1445
        %v1447 = vand.u32 %v1446, 4294901760
        %1448 = vmatpush1.msra.mxu0 %v1447
        %v1449 = vand.u32 %v360, 4294901760
        %v1450 = vsub.f32 %v360, %v1449
        %v1451 = vand.u32 %v1450, 4294901760
        %1452 = vmatprep.subr.mxu0 %v1451
        %v1453 = vand.u32 %v359, 4294901760
        %v1454 = vsub.f32 %v359, %v1453
        %v1455 = vand.u32 %v1454, 4294901760
        %1456 = vmatpush1.msra.mxu0 %v1455
        %v1457 = vand.u32 %v362, 4294901760
        %v1458 = vsub.f32 %v362, %v1457
        %v1459 = vand.u32 %v1458, 4294901760
        %1460 = vmatprep.subr.mxu0 %v1459
        %v1461 = vand.u32 %v361, 4294901760
        %v1462 = vsub.f32 %v361, %v1461
        %v1463 = vand.u32 %v1462, 4294901760
        %1464 = vmatpush1.msra.mxu0 %v1463
        %v1465 = vand.u32 %v364, 4294901760
        %v1466 = vsub.f32 %v364, %v1465
        %v1467 = vand.u32 %v1466, 4294901760
        %1468 = vmatprep.subr.mxu0 %v1467
        %v1469 = vand.u32 %v363, 4294901760
        %v1470 = vsub.f32 %v363, %v1469
        %v1471 = vand.u32 %v1470, 4294901760
        %1472 = vmatpush1.msra.mxu0 %v1471
        %v1473 = vand.u32 %v366, 4294901760
        %v1474 = vsub.f32 %v366, %v1473
        %v1475 = vand.u32 %v1474, 4294901760
        %1476 = vmatprep.subr.mxu0 %v1475
        %v1477 = vand.u32 %v365, 4294901760
        %v1478 = vsub.f32 %v365, %v1477
        %v1479 = vand.u32 %v1478, 4294901760
        %1480 = vmatpush1.msra.mxu0 %v1479
        %v1481 = vand.u32 %v368, 4294901760
        %v1482 = vsub.f32 %v368, %v1481
        %v1483 = vand.u32 %v1482, 4294901760
        %1484 = vmatprep.subr.mxu0 %v1483
        %v1485 = vand.u32 %v367, 4294901760
        %v1486 = vsub.f32 %v367, %v1485
        %v1487 = vand.u32 %v1486, 4294901760
        %1488 = vmatpush1.msra.mxu0 %v1487
        %v1489 = vand.u32 %v370, 4294901760
        %v1490 = vsub.f32 %v370, %v1489
        %v1491 = vand.u32 %v1490, 4294901760
        %1492 = vmatprep.subr.mxu0 %v1491
        %v1493 = vand.u32 %v369, 4294901760
        %v1494 = vsub.f32 %v369, %v1493
        %v1495 = vand.u32 %v1494, 4294901760
        %1496 = vmatpush1.msra.mxu0 %v1495
        %v1497 = vand.u32 %v372, 4294901760
        %v1498 = vsub.f32 %v372, %v1497
        %v1499 = vand.u32 %v1498, 4294901760
        %1500 = vmatprep.subr.mxu0 %v1499
        %v1501 = vand.u32 %v371, 4294901760
        %v1502 = vsub.f32 %v371, %v1501
        %v1503 = vand.u32 %v1502, 4294901760
        %1504 = vmatpush1.msra.mxu0 %v1503
        %v1505 = vand.u32 %v374, 4294901760
        %v1506 = vsub.f32 %v374, %v1505
        %v1507 = vand.u32 %v1506, 4294901760
        %1508 = vmatprep.subr.mxu0 %v1507
        %v1509 = vand.u32 %v373, 4294901760
        %v1510 = vsub.f32 %v373, %v1509
        %v1511 = vand.u32 %v1510, 4294901760
        %1512 = vmatpush1.msra.mxu0 %v1511
        %v1513 = vand.u32 %v246, 4294901760
        %1514 = vmatprep.mubr.f32.mxu0 %v1513
        %v1515 = vand.u32 %v239, 4294901760
        %1516 = vmatmul.mubr.f32.gmra.mrb[0].mxu0 %v1515
        %v1517 = vpop.f32.mrb[0].mxu0
        %v1518 = vadd.f32 %v1253, %v1517
        %v1519 = vpop.f32.mrb[0].mxu0
        %v1520 = vadd.f32 %v1255, %v1519
        %1521 = vdwg.mxu0
        %v1522 = vand.u32 %v312, 4294901760
        %1523 = vmatprep.subr.mxu0 %v1522
        %v1524 = vand.u32 %v311, 4294901760
        %1525 = vmatpush1.msra.mxu0 %v1524
        %v1526 = vand.u32 %v314, 4294901760
        %1527 = vmatprep.subr.mxu0 %v1526
        %v1528 = vand.u32 %v313, 4294901760
        %1529 = vmatpush1.msra.mxu0 %v1528
        %v1530 = vand.u32 %v316, 4294901760
        %1531 = vmatprep.subr.mxu0 %v1530
        %v1532 = vand.u32 %v315, 4294901760
        %1533 = vmatpush1.msra.mxu0 %v1532
        %v1534 = vand.u32 %v318, 4294901760
        %1535 = vmatprep.subr.mxu0 %v1534
        %v1536 = vand.u32 %v317, 4294901760
        %1537 = vmatpush1.msra.mxu0 %v1536
        %v1538 = vand.u32 %v320, 4294901760
        %1539 = vmatprep.subr.mxu0 %v1538
        %v1540 = vand.u32 %v319, 4294901760
        %1541 = vmatpush1.msra.mxu0 %v1540
        %v1542 = vand.u32 %v322, 4294901760
        %1543 = vmatprep.subr.mxu0 %v1542
        %v1544 = vand.u32 %v321, 4294901760
        %1545 = vmatpush1.msra.mxu0 %v1544
        %v1546 = vand.u32 %v324, 4294901760
        %1547 = vmatprep.subr.mxu0 %v1546
        %v1548 = vand.u32 %v323, 4294901760
        %1549 = vmatpush1.msra.mxu0 %v1548
        %v1550 = vand.u32 %v326, 4294901760
        %1551 = vmatprep.subr.mxu0 %v1550
        %v1552 = vand.u32 %v325, 4294901760
        %1553 = vmatpush1.msra.mxu0 %v1552
        %v1554 = vand.u32 %v328, 4294901760
        %1555 = vmatprep.subr.mxu0 %v1554
        %v1556 = vand.u32 %v327, 4294901760
        %1557 = vmatpush1.msra.mxu0 %v1556
        %v1558 = vand.u32 %v330, 4294901760
        %1559 = vmatprep.subr.mxu0 %v1558
        %v1560 = vand.u32 %v329, 4294901760
        %1561 = vmatpush1.msra.mxu0 %v1560
        %v1562 = vand.u32 %v332, 4294901760
        %1563 = vmatprep.subr.mxu0 %v1562
        %v1564 = vand.u32 %v331, 4294901760
        %1565 = vmatpush1.msra.mxu0 %v1564
        %v1566 = vand.u32 %v334, 4294901760
        %1567 = vmatprep.subr.mxu0 %v1566
        %v1568 = vand.u32 %v333, 4294901760
        %1569 = vmatpush1.msra.mxu0 %v1568
        %v1570 = vand.u32 %v336, 4294901760
        %1571 = vmatprep.subr.mxu0 %v1570
        %v1572 = vand.u32 %v335, 4294901760
        %1573 = vmatpush1.msra.mxu0 %v1572
        %v1574 = vand.u32 %v338, 4294901760
        %1575 = vmatprep.subr.mxu0 %v1574
        %v1576 = vand.u32 %v337, 4294901760
        %1577 = vmatpush1.msra.mxu0 %v1576
        %v1578 = vand.u32 %v340, 4294901760
        %1579 = vmatprep.subr.mxu0 %v1578
        %v1580 = vand.u32 %v339, 4294901760
        %1581 = vmatpush1.msra.mxu0 %v1580
        %v1582 = vand.u32 %v342, 4294901760
        %1583 = vmatprep.subr.mxu0 %v1582
        %v1584 = vand.u32 %v341, 4294901760
        %1585 = vmatpush1.msra.mxu0 %v1584
        %v1586 = vand.u32 %v344, 4294901760
        %1587 = vmatprep.subr.mxu0 %v1586
        %v1588 = vand.u32 %v343, 4294901760
        %1589 = vmatpush1.msra.mxu0 %v1588
        %v1590 = vand.u32 %v346, 4294901760
        %1591 = vmatprep.subr.mxu0 %v1590
        %v1592 = vand.u32 %v345, 4294901760
        %1593 = vmatpush1.msra.mxu0 %v1592
        %v1594 = vand.u32 %v348, 4294901760
        %1595 = vmatprep.subr.mxu0 %v1594
        %v1596 = vand.u32 %v347, 4294901760
        %1597 = vmatpush1.msra.mxu0 %v1596
        %v1598 = vand.u32 %v350, 4294901760
        %1599 = vmatprep.subr.mxu0 %v1598
        %v1600 = vand.u32 %v349, 4294901760
        %1601 = vmatpush1.msra.mxu0 %v1600
        %v1602 = vand.u32 %v352, 4294901760
        %1603 = vmatprep.subr.mxu0 %v1602
        %v1604 = vand.u32 %v351, 4294901760
        %1605 = vmatpush1.msra.mxu0 %v1604
        %v1606 = vand.u32 %v354, 4294901760
        %1607 = vmatprep.subr.mxu0 %v1606
        %v1608 = vand.u32 %v353, 4294901760
        %1609 = vmatpush1.msra.mxu0 %v1608
        %v1610 = vand.u32 %v356, 4294901760
        %1611 = vmatprep.subr.mxu0 %v1610
        %v1612 = vand.u32 %v355, 4294901760
        %1613 = vmatpush1.msra.mxu0 %v1612
        %v1614 = vand.u32 %v358, 4294901760
        %1615 = vmatprep.subr.mxu0 %v1614
        %v1616 = vand.u32 %v357, 4294901760
        %1617 = vmatpush1.msra.mxu0 %v1616
        %v1618 = vand.u32 %v360, 4294901760
        %1619 = vmatprep.subr.mxu0 %v1618
        %v1620 = vand.u32 %v359, 4294901760
        %1621 = vmatpush1.msra.mxu0 %v1620
        %v1622 = vand.u32 %v362, 4294901760
        %1623 = vmatprep.subr.mxu0 %v1622
        %v1624 = vand.u32 %v361, 4294901760
        %1625 = vmatpush1.msra.mxu0 %v1624
        %v1626 = vand.u32 %v364, 4294901760
        %1627 = vmatprep.subr.mxu0 %v1626
        %v1628 = vand.u32 %v363, 4294901760
        %1629 = vmatpush1.msra.mxu0 %v1628
        %v1630 = vand.u32 %v366, 4294901760
        %1631 = vmatprep.subr.mxu0 %v1630
        %v1632 = vand.u32 %v365, 4294901760
        %1633 = vmatpush1.msra.mxu0 %v1632
        %v1634 = vand.u32 %v368, 4294901760
        %1635 = vmatprep.subr.mxu0 %v1634
        %v1636 = vand.u32 %v367, 4294901760
        %1637 = vmatpush1.msra.mxu0 %v1636
        %v1638 = vand.u32 %v370, 4294901760
        %1639 = vmatprep.subr.mxu0 %v1638
        %v1640 = vand.u32 %v369, 4294901760
        %1641 = vmatpush1.msra.mxu0 %v1640
        %v1642 = vand.u32 %v372, 4294901760
        %1643 = vmatprep.subr.mxu0 %v1642
        %v1644 = vand.u32 %v371, 4294901760
        %1645 = vmatpush1.msra.mxu0 %v1644
        %v1646 = vand.u32 %v374, 4294901760
        %1647 = vmatprep.subr.mxu0 %v1646
        %v1648 = vand.u32 %v373, 4294901760
        %1649 = vmatpush1.msra.mxu0 %v1648
        %v1650 = vand.u32 %v246, 4294901760
        %1651 = vmatprep.mubr.f32.mxu0 %v1650
        %v1652 = vand.u32 %v239, 4294901760
        %1653 = vmatmul.mubr.f32.gmra.mrb[0].mxu0 %v1652
        %v1654 = vpop.f32.mrb[0].mxu0
        %v1655 = vadd.f32 %v1518, %v1654
        %v1656 = vpop.f32.mrb[0].mxu0
        %v1657 = vadd.f32 %v1520, %v1656
        %1658 = vdwg.mxu0
        %v1659 = vand.u32 %v248, 4294901760
        %1660 = vmatprep.subr.mxu0 %v1659
        %v1661 = vand.u32 %v247, 4294901760
        %1662 = vmatpush1.msra.mxu0 %v1661
        %v1663 = vand.u32 %v250, 4294901760
        %1664 = vmatprep.subr.mxu0 %v1663
        %v1665 = vand.u32 %v249, 4294901760
        %1666 = vmatpush1.msra.mxu0 %v1665
        %v1667 = vand.u32 %v252, 4294901760
        %1668 = vmatprep.subr.mxu0 %v1667
        %v1669 = vand.u32 %v251, 4294901760
        %1670 = vmatpush1.msra.mxu0 %v1669
        %v1671 = vand.u32 %v254, 4294901760
        %1672 = vmatprep.subr.mxu0 %v1671
        %v1673 = vand.u32 %v253, 4294901760
        %1674 = vmatpush1.msra.mxu0 %v1673
        %v1675 = vand.u32 %v256, 4294901760
        %1676 = vmatprep.subr.mxu0 %v1675
        %v1677 = vand.u32 %v255, 4294901760
        %1678 = vmatpush1.msra.mxu0 %v1677
        %v1679 = vand.u32 %v258, 4294901760
        %1680 = vmatprep.subr.mxu0 %v1679
        %v1681 = vand.u32 %v257, 4294901760
        %1682 = vmatpush1.msra.mxu0 %v1681
        %v1683 = vand.u32 %v260, 4294901760
        %1684 = vmatprep.subr.mxu0 %v1683
        %v1685 = vand.u32 %v259, 4294901760
        %1686 = vmatpush1.msra.mxu0 %v1685
        %v1687 = vand.u32 %v262, 4294901760
        %1688 = vmatprep.subr.mxu0 %v1687
        %v1689 = vand.u32 %v261, 4294901760
        %1690 = vmatpush1.msra.mxu0 %v1689
        %v1691 = vand.u32 %v264, 4294901760
        %1692 = vmatprep.subr.mxu0 %v1691
        %v1693 = vand.u32 %v263, 4294901760
        %1694 = vmatpush1.msra.mxu0 %v1693
        %v1695 = vand.u32 %v266, 4294901760
        %1696 = vmatprep.subr.mxu0 %v1695
        %v1697 = vand.u32 %v265, 4294901760
        %1698 = vmatpush1.msra.mxu0 %v1697
        %v1699 = vand.u32 %v268, 4294901760
        %1700 = vmatprep.subr.mxu0 %v1699
        %v1701 = vand.u32 %v267, 4294901760
        %1702 = vmatpush1.msra.mxu0 %v1701
        %v1703 = vand.u32 %v270, 4294901760
        %1704 = vmatprep.subr.mxu0 %v1703
        %v1705 = vand.u32 %v269, 4294901760
        %1706 = vmatpush1.msra.mxu0 %v1705
        %v1707 = vand.u32 %v272, 4294901760
        %1708 = vmatprep.subr.mxu0 %v1707
        %v1709 = vand.u32 %v271, 4294901760
        %1710 = vmatpush1.msra.mxu0 %v1709
        %v1711 = vand.u32 %v274, 4294901760
        %1712 = vmatprep.subr.mxu0 %v1711
        %v1713 = vand.u32 %v273, 4294901760
        %1714 = vmatpush1.msra.mxu0 %v1713
        %v1715 = vand.u32 %v276, 4294901760
        %1716 = vmatprep.subr.mxu0 %v1715
        %v1717 = vand.u32 %v275, 4294901760
        %1718 = vmatpush1.msra.mxu0 %v1717
        %v1719 = vand.u32 %v278, 4294901760
        %1720 = vmatprep.subr.mxu0 %v1719
        %v1721 = vand.u32 %v277, 4294901760
        %1722 = vmatpush1.msra.mxu0 %v1721
        %v1723 = vand.u32 %v280, 4294901760
        %1724 = vmatprep.subr.mxu0 %v1723
        %v1725 = vand.u32 %v279, 4294901760
        %1726 = vmatpush1.msra.mxu0 %v1725
        %v1727 = vand.u32 %v282, 4294901760
        %1728 = vmatprep.subr.mxu0 %v1727
        %v1729 = vand.u32 %v281, 4294901760
        %1730 = vmatpush1.msra.mxu0 %v1729
        %v1731 = vand.u32 %v284, 4294901760
        %1732 = vmatprep.subr.mxu0 %v1731
        %v1733 = vand.u32 %v283, 4294901760
        %1734 = vmatpush1.msra.mxu0 %v1733
        %v1735 = vand.u32 %v286, 4294901760
        %1736 = vmatprep.subr.mxu0 %v1735
        %v1737 = vand.u32 %v285, 4294901760
        %1738 = vmatpush1.msra.mxu0 %v1737
        %v1739 = vand.u32 %v288, 4294901760
        %1740 = vmatprep.subr.mxu0 %v1739
        %v1741 = vand.u32 %v287, 4294901760
        %1742 = vmatpush1.msra.mxu0 %v1741
        %v1743 = vand.u32 %v290, 4294901760
        %1744 = vmatprep.subr.mxu0 %v1743
        %v1745 = vand.u32 %v289, 4294901760
        %1746 = vmatpush1.msra.mxu0 %v1745
        %v1747 = vand.u32 %v292, 4294901760
        %1748 = vmatprep.subr.mxu0 %v1747
        %v1749 = vand.u32 %v291, 4294901760
        %1750 = vmatpush1.msra.mxu0 %v1749
        %v1751 = vand.u32 %v294, 4294901760
        %1752 = vmatprep.subr.mxu0 %v1751
        %v1753 = vand.u32 %v293, 4294901760
        %1754 = vmatpush1.msra.mxu0 %v1753
        %v1755 = vand.u32 %v296, 4294901760
        %1756 = vmatprep.subr.mxu0 %v1755
        %v1757 = vand.u32 %v295, 4294901760
        %1758 = vmatpush1.msra.mxu0 %v1757
        %v1759 = vand.u32 %v298, 4294901760
        %1760 = vmatprep.subr.mxu0 %v1759
        %v1761 = vand.u32 %v297, 4294901760
        %1762 = vmatpush1.msra.mxu0 %v1761
        %v1763 = vand.u32 %v300, 4294901760
        %1764 = vmatprep.subr.mxu0 %v1763
        %v1765 = vand.u32 %v299, 4294901760
        %1766 = vmatpush1.msra.mxu0 %v1765
        %v1767 = vand.u32 %v302, 4294901760
        %1768 = vmatprep.subr.mxu0 %v1767
        %v1769 = vand.u32 %v301, 4294901760
        %1770 = vmatpush1.msra.mxu0 %v1769
        %v1771 = vand.u32 %v304, 4294901760
        %1772 = vmatprep.subr.mxu0 %v1771
        %v1773 = vand.u32 %v303, 4294901760
        %1774 = vmatpush1.msra.mxu0 %v1773
        %v1775 = vand.u32 %v306, 4294901760
        %1776 = vmatprep.subr.mxu0 %v1775
        %v1777 = vand.u32 %v305, 4294901760
        %1778 = vmatpush1.msra.mxu0 %v1777
        %v1779 = vand.u32 %v308, 4294901760
        %1780 = vmatprep.subr.mxu0 %v1779
        %v1781 = vand.u32 %v307, 4294901760
        %1782 = vmatpush1.msra.mxu0 %v1781
        %v1783 = vand.u32 %v310, 4294901760
        %1784 = vmatprep.subr.mxu0 %v1783
        %v1785 = vand.u32 %v309, 4294901760
        %1786 = vmatpush1.msra.mxu0 %v1785
        %v1787 = vand.u32 %v232, 4294901760
        %v1788 = vsub.f32 %v232, %v1787
        %v1789 = vand.u32 %v1788, 4294901760
        %v1790 = vsub.f32 %v1788, %v1789
        %v1791 = vand.u32 %v1790, 4294901760
        %1792 = vmatprep.mubr.f32.mxu0 %v1791
        %v1793 = vand.u32 %v225, 4294901760
        %v1794 = vsub.f32 %v225, %v1793
        %v1795 = vand.u32 %v1794, 4294901760
        %v1796 = vsub.f32 %v1794, %v1795
        %v1797 = vand.u32 %v1796, 4294901760
        %1798 = vmatmul.mubr.f32.gmra.mrb[0].mxu0 %v1797
        %v1799 = vpop.f32.mrb[0].mxu0
        %v1800 = vadd.f32 %v1655, %v1799
        %v1801 = vpop.f32.mrb[0].mxu0
        %v1802 = vadd.f32 %v1657, %v1801
        %1803 = vdwg.mxu0
        %v1804 = vand.u32 %v248, 4294901760
        %v1805 = vsub.f32 %v248, %v1804
        %v1806 = vand.u32 %v1805, 4294901760
        %v1807 = vsub.f32 %v1805, %v1806
        %v1808 = vand.u32 %v1807, 4294901760
        %1809 = vmatprep.subr.mxu0 %v1808
        %v1810 = vand.u32 %v247, 4294901760
        %v1811 = vsub.f32 %v247, %v1810
        %v1812 = vand.u32 %v1811, 4294901760
        %v1813 = vsub.f32 %v1811, %v1812
        %v1814 = vand.u32 %v1813, 4294901760
        %1815 = vmatpush1.msra.mxu0 %v1814
        %v1816 = vand.u32 %v250, 4294901760
        %v1817 = vsub.f32 %v250, %v1816
        %v1818 = vand.u32 %v1817, 4294901760
        %v1819 = vsub.f32 %v1817, %v1818
        %v1820 = vand.u32 %v1819, 4294901760
        %1821 = vmatprep.subr.mxu0 %v1820
        %v1822 = vand.u32 %v249, 4294901760
        %v1823 = vsub.f32 %v249, %v1822
        %v1824 = vand.u32 %v1823, 4294901760
        %v1825 = vsub.f32 %v1823, %v1824
        %v1826 = vand.u32 %v1825, 4294901760
        %1827 = vmatpush1.msra.mxu0 %v1826
        %v1828 = vand.u32 %v252, 4294901760
        %v1829 = vsub.f32 %v252, %v1828
        %v1830 = vand.u32 %v1829, 4294901760
        %v1831 = vsub.f32 %v1829, %v1830
        %v1832 = vand.u32 %v1831, 4294901760
        %1833 = vmatprep.subr.mxu0 %v1832
        %v1834 = vand.u32 %v251, 4294901760
        %v1835 = vsub.f32 %v251, %v1834
        %v1836 = vand.u32 %v1835, 4294901760
        %v1837 = vsub.f32 %v1835, %v1836
        %v1838 = vand.u32 %v1837, 4294901760
        %1839 = vmatpush1.msra.mxu0 %v1838
        %v1840 = vand.u32 %v254, 4294901760
        %v1841 = vsub.f32 %v254, %v1840
        %v1842 = vand.u32 %v1841, 4294901760
        %v1843 = vsub.f32 %v1841, %v1842
        %v1844 = vand.u32 %v1843, 4294901760
        %1845 = vmatprep.subr.mxu0 %v1844
        %v1846 = vand.u32 %v253, 4294901760
        %v1847 = vsub.f32 %v253, %v1846
        %v1848 = vand.u32 %v1847, 4294901760
        %v1849 = vsub.f32 %v1847, %v1848
        %v1850 = vand.u32 %v1849, 4294901760
        %1851 = vmatpush1.msra.mxu0 %v1850
        %v1852 = vand.u32 %v256, 4294901760
        %v1853 = vsub.f32 %v256, %v1852
        %v1854 = vand.u32 %v1853, 4294901760
        %v1855 = vsub.f32 %v1853, %v1854
        %v1856 = vand.u32 %v1855, 4294901760
        %1857 = vmatprep.subr.mxu0 %v1856
        %v1858 = vand.u32 %v255, 4294901760
        %v1859 = vsub.f32 %v255, %v1858
        %v1860 = vand.u32 %v1859, 4294901760
        %v1861 = vsub.f32 %v1859, %v1860
        %v1862 = vand.u32 %v1861, 4294901760
        %1863 = vmatpush1.msra.mxu0 %v1862
        %v1864 = vand.u32 %v258, 4294901760
        %v1865 = vsub.f32 %v258, %v1864
        %v1866 = vand.u32 %v1865, 4294901760
        %v1867 = vsub.f32 %v1865, %v1866
        %v1868 = vand.u32 %v1867, 4294901760
        %1869 = vmatprep.subr.mxu0 %v1868
        %v1870 = vand.u32 %v257, 4294901760
        %v1871 = vsub.f32 %v257, %v1870
        %v1872 = vand.u32 %v1871, 4294901760
        %v1873 = vsub.f32 %v1871, %v1872
        %v1874 = vand.u32 %v1873, 4294901760
        %1875 = vmatpush1.msra.mxu0 %v1874
        %v1876 = vand.u32 %v260, 4294901760
        %v1877 = vsub.f32 %v260, %v1876
        %v1878 = vand.u32 %v1877, 4294901760
        %v1879 = vsub.f32 %v1877, %v1878
        %v1880 = vand.u32 %v1879, 4294901760
        %1881 = vmatprep.subr.mxu0 %v1880
        %v1882 = vand.u32 %v259, 4294901760
        %v1883 = vsub.f32 %v259, %v1882
        %v1884 = vand.u32 %v1883, 4294901760
        %v1885 = vsub.f32 %v1883, %v1884
        %v1886 = vand.u32 %v1885, 4294901760
        %1887 = vmatpush1.msra.mxu0 %v1886
        %v1888 = vand.u32 %v262, 4294901760
        %v1889 = vsub.f32 %v262, %v1888
        %v1890 = vand.u32 %v1889, 4294901760
        %v1891 = vsub.f32 %v1889, %v1890
        %v1892 = vand.u32 %v1891, 4294901760
        %1893 = vmatprep.subr.mxu0 %v1892
        %v1894 = vand.u32 %v261, 4294901760
        %v1895 = vsub.f32 %v261, %v1894
        %v1896 = vand.u32 %v1895, 4294901760
        %v1897 = vsub.f32 %v1895, %v1896
        %v1898 = vand.u32 %v1897, 4294901760
        %1899 = vmatpush1.msra.mxu0 %v1898
        %v1900 = vand.u32 %v264, 4294901760
        %v1901 = vsub.f32 %v264, %v1900
        %v1902 = vand.u32 %v1901, 4294901760
        %v1903 = vsub.f32 %v1901, %v1902
        %v1904 = vand.u32 %v1903, 4294901760
        %1905 = vmatprep.subr.mxu0 %v1904
        %v1906 = vand.u32 %v263, 4294901760
        %v1907 = vsub.f32 %v263, %v1906
        %v1908 = vand.u32 %v1907, 4294901760
        %v1909 = vsub.f32 %v1907, %v1908
        %v1910 = vand.u32 %v1909, 4294901760
        %1911 = vmatpush1.msra.mxu0 %v1910
        %v1912 = vand.u32 %v266, 4294901760
        %v1913 = vsub.f32 %v266, %v1912
        %v1914 = vand.u32 %v1913, 4294901760
        %v1915 = vsub.f32 %v1913, %v1914
        %v1916 = vand.u32 %v1915, 4294901760
        %1917 = vmatprep.subr.mxu0 %v1916
        %v1918 = vand.u32 %v265, 4294901760
        %v1919 = vsub.f32 %v265, %v1918
        %v1920 = vand.u32 %v1919, 4294901760
        %v1921 = vsub.f32 %v1919, %v1920
        %v1922 = vand.u32 %v1921, 4294901760
        %1923 = vmatpush1.msra.mxu0 %v1922
        %v1924 = vand.u32 %v268, 4294901760
        %v1925 = vsub.f32 %v268, %v1924
        %v1926 = vand.u32 %v1925, 4294901760
        %v1927 = vsub.f32 %v1925, %v1926
        %v1928 = vand.u32 %v1927, 4294901760
        %1929 = vmatprep.subr.mxu0 %v1928
        %v1930 = vand.u32 %v267, 4294901760
        %v1931 = vsub.f32 %v267, %v1930
        %v1932 = vand.u32 %v1931, 4294901760
        %v1933 = vsub.f32 %v1931, %v1932
        %v1934 = vand.u32 %v1933, 4294901760
        %1935 = vmatpush1.msra.mxu0 %v1934
        %v1936 = vand.u32 %v270, 4294901760
        %v1937 = vsub.f32 %v270, %v1936
        %v1938 = vand.u32 %v1937, 4294901760
        %v1939 = vsub.f32 %v1937, %v1938
        %v1940 = vand.u32 %v1939, 4294901760
        %1941 = vmatprep.subr.mxu0 %v1940
        %v1942 = vand.u32 %v269, 4294901760
        %v1943 = vsub.f32 %v269, %v1942
        %v1944 = vand.u32 %v1943, 4294901760
        %v1945 = vsub.f32 %v1943, %v1944
        %v1946 = vand.u32 %v1945, 4294901760
        %1947 = vmatpush1.msra.mxu0 %v1946
        %v1948 = vand.u32 %v272, 4294901760
        %v1949 = vsub.f32 %v272, %v1948
        %v1950 = vand.u32 %v1949, 4294901760
        %v1951 = vsub.f32 %v1949, %v1950
        %v1952 = vand.u32 %v1951, 4294901760
        %1953 = vmatprep.subr.mxu0 %v1952
        %v1954 = vand.u32 %v271, 4294901760
        %v1955 = vsub.f32 %v271, %v1954
        %v1956 = vand.u32 %v1955, 4294901760
        %v1957 = vsub.f32 %v1955, %v1956
        %v1958 = vand.u32 %v1957, 4294901760
        %1959 = vmatpush1.msra.mxu0 %v1958
        %v1960 = vand.u32 %v274, 4294901760
        %v1961 = vsub.f32 %v274, %v1960
        %v1962 = vand.u32 %v1961, 4294901760
        %v1963 = vsub.f32 %v1961, %v1962
        %v1964 = vand.u32 %v1963, 4294901760
        %1965 = vmatprep.subr.mxu0 %v1964
        %v1966 = vand.u32 %v273, 4294901760
        %v1967 = vsub.f32 %v273, %v1966
        %v1968 = vand.u32 %v1967, 4294901760
        %v1969 = vsub.f32 %v1967, %v1968
        %v1970 = vand.u32 %v1969, 4294901760
        %1971 = vmatpush1.msra.mxu0 %v1970
        %v1972 = vand.u32 %v276, 4294901760
        %v1973 = vsub.f32 %v276, %v1972
        %v1974 = vand.u32 %v1973, 4294901760
        %v1975 = vsub.f32 %v1973, %v1974
        %v1976 = vand.u32 %v1975, 4294901760
        %1977 = vmatprep.subr.mxu0 %v1976
        %v1978 = vand.u32 %v275, 4294901760
        %v1979 = vsub.f32 %v275, %v1978
        %v1980 = vand.u32 %v1979, 4294901760
        %v1981 = vsub.f32 %v1979, %v1980
        %v1982 = vand.u32 %v1981, 4294901760
        %1983 = vmatpush1.msra.mxu0 %v1982
        %v1984 = vand.u32 %v278, 4294901760
        %v1985 = vsub.f32 %v278, %v1984
        %v1986 = vand.u32 %v1985, 4294901760
        %v1987 = vsub.f32 %v1985, %v1986
        %v1988 = vand.u32 %v1987, 4294901760
        %1989 = vmatprep.subr.mxu0 %v1988
        %v1990 = vand.u32 %v277, 4294901760
        %v1991 = vsub.f32 %v277, %v1990
        %v1992 = vand.u32 %v1991, 4294901760
        %v1993 = vsub.f32 %v1991, %v1992
        %v1994 = vand.u32 %v1993, 4294901760
        %1995 = vmatpush1.msra.mxu0 %v1994
        %v1996 = vand.u32 %v280, 4294901760
        %v1997 = vsub.f32 %v280, %v1996
        %v1998 = vand.u32 %v1997, 4294901760
        %v1999 = vsub.f32 %v1997, %v1998
        %v2000 = vand.u32 %v1999, 4294901760
        %2001 = vmatprep.subr.mxu0 %v2000
        %v2002 = vand.u32 %v279, 4294901760
        %v2003 = vsub.f32 %v279, %v2002
        %v2004 = vand.u32 %v2003, 4294901760
        %v2005 = vsub.f32 %v2003, %v2004
        %v2006 = vand.u32 %v2005, 4294901760
        %2007 = vmatpush1.msra.mxu0 %v2006
        %v2008 = vand.u32 %v282, 4294901760
        %v2009 = vsub.f32 %v282, %v2008
        %v2010 = vand.u32 %v2009, 4294901760
        %v2011 = vsub.f32 %v2009, %v2010
        %v2012 = vand.u32 %v2011, 4294901760
        %2013 = vmatprep.subr.mxu0 %v2012
        %v2014 = vand.u32 %v281, 4294901760
        %v2015 = vsub.f32 %v281, %v2014
        %v2016 = vand.u32 %v2015, 4294901760
        %v2017 = vsub.f32 %v2015, %v2016
        %v2018 = vand.u32 %v2017, 4294901760
        %2019 = vmatpush1.msra.mxu0 %v2018
        %v2020 = vand.u32 %v284, 4294901760
        %v2021 = vsub.f32 %v284, %v2020
        %v2022 = vand.u32 %v2021, 4294901760
        %v2023 = vsub.f32 %v2021, %v2022
        %v2024 = vand.u32 %v2023, 4294901760
        %2025 = vmatprep.subr.mxu0 %v2024
        %v2026 = vand.u32 %v283, 4294901760
        %v2027 = vsub.f32 %v283, %v2026
        %v2028 = vand.u32 %v2027, 4294901760
        %v2029 = vsub.f32 %v2027, %v2028
        %v2030 = vand.u32 %v2029, 4294901760
        %2031 = vmatpush1.msra.mxu0 %v2030
        %v2032 = vand.u32 %v286, 4294901760
        %v2033 = vsub.f32 %v286, %v2032
        %v2034 = vand.u32 %v2033, 4294901760
        %v2035 = vsub.f32 %v2033, %v2034
        %v2036 = vand.u32 %v2035, 4294901760
        %2037 = vmatprep.subr.mxu0 %v2036
        %v2038 = vand.u32 %v285, 4294901760
        %v2039 = vsub.f32 %v285, %v2038
        %v2040 = vand.u32 %v2039, 4294901760
        %v2041 = vsub.f32 %v2039, %v2040
        %v2042 = vand.u32 %v2041, 4294901760
        %2043 = vmatpush1.msra.mxu0 %v2042
        %v2044 = vand.u32 %v288, 4294901760
        %v2045 = vsub.f32 %v288, %v2044
        %v2046 = vand.u32 %v2045, 4294901760
        %v2047 = vsub.f32 %v2045, %v2046
        %v2048 = vand.u32 %v2047, 4294901760
        %2049 = vmatprep.subr.mxu0 %v2048
        %v2050 = vand.u32 %v287, 4294901760
        %v2051 = vsub.f32 %v287, %v2050
        %v2052 = vand.u32 %v2051, 4294901760
        %v2053 = vsub.f32 %v2051, %v2052
        %v2054 = vand.u32 %v2053, 4294901760
        %2055 = vmatpush1.msra.mxu0 %v2054
        %v2056 = vand.u32 %v290, 4294901760
        %v2057 = vsub.f32 %v290, %v2056
        %v2058 = vand.u32 %v2057, 4294901760
        %v2059 = vsub.f32 %v2057, %v2058
        %v2060 = vand.u32 %v2059, 4294901760
        %2061 = vmatprep.subr.mxu0 %v2060
        %v2062 = vand.u32 %v289, 4294901760
        %v2063 = vsub.f32 %v289, %v2062
        %v2064 = vand.u32 %v2063, 4294901760
        %v2065 = vsub.f32 %v2063, %v2064
        %v2066 = vand.u32 %v2065, 4294901760
        %2067 = vmatpush1.msra.mxu0 %v2066
        %v2068 = vand.u32 %v292, 4294901760
        %v2069 = vsub.f32 %v292, %v2068
        %v2070 = vand.u32 %v2069, 4294901760
        %v2071 = vsub.f32 %v2069, %v2070
        %v2072 = vand.u32 %v2071, 4294901760
        %2073 = vmatprep.subr.mxu0 %v2072
        %v2074 = vand.u32 %v291, 4294901760
        %v2075 = vsub.f32 %v291, %v2074
        %v2076 = vand.u32 %v2075, 4294901760
        %v2077 = vsub.f32 %v2075, %v2076
        %v2078 = vand.u32 %v2077, 4294901760
        %2079 = vmatpush1.msra.mxu0 %v2078
        %v2080 = vand.u32 %v294, 4294901760
        %v2081 = vsub.f32 %v294, %v2080
        %v2082 = vand.u32 %v2081, 4294901760
        %v2083 = vsub.f32 %v2081, %v2082
        %v2084 = vand.u32 %v2083, 4294901760
        %2085 = vmatprep.subr.mxu0 %v2084
        %v2086 = vand.u32 %v293, 4294901760
        %v2087 = vsub.f32 %v293, %v2086
        %v2088 = vand.u32 %v2087, 4294901760
        %v2089 = vsub.f32 %v2087, %v2088
        %v2090 = vand.u32 %v2089, 4294901760
        %2091 = vmatpush1.msra.mxu0 %v2090
        %v2092 = vand.u32 %v296, 4294901760
        %v2093 = vsub.f32 %v296, %v2092
        %v2094 = vand.u32 %v2093, 4294901760
        %v2095 = vsub.f32 %v2093, %v2094
        %v2096 = vand.u32 %v2095, 4294901760
        %2097 = vmatprep.subr.mxu0 %v2096
        %v2098 = vand.u32 %v295, 4294901760
        %v2099 = vsub.f32 %v295, %v2098
        %v2100 = vand.u32 %v2099, 4294901760
        %v2101 = vsub.f32 %v2099, %v2100
        %v2102 = vand.u32 %v2101, 4294901760
        %2103 = vmatpush1.msra.mxu0 %v2102
        %v2104 = vand.u32 %v298, 4294901760
        %v2105 = vsub.f32 %v298, %v2104
        %v2106 = vand.u32 %v2105, 4294901760
        %v2107 = vsub.f32 %v2105, %v2106
        %v2108 = vand.u32 %v2107, 4294901760
        %2109 = vmatprep.subr.mxu0 %v2108
        %v2110 = vand.u32 %v297, 4294901760
        %v2111 = vsub.f32 %v297, %v2110
        %v2112 = vand.u32 %v2111, 4294901760
        %v2113 = vsub.f32 %v2111, %v2112
        %v2114 = vand.u32 %v2113, 4294901760
        %2115 = vmatpush1.msra.mxu0 %v2114
        %v2116 = vand.u32 %v300, 4294901760
        %v2117 = vsub.f32 %v300, %v2116
        %v2118 = vand.u32 %v2117, 4294901760
        %v2119 = vsub.f32 %v2117, %v2118
        %v2120 = vand.u32 %v2119, 4294901760
        %2121 = vmatprep.subr.mxu0 %v2120
        %v2122 = vand.u32 %v299, 4294901760
        %v2123 = vsub.f32 %v299, %v2122
        %v2124 = vand.u32 %v2123, 4294901760
        %v2125 = vsub.f32 %v2123, %v2124
        %v2126 = vand.u32 %v2125, 4294901760
        %2127 = vmatpush1.msra.mxu0 %v2126
        %v2128 = vand.u32 %v302, 4294901760
        %v2129 = vsub.f32 %v302, %v2128
        %v2130 = vand.u32 %v2129, 4294901760
        %v2131 = vsub.f32 %v2129, %v2130
        %v2132 = vand.u32 %v2131, 4294901760
        %2133 = vmatprep.subr.mxu0 %v2132
        %v2134 = vand.u32 %v301, 4294901760
        %v2135 = vsub.f32 %v301, %v2134
        %v2136 = vand.u32 %v2135, 4294901760
        %v2137 = vsub.f32 %v2135, %v2136
        %v2138 = vand.u32 %v2137, 4294901760
        %2139 = vmatpush1.msra.mxu0 %v2138
        %v2140 = vand.u32 %v304, 4294901760
        %v2141 = vsub.f32 %v304, %v2140
        %v2142 = vand.u32 %v2141, 4294901760
        %v2143 = vsub.f32 %v2141, %v2142
        %v2144 = vand.u32 %v2143, 4294901760
        %2145 = vmatprep.subr.mxu0 %v2144
        %v2146 = vand.u32 %v303, 4294901760
        %v2147 = vsub.f32 %v303, %v2146
        %v2148 = vand.u32 %v2147, 4294901760
        %v2149 = vsub.f32 %v2147, %v2148
        %v2150 = vand.u32 %v2149, 4294901760
        %2151 = vmatpush1.msra.mxu0 %v2150
        %v2152 = vand.u32 %v306, 4294901760
        %v2153 = vsub.f32 %v306, %v2152
        %v2154 = vand.u32 %v2153, 4294901760
        %v2155 = vsub.f32 %v2153, %v2154
        %v2156 = vand.u32 %v2155, 4294901760
        %2157 = vmatprep.subr.mxu0 %v2156
        %v2158 = vand.u32 %v305, 4294901760
        %v2159 = vsub.f32 %v305, %v2158
        %v2160 = vand.u32 %v2159, 4294901760
        %v2161 = vsub.f32 %v2159, %v2160
        %v2162 = vand.u32 %v2161, 4294901760
        %2163 = vmatpush1.msra.mxu0 %v2162
        %v2164 = vand.u32 %v308, 4294901760
        %v2165 = vsub.f32 %v308, %v2164
        %v2166 = vand.u32 %v2165, 4294901760
        %v2167 = vsub.f32 %v2165, %v2166
        %v2168 = vand.u32 %v2167, 4294901760
        %2169 = vmatprep.subr.mxu0 %v2168
        %v2170 = vand.u32 %v307, 4294901760
        %v2171 = vsub.f32 %v307, %v2170
        %v2172 = vand.u32 %v2171, 4294901760
        %v2173 = vsub.f32 %v2171, %v2172
        %v2174 = vand.u32 %v2173, 4294901760
        %2175 = vmatpush1.msra.mxu0 %v2174
        %v2176 = vand.u32 %v310, 4294901760
        %v2177 = vsub.f32 %v310, %v2176
        %v2178 = vand.u32 %v2177, 4294901760
        %v2179 = vsub.f32 %v2177, %v2178
        %v2180 = vand.u32 %v2179, 4294901760
        %2181 = vmatprep.subr.mxu0 %v2180
        %v2182 = vand.u32 %v309, 4294901760
        %v2183 = vsub.f32 %v309, %v2182
        %v2184 = vand.u32 %v2183, 4294901760
        %v2185 = vsub.f32 %v2183, %v2184
        %v2186 = vand.u32 %v2185, 4294901760
        %2187 = vmatpush1.msra.mxu0 %v2186
        %v2188 = vand.u32 %v232, 4294901760
        %2189 = vmatprep.mubr.f32.mxu0 %v2188
        %v2190 = vand.u32 %v225, 4294901760
        %2191 = vmatmul.mubr.f32.gmra.mrb[0].mxu0 %v2190
        %v2192 = vpop.f32.mrb[0].mxu0
        %v2193 = vadd.f32 %v1800, %v2192
        %v2194 = vpop.f32.mrb[0].mxu0
        %v2195 = vadd.f32 %v1802, %v2194
        %2196 = vdwg.mxu0
        %v2197 = vand.u32 %v248, 4294901760
        %v2198 = vsub.f32 %v248, %v2197
        %2199 = vmatprep.subr.mxu0 %v2198
        %v2200 = vand.u32 %v247, 4294901760
        %v2201 = vsub.f32 %v247, %v2200
        %2202 = vmatpush1.msra.mxu0 %v2201
        %v2203 = vand.u32 %v250, 4294901760
        %v2204 = vsub.f32 %v250, %v2203
        %2205 = vmatprep.subr.mxu0 %v2204
        %v2206 = vand.u32 %v249, 4294901760
        %v2207 = vsub.f32 %v249, %v2206
        %2208 = vmatpush1.msra.mxu0 %v2207
        %v2209 = vand.u32 %v252, 4294901760
        %v2210 = vsub.f32 %v252, %v2209
        %2211 = vmatprep.subr.mxu0 %v2210
        %v2212 = vand.u32 %v251, 4294901760
        %v2213 = vsub.f32 %v251, %v2212
        %2214 = vmatpush1.msra.mxu0 %v2213
        %v2215 = vand.u32 %v254, 4294901760
        %v2216 = vsub.f32 %v254, %v2215
        %2217 = vmatprep.subr.mxu0 %v2216
        %v2218 = vand.u32 %v253, 4294901760
        %v2219 = vsub.f32 %v253, %v2218
        %2220 = vmatpush1.msra.mxu0 %v2219
        %v2221 = vand.u32 %v256, 4294901760
        %v2222 = vsub.f32 %v256, %v2221
        %2223 = vmatprep.subr.mxu0 %v2222
        %v2224 = vand.u32 %v255, 4294901760
        %v2225 = vsub.f32 %v255, %v2224
        %2226 = vmatpush1.msra.mxu0 %v2225
        %v2227 = vand.u32 %v258, 4294901760
        %v2228 = vsub.f32 %v258, %v2227
        %2229 = vmatprep.subr.mxu0 %v2228
        %v2230 = vand.u32 %v257, 4294901760
        %v2231 = vsub.f32 %v257, %v2230
        %2232 = vmatpush1.msra.mxu0 %v2231
        %v2233 = vand.u32 %v260, 4294901760
        %v2234 = vsub.f32 %v260, %v2233
        %2235 = vmatprep.subr.mxu0 %v2234
        %v2236 = vand.u32 %v259, 4294901760
        %v2237 = vsub.f32 %v259, %v2236
        %2238 = vmatpush1.msra.mxu0 %v2237
        %v2239 = vand.u32 %v262, 4294901760
        %v2240 = vsub.f32 %v262, %v2239
        %2241 = vmatprep.subr.mxu0 %v2240
        %v2242 = vand.u32 %v261, 4294901760
        %v2243 = vsub.f32 %v261, %v2242
        %2244 = vmatpush1.msra.mxu0 %v2243
        %v2245 = vand.u32 %v264, 4294901760
        %v2246 = vsub.f32 %v264, %v2245
        %2247 = vmatprep.subr.mxu0 %v2246
        %v2248 = vand.u32 %v263, 4294901760
        %v2249 = vsub.f32 %v263, %v2248
        %2250 = vmatpush1.msra.mxu0 %v2249
        %v2251 = vand.u32 %v266, 4294901760
        %v2252 = vsub.f32 %v266, %v2251
        %2253 = vmatprep.subr.mxu0 %v2252
        %v2254 = vand.u32 %v265, 4294901760
        %v2255 = vsub.f32 %v265, %v2254
        %2256 = vmatpush1.msra.mxu0 %v2255
        %v2257 = vand.u32 %v268, 4294901760
        %v2258 = vsub.f32 %v268, %v2257
        %2259 = vmatprep.subr.mxu0 %v2258
        %v2260 = vand.u32 %v267, 4294901760
        %v2261 = vsub.f32 %v267, %v2260
        %2262 = vmatpush1.msra.mxu0 %v2261
        %v2263 = vand.u32 %v270, 4294901760
        %v2264 = vsub.f32 %v270, %v2263
        %2265 = vmatprep.subr.mxu0 %v2264
        %v2266 = vand.u32 %v269, 4294901760
        %v2267 = vsub.f32 %v269, %v2266
        %2268 = vmatpush1.msra.mxu0 %v2267
        %v2269 = vand.u32 %v272, 4294901760
        %v2270 = vsub.f32 %v272, %v2269
        %2271 = vmatprep.subr.mxu0 %v2270
        %v2272 = vand.u32 %v271, 4294901760
        %v2273 = vsub.f32 %v271, %v2272
        %2274 = vmatpush1.msra.mxu0 %v2273
        %v2275 = vand.u32 %v274, 4294901760
        %v2276 = vsub.f32 %v274, %v2275
        %2277 = vmatprep.subr.mxu0 %v2276
        %v2278 = vand.u32 %v273, 4294901760
        %v2279 = vsub.f32 %v273, %v2278
        %2280 = vmatpush1.msra.mxu0 %v2279
        %v2281 = vand.u32 %v276, 4294901760
        %v2282 = vsub.f32 %v276, %v2281
        %2283 = vmatprep.subr.mxu0 %v2282
        %v2284 = vand.u32 %v275, 4294901760
        %v2285 = vsub.f32 %v275, %v2284
        %2286 = vmatpush1.msra.mxu0 %v2285
        %v2287 = vand.u32 %v278, 4294901760
        %v2288 = vsub.f32 %v278, %v2287
        %2289 = vmatprep.subr.mxu0 %v2288
        %v2290 = vand.u32 %v277, 4294901760
        %v2291 = vsub.f32 %v277, %v2290
        %2292 = vmatpush1.msra.mxu0 %v2291
        %v2293 = vand.u32 %v280, 4294901760
        %v2294 = vsub.f32 %v280, %v2293
        %2295 = vmatprep.subr.mxu0 %v2294
        %v2296 = vand.u32 %v279, 4294901760
        %v2297 = vsub.f32 %v279, %v2296
        %2298 = vmatpush1.msra.mxu0 %v2297
        %v2299 = vand.u32 %v282, 4294901760
        %v2300 = vsub.f32 %v282, %v2299
        %2301 = vmatprep.subr.mxu0 %v2300
        %v2302 = vand.u32 %v281, 4294901760
        %v2303 = vsub.f32 %v281, %v2302
        %2304 = vmatpush1.msra.mxu0 %v2303
        %v2305 = vand.u32 %v284, 4294901760
        %v2306 = vsub.f32 %v284, %v2305
        %2307 = vmatprep.subr.mxu0 %v2306
        %v2308 = vand.u32 %v283, 4294901760
        %v2309 = vsub.f32 %v283, %v2308
        %2310 = vmatpush1.msra.mxu0 %v2309
        %v2311 = vand.u32 %v286, 4294901760
        %v2312 = vsub.f32 %v286, %v2311
        %2313 = vmatprep.subr.mxu0 %v2312
        %v2314 = vand.u32 %v285, 4294901760
        %v2315 = vsub.f32 %v285, %v2314
        %2316 = vmatpush1.msra.mxu0 %v2315
        %v2317 = vand.u32 %v288, 4294901760
        %v2318 = vsub.f32 %v288, %v2317
        %2319 = vmatprep.subr.mxu0 %v2318
        %v2320 = vand.u32 %v287, 4294901760
        %v2321 = vsub.f32 %v287, %v2320
        %2322 = vmatpush1.msra.mxu0 %v2321
        %v2323 = vand.u32 %v290, 4294901760
        %v2324 = vsub.f32 %v290, %v2323
        %2325 = vmatprep.subr.mxu0 %v2324
        %v2326 = vand.u32 %v289, 4294901760
        %v2327 = vsub.f32 %v289, %v2326
        %2328 = vmatpush1.msra.mxu0 %v2327
        %v2329 = vand.u32 %v292, 4294901760
        %v2330 = vsub.f32 %v292, %v2329
        %2331 = vmatprep.subr.mxu0 %v2330
        %v2332 = vand.u32 %v291, 4294901760
        %v2333 = vsub.f32 %v291, %v2332
        %2334 = vmatpush1.msra.mxu0 %v2333
        %v2335 = vand.u32 %v294, 4294901760
        %v2336 = vsub.f32 %v294, %v2335
        %2337 = vmatprep.subr.mxu0 %v2336
        %v2338 = vand.u32 %v293, 4294901760
        %v2339 = vsub.f32 %v293, %v2338
        %2340 = vmatpush1.msra.mxu0 %v2339
        %v2341 = vand.u32 %v296, 4294901760
        %v2342 = vsub.f32 %v296, %v2341
        %2343 = vmatprep.subr.mxu0 %v2342
        %v2344 = vand.u32 %v295, 4294901760
        %v2345 = vsub.f32 %v295, %v2344
        %2346 = vmatpush1.msra.mxu0 %v2345
        %v2347 = vand.u32 %v298, 4294901760
        %v2348 = vsub.f32 %v298, %v2347
        %2349 = vmatprep.subr.mxu0 %v2348
        %v2350 = vand.u32 %v297, 4294901760
        %v2351 = vsub.f32 %v297, %v2350
        %2352 = vmatpush1.msra.mxu0 %v2351
        %v2353 = vand.u32 %v300, 4294901760
        %v2354 = vsub.f32 %v300, %v2353
        %2355 = vmatprep.subr.mxu0 %v2354
        %v2356 = vand.u32 %v299, 4294901760
        %v2357 = vsub.f32 %v299, %v2356
        %2358 = vmatpush1.msra.mxu0 %v2357
        %v2359 = vand.u32 %v302, 4294901760
        %v2360 = vsub.f32 %v302, %v2359
        %2361 = vmatprep.subr.mxu0 %v2360
        %v2362 = vand.u32 %v301, 4294901760
        %v2363 = vsub.f32 %v301, %v2362
        %2364 = vmatpush1.msra.mxu0 %v2363
        %v2365 = vand.u32 %v304, 4294901760
        %v2366 = vsub.f32 %v304, %v2365
        %2367 = vmatprep.subr.mxu0 %v2366
        %v2368 = vand.u32 %v303, 4294901760
        %v2369 = vsub.f32 %v303, %v2368
        %2370 = vmatpush1.msra.mxu0 %v2369
        %v2371 = vand.u32 %v306, 4294901760
        %v2372 = vsub.f32 %v306, %v2371
        %2373 = vmatprep.subr.mxu0 %v2372
        %v2374 = vand.u32 %v305, 4294901760
        %v2375 = vsub.f32 %v305, %v2374
        %2376 = vmatpush1.msra.mxu0 %v2375
        %v2377 = vand.u32 %v308, 4294901760
        %v2378 = vsub.f32 %v308, %v2377
        %2379 = vmatprep.subr.mxu0 %v2378
        %v2380 = vand.u32 %v307, 4294901760
        %v2381 = vsub.f32 %v307, %v2380
        %2382 = vmatpush1.msra.mxu0 %v2381
        %v2383 = vand.u32 %v310, 4294901760
        %v2384 = vsub.f32 %v310, %v2383
        %2385 = vmatprep.subr.mxu0 %v2384
        %v2386 = vand.u32 %v309, 4294901760
        %v2387 = vsub.f32 %v309, %v2386
        %2388 = vmatpush1.msra.mxu0 %v2387
        %v2389 = vand.u32 %v232, 4294901760
        %v2390 = vsub.f32 %v232, %v2389
        %2391 = vmatprep.mubr.f32.mxu0 %v2390
        %v2392 = vand.u32 %v225, 4294901760
        %v2393 = vsub.f32 %v225, %v2392
        %2394 = vmatmul.mubr.f32.gmra.mrb[0].mxu0 %v2393
        %v2395 = vpop.f32.mrb[0].mxu0
        %v2396 = vadd.f32 %v2193, %v2395
        %v2397 = vpop.f32.mrb[0].mxu0
        %v2398 = vadd.f32 %v2195, %v2397
        %2399 = vdwg.mxu0
        %v2400 = vand.u32 %v248, 4294901760
        %2401 = vmatprep.subr.mxu0 %v2400
        %v2402 = vand.u32 %v247, 4294901760
        %2403 = vmatpush1.msra.mxu0 %v2402
        %v2404 = vand.u32 %v250, 4294901760
        %2405 = vmatprep.subr.mxu0 %v2404
        %v2406 = vand.u32 %v249, 4294901760
        %2407 = vmatpush1.msra.mxu0 %v2406
        %v2408 = vand.u32 %v252, 4294901760
        %2409 = vmatprep.subr.mxu0 %v2408
        %v2410 = vand.u32 %v251, 4294901760
        %2411 = vmatpush1.msra.mxu0 %v2410
        %v2412 = vand.u32 %v254, 4294901760
        %2413 = vmatprep.subr.mxu0 %v2412
        %v2414 = vand.u32 %v253, 4294901760
        %2415 = vmatpush1.msra.mxu0 %v2414
        %v2416 = vand.u32 %v256, 4294901760
        %2417 = vmatprep.subr.mxu0 %v2416
        %v2418 = vand.u32 %v255, 4294901760
        %2419 = vmatpush1.msra.mxu0 %v2418
        %v2420 = vand.u32 %v258, 4294901760
        %2421 = vmatprep.subr.mxu0 %v2420
        %v2422 = vand.u32 %v257, 4294901760
        %2423 = vmatpush1.msra.mxu0 %v2422
        %v2424 = vand.u32 %v260, 4294901760
        %2425 = vmatprep.subr.mxu0 %v2424
        %v2426 = vand.u32 %v259, 4294901760
        %2427 = vmatpush1.msra.mxu0 %v2426
        %v2428 = vand.u32 %v262, 4294901760
        %2429 = vmatprep.subr.mxu0 %v2428
        %v2430 = vand.u32 %v261, 4294901760
        %2431 = vmatpush1.msra.mxu0 %v2430
        %v2432 = vand.u32 %v264, 4294901760
        %2433 = vmatprep.subr.mxu0 %v2432
        %v2434 = vand.u32 %v263, 4294901760
        %2435 = vmatpush1.msra.mxu0 %v2434
        %v2436 = vand.u32 %v266, 4294901760
        %2437 = vmatprep.subr.mxu0 %v2436
        %v2438 = vand.u32 %v265, 4294901760
        %2439 = vmatpush1.msra.mxu0 %v2438
        %v2440 = vand.u32 %v268, 4294901760
        %2441 = vmatprep.subr.mxu0 %v2440
        %v2442 = vand.u32 %v267, 4294901760
        %2443 = vmatpush1.msra.mxu0 %v2442
        %v2444 = vand.u32 %v270, 4294901760
        %2445 = vmatprep.subr.mxu0 %v2444
        %v2446 = vand.u32 %v269, 4294901760
        %2447 = vmatpush1.msra.mxu0 %v2446
        %v2448 = vand.u32 %v272, 4294901760
        %2449 = vmatprep.subr.mxu0 %v2448
        %v2450 = vand.u32 %v271, 4294901760
        %2451 = vmatpush1.msra.mxu0 %v2450
        %v2452 = vand.u32 %v274, 4294901760
        %2453 = vmatprep.subr.mxu0 %v2452
        %v2454 = vand.u32 %v273, 4294901760
        %2455 = vmatpush1.msra.mxu0 %v2454
        %v2456 = vand.u32 %v276, 4294901760
        %2457 = vmatprep.subr.mxu0 %v2456
        %v2458 = vand.u32 %v275, 4294901760
        %2459 = vmatpush1.msra.mxu0 %v2458
        %v2460 = vand.u32 %v278, 4294901760
        %2461 = vmatprep.subr.mxu0 %v2460
        %v2462 = vand.u32 %v277, 4294901760
        %2463 = vmatpush1.msra.mxu0 %v2462
        %v2464 = vand.u32 %v280, 4294901760
        %2465 = vmatprep.subr.mxu0 %v2464
        %v2466 = vand.u32 %v279, 4294901760
        %2467 = vmatpush1.msra.mxu0 %v2466
        %v2468 = vand.u32 %v282, 4294901760
        %2469 = vmatprep.subr.mxu0 %v2468
        %v2470 = vand.u32 %v281, 4294901760
        %2471 = vmatpush1.msra.mxu0 %v2470
        %v2472 = vand.u32 %v284, 4294901760
        %2473 = vmatprep.subr.mxu0 %v2472
        %v2474 = vand.u32 %v283, 4294901760
        %2475 = vmatpush1.msra.mxu0 %v2474
        %v2476 = vand.u32 %v286, 4294901760
        %2477 = vmatprep.subr.mxu0 %v2476
        %v2478 = vand.u32 %v285, 4294901760
        %2479 = vmatpush1.msra.mxu0 %v2478
        %v2480 = vand.u32 %v288, 4294901760
        %2481 = vmatprep.subr.mxu0 %v2480
        %v2482 = vand.u32 %v287, 4294901760
        %2483 = vmatpush1.msra.mxu0 %v2482
        %v2484 = vand.u32 %v290, 4294901760
        %2485 = vmatprep.subr.mxu0 %v2484
        %v2486 = vand.u32 %v289, 4294901760
        %2487 = vmatpush1.msra.mxu0 %v2486
        %v2488 = vand.u32 %v292, 4294901760
        %2489 = vmatprep.subr.mxu0 %v2488
        %v2490 = vand.u32 %v291, 4294901760
        %2491 = vmatpush1.msra.mxu0 %v2490
        %v2492 = vand.u32 %v294, 4294901760
        %2493 = vmatprep.subr.mxu0 %v2492
        %v2494 = vand.u32 %v293, 4294901760
        %2495 = vmatpush1.msra.mxu0 %v2494
        %v2496 = vand.u32 %v296, 4294901760
        %2497 = vmatprep.subr.mxu0 %v2496
        %v2498 = vand.u32 %v295, 4294901760
        %2499 = vmatpush1.msra.mxu0 %v2498
        %v2500 = vand.u32 %v298, 4294901760
        %2501 = vmatprep.subr.mxu0 %v2500
        %v2502 = vand.u32 %v297, 4294901760
        %2503 = vmatpush1.msra.mxu0 %v2502
        %v2504 = vand.u32 %v300, 4294901760
        %2505 = vmatprep.subr.mxu0 %v2504
        %v2506 = vand.u32 %v299, 4294901760
        %2507 = vmatpush1.msra.mxu0 %v2506
        %v2508 = vand.u32 %v302, 4294901760
        %2509 = vmatprep.subr.mxu0 %v2508
        %v2510 = vand.u32 %v301, 4294901760
        %2511 = vmatpush1.msra.mxu0 %v2510
        %v2512 = vand.u32 %v304, 4294901760
        %2513 = vmatprep.subr.mxu0 %v2512
        %v2514 = vand.u32 %v303, 4294901760
        %2515 = vmatpush1.msra.mxu0 %v2514
        %v2516 = vand.u32 %v306, 4294901760
        %2517 = vmatprep.subr.mxu0 %v2516
        %v2518 = vand.u32 %v305, 4294901760
        %2519 = vmatpush1.msra.mxu0 %v2518
        %v2520 = vand.u32 %v308, 4294901760
        %2521 = vmatprep.subr.mxu0 %v2520
        %v2522 = vand.u32 %v307, 4294901760
        %2523 = vmatpush1.msra.mxu0 %v2522
        %v2524 = vand.u32 %v310, 4294901760
        %2525 = vmatprep.subr.mxu0 %v2524
        %v2526 = vand.u32 %v309, 4294901760
        %2527 = vmatpush1.msra.mxu0 %v2526
        %v2528 = vand.u32 %v232, 4294901760
        %v2529 = vsub.f32 %v232, %v2528
        %v2530 = vand.u32 %v2529, 4294901760
        %2531 = vmatprep.mubr.f32.mxu0 %v2530
        %v2532 = vand.u32 %v225, 4294901760
        %v2533 = vsub.f32 %v225, %v2532
        %v2534 = vand.u32 %v2533, 4294901760
        %2535 = vmatmul.mubr.f32.gmra.mrb[0].mxu0 %v2534
        %v2536 = vpop.f32.mrb[0].mxu0
        %v2537 = vadd.f32 %v2396, %v2536
        %v2538 = vpop.f32.mrb[0].mxu0
        %v2539 = vadd.f32 %v2398, %v2538
        %2540 = vdwg.mxu0
        %v2541 = vand.u32 %v248, 4294901760
        %v2542 = vsub.f32 %v248, %v2541
        %v2543 = vand.u32 %v2542, 4294901760
        %2544 = vmatprep.subr.mxu0 %v2543
        %v2545 = vand.u32 %v247, 4294901760
        %v2546 = vsub.f32 %v247, %v2545
        %v2547 = vand.u32 %v2546, 4294901760
        %2548 = vmatpush1.msra.mxu0 %v2547
        %v2549 = vand.u32 %v250, 4294901760
        %v2550 = vsub.f32 %v250, %v2549
        %v2551 = vand.u32 %v2550, 4294901760
        %2552 = vmatprep.subr.mxu0 %v2551
        %v2553 = vand.u32 %v249, 4294901760
        %v2554 = vsub.f32 %v249, %v2553
        %v2555 = vand.u32 %v2554, 4294901760
        %2556 = vmatpush1.msra.mxu0 %v2555
        %v2557 = vand.u32 %v252, 4294901760
        %v2558 = vsub.f32 %v252, %v2557
        %v2559 = vand.u32 %v2558, 4294901760
        %2560 = vmatprep.subr.mxu0 %v2559
        %v2561 = vand.u32 %v251, 4294901760
        %v2562 = vsub.f32 %v251, %v2561
        %v2563 = vand.u32 %v2562, 4294901760
        %2564 = vmatpush1.msra.mxu0 %v2563
        %v2565 = vand.u32 %v254, 4294901760
        %v2566 = vsub.f32 %v254, %v2565
        %v2567 = vand.u32 %v2566, 4294901760
        %2568 = vmatprep.subr.mxu0 %v2567
        %v2569 = vand.u32 %v253, 4294901760
        %v2570 = vsub.f32 %v253, %v2569
        %v2571 = vand.u32 %v2570, 4294901760
        %2572 = vmatpush1.msra.mxu0 %v2571
        %v2573 = vand.u32 %v256, 4294901760
        %v2574 = vsub.f32 %v256, %v2573
        %v2575 = vand.u32 %v2574, 4294901760
        %2576 = vmatprep.subr.mxu0 %v2575
        %v2577 = vand.u32 %v255, 4294901760
        %v2578 = vsub.f32 %v255, %v2577
        %v2579 = vand.u32 %v2578, 4294901760
        %2580 = vmatpush1.msra.mxu0 %v2579
        %v2581 = vand.u32 %v258, 4294901760
        %v2582 = vsub.f32 %v258, %v2581
        %v2583 = vand.u32 %v2582, 4294901760
        %2584 = vmatprep.subr.mxu0 %v2583
        %v2585 = vand.u32 %v257, 4294901760
        %v2586 = vsub.f32 %v257, %v2585
        %v2587 = vand.u32 %v2586, 4294901760
        %2588 = vmatpush1.msra.mxu0 %v2587
        %v2589 = vand.u32 %v260, 4294901760
        %v2590 = vsub.f32 %v260, %v2589
        %v2591 = vand.u32 %v2590, 4294901760
        %2592 = vmatprep.subr.mxu0 %v2591
        %v2593 = vand.u32 %v259, 4294901760
        %v2594 = vsub.f32 %v259, %v2593
        %v2595 = vand.u32 %v2594, 4294901760
        %2596 = vmatpush1.msra.mxu0 %v2595
        %v2597 = vand.u32 %v262, 4294901760
        %v2598 = vsub.f32 %v262, %v2597
        %v2599 = vand.u32 %v2598, 4294901760
        %2600 = vmatprep.subr.mxu0 %v2599
        %v2601 = vand.u32 %v261, 4294901760
        %v2602 = vsub.f32 %v261, %v2601
        %v2603 = vand.u32 %v2602, 4294901760
        %2604 = vmatpush1.msra.mxu0 %v2603
        %v2605 = vand.u32 %v264, 4294901760
        %v2606 = vsub.f32 %v264, %v2605
        %v2607 = vand.u32 %v2606, 4294901760
        %2608 = vmatprep.subr.mxu0 %v2607
        %v2609 = vand.u32 %v263, 4294901760
        %v2610 = vsub.f32 %v263, %v2609
        %v2611 = vand.u32 %v2610, 4294901760
        %2612 = vmatpush1.msra.mxu0 %v2611
        %v2613 = vand.u32 %v266, 4294901760
        %v2614 = vsub.f32 %v266, %v2613
        %v2615 = vand.u32 %v2614, 4294901760
        %2616 = vmatprep.subr.mxu0 %v2615
        %v2617 = vand.u32 %v265, 4294901760
        %v2618 = vsub.f32 %v265, %v2617
        %v2619 = vand.u32 %v2618, 4294901760
        %2620 = vmatpush1.msra.mxu0 %v2619
        %v2621 = vand.u32 %v268, 4294901760
        %v2622 = vsub.f32 %v268, %v2621
        %v2623 = vand.u32 %v2622, 4294901760
        %2624 = vmatprep.subr.mxu0 %v2623
        %v2625 = vand.u32 %v267, 4294901760
        %v2626 = vsub.f32 %v267, %v2625
        %v2627 = vand.u32 %v2626, 4294901760
        %2628 = vmatpush1.msra.mxu0 %v2627
        %v2629 = vand.u32 %v270, 4294901760
        %v2630 = vsub.f32 %v270, %v2629
        %v2631 = vand.u32 %v2630, 4294901760
        %2632 = vmatprep.subr.mxu0 %v2631
        %v2633 = vand.u32 %v269, 4294901760
        %v2634 = vsub.f32 %v269, %v2633
        %v2635 = vand.u32 %v2634, 4294901760
        %2636 = vmatpush1.msra.mxu0 %v2635
        %v2637 = vand.u32 %v272, 4294901760
        %v2638 = vsub.f32 %v272, %v2637
        %v2639 = vand.u32 %v2638, 4294901760
        %2640 = vmatprep.subr.mxu0 %v2639
        %v2641 = vand.u32 %v271, 4294901760
        %v2642 = vsub.f32 %v271, %v2641
        %v2643 = vand.u32 %v2642, 4294901760
        %2644 = vmatpush1.msra.mxu0 %v2643
        %v2645 = vand.u32 %v274, 4294901760
        %v2646 = vsub.f32 %v274, %v2645
        %v2647 = vand.u32 %v2646, 4294901760
        %2648 = vmatprep.subr.mxu0 %v2647
        %v2649 = vand.u32 %v273, 4294901760
        %v2650 = vsub.f32 %v273, %v2649
        %v2651 = vand.u32 %v2650, 4294901760
        %2652 = vmatpush1.msra.mxu0 %v2651
        %v2653 = vand.u32 %v276, 4294901760
        %v2654 = vsub.f32 %v276, %v2653
        %v2655 = vand.u32 %v2654, 4294901760
        %2656 = vmatprep.subr.mxu0 %v2655
        %v2657 = vand.u32 %v275, 4294901760
        %v2658 = vsub.f32 %v275, %v2657
        %v2659 = vand.u32 %v2658, 4294901760
        %2660 = vmatpush1.msra.mxu0 %v2659
        %v2661 = vand.u32 %v278, 4294901760
        %v2662 = vsub.f32 %v278, %v2661
        %v2663 = vand.u32 %v2662, 4294901760
        %2664 = vmatprep.subr.mxu0 %v2663
        %v2665 = vand.u32 %v277, 4294901760
        %v2666 = vsub.f32 %v277, %v2665
        %v2667 = vand.u32 %v2666, 4294901760
        %2668 = vmatpush1.msra.mxu0 %v2667
        %v2669 = vand.u32 %v280, 4294901760
        %v2670 = vsub.f32 %v280, %v2669
        %v2671 = vand.u32 %v2670, 4294901760
        %2672 = vmatprep.subr.mxu0 %v2671
        %v2673 = vand.u32 %v279, 4294901760
        %v2674 = vsub.f32 %v279, %v2673
        %v2675 = vand.u32 %v2674, 4294901760
        %2676 = vmatpush1.msra.mxu0 %v2675
        %v2677 = vand.u32 %v282, 4294901760
        %v2678 = vsub.f32 %v282, %v2677
        %v2679 = vand.u32 %v2678, 4294901760
        %2680 = vmatprep.subr.mxu0 %v2679
        %v2681 = vand.u32 %v281, 4294901760
        %v2682 = vsub.f32 %v281, %v2681
        %v2683 = vand.u32 %v2682, 4294901760
        %2684 = vmatpush1.msra.mxu0 %v2683
        %v2685 = vand.u32 %v284, 4294901760
        %v2686 = vsub.f32 %v284, %v2685
        %v2687 = vand.u32 %v2686, 4294901760
        %2688 = vmatprep.subr.mxu0 %v2687
        %v2689 = vand.u32 %v283, 4294901760
        %v2690 = vsub.f32 %v283, %v2689
        %v2691 = vand.u32 %v2690, 4294901760
        %2692 = vmatpush1.msra.mxu0 %v2691
        %v2693 = vand.u32 %v286, 4294901760
        %v2694 = vsub.f32 %v286, %v2693
        %v2695 = vand.u32 %v2694, 4294901760
        %2696 = vmatprep.subr.mxu0 %v2695
        %v2697 = vand.u32 %v285, 4294901760
        %v2698 = vsub.f32 %v285, %v2697
        %v2699 = vand.u32 %v2698, 4294901760
        %2700 = vmatpush1.msra.mxu0 %v2699
        %v2701 = vand.u32 %v288, 4294901760
        %v2702 = vsub.f32 %v288, %v2701
        %v2703 = vand.u32 %v2702, 4294901760
        %2704 = vmatprep.subr.mxu0 %v2703
        %v2705 = vand.u32 %v287, 4294901760
        %v2706 = vsub.f32 %v287, %v2705
        %v2707 = vand.u32 %v2706, 4294901760
        %2708 = vmatpush1.msra.mxu0 %v2707
        %v2709 = vand.u32 %v290, 4294901760
        %v2710 = vsub.f32 %v290, %v2709
        %v2711 = vand.u32 %v2710, 4294901760
        %2712 = vmatprep.subr.mxu0 %v2711
        %v2713 = vand.u32 %v289, 4294901760
        %v2714 = vsub.f32 %v289, %v2713
        %v2715 = vand.u32 %v2714, 4294901760
        %2716 = vmatpush1.msra.mxu0 %v2715
        %v2717 = vand.u32 %v292, 4294901760
        %v2718 = vsub.f32 %v292, %v2717
        %v2719 = vand.u32 %v2718, 4294901760
        %2720 = vmatprep.subr.mxu0 %v2719
        %v2721 = vand.u32 %v291, 4294901760
        %v2722 = vsub.f32 %v291, %v2721
        %v2723 = vand.u32 %v2722, 4294901760
        %2724 = vmatpush1.msra.mxu0 %v2723
        %v2725 = vand.u32 %v294, 4294901760
        %v2726 = vsub.f32 %v294, %v2725
        %v2727 = vand.u32 %v2726, 4294901760
        %2728 = vmatprep.subr.mxu0 %v2727
        %v2729 = vand.u32 %v293, 4294901760
        %v2730 = vsub.f32 %v293, %v2729
        %v2731 = vand.u32 %v2730, 4294901760
        %2732 = vmatpush1.msra.mxu0 %v2731
        %v2733 = vand.u32 %v296, 4294901760
        %v2734 = vsub.f32 %v296, %v2733
        %v2735 = vand.u32 %v2734, 4294901760
        %2736 = vmatprep.subr.mxu0 %v2735
        %v2737 = vand.u32 %v295, 4294901760
        %v2738 = vsub.f32 %v295, %v2737
        %v2739 = vand.u32 %v2738, 4294901760
        %2740 = vmatpush1.msra.mxu0 %v2739
        %v2741 = vand.u32 %v298, 4294901760
        %v2742 = vsub.f32 %v298, %v2741
        %v2743 = vand.u32 %v2742, 4294901760
        %2744 = vmatprep.subr.mxu0 %v2743
        %v2745 = vand.u32 %v297, 4294901760
        %v2746 = vsub.f32 %v297, %v2745
        %v2747 = vand.u32 %v2746, 4294901760
        %2748 = vmatpush1.msra.mxu0 %v2747
        %v2749 = vand.u32 %v300, 4294901760
        %v2750 = vsub.f32 %v300, %v2749
        %v2751 = vand.u32 %v2750, 4294901760
        %2752 = vmatprep.subr.mxu0 %v2751
        %v2753 = vand.u32 %v299, 4294901760
        %v2754 = vsub.f32 %v299, %v2753
        %v2755 = vand.u32 %v2754, 4294901760
        %2756 = vmatpush1.msra.mxu0 %v2755
        %v2757 = vand.u32 %v302, 4294901760
        %v2758 = vsub.f32 %v302, %v2757
        %v2759 = vand.u32 %v2758, 4294901760
        %2760 = vmatprep.subr.mxu0 %v2759
        %v2761 = vand.u32 %v301, 4294901760
        %v2762 = vsub.f32 %v301, %v2761
        %v2763 = vand.u32 %v2762, 4294901760
        %2764 = vmatpush1.msra.mxu0 %v2763
        %v2765 = vand.u32 %v304, 4294901760
        %v2766 = vsub.f32 %v304, %v2765
        %v2767 = vand.u32 %v2766, 4294901760
        %2768 = vmatprep.subr.mxu0 %v2767
        %v2769 = vand.u32 %v303, 4294901760
        %v2770 = vsub.f32 %v303, %v2769
        %v2771 = vand.u32 %v2770, 4294901760
        %2772 = vmatpush1.msra.mxu0 %v2771
        %v2773 = vand.u32 %v306, 4294901760
        %v2774 = vsub.f32 %v306, %v2773
        %v2775 = vand.u32 %v2774, 4294901760
        %2776 = vmatprep.subr.mxu0 %v2775
        %v2777 = vand.u32 %v305, 4294901760
        %v2778 = vsub.f32 %v305, %v2777
        %v2779 = vand.u32 %v2778, 4294901760
        %2780 = vmatpush1.msra.mxu0 %v2779
        %v2781 = vand.u32 %v308, 4294901760
        %v2782 = vsub.f32 %v308, %v2781
        %v2783 = vand.u32 %v2782, 4294901760
        %2784 = vmatprep.subr.mxu0 %v2783
        %v2785 = vand.u32 %v307, 4294901760
        %v2786 = vsub.f32 %v307, %v2785
        %v2787 = vand.u32 %v2786, 4294901760
        %2788 = vmatpush1.msra.mxu0 %v2787
        %v2789 = vand.u32 %v310, 4294901760
        %v2790 = vsub.f32 %v310, %v2789
        %v2791 = vand.u32 %v2790, 4294901760
        %2792 = vmatprep.subr.mxu0 %v2791
        %v2793 = vand.u32 %v309, 4294901760
        %v2794 = vsub.f32 %v309, %v2793
        %v2795 = vand.u32 %v2794, 4294901760
        %2796 = vmatpush1.msra.mxu0 %v2795
        %v2797 = vand.u32 %v232, 4294901760
        %2798 = vmatprep.mubr.f32.mxu0 %v2797
        %v2799 = vand.u32 %v225, 4294901760
        %2800 = vmatmul.mubr.f32.gmra.mrb[0].mxu0 %v2799
        %v2801 = vpop.f32.mrb[0].mxu0
        %v2802 = vadd.f32 %v2537, %v2801
        %v2803 = vpop.f32.mrb[0].mxu0
        %v2804 = vadd.f32 %v2539, %v2803
        %2805 = vdwg.mxu0
        %v2806 = vand.u32 %v248, 4294901760
        %2807 = vmatprep.subr.mxu0 %v2806
        %v2808 = vand.u32 %v247, 4294901760
        %2809 = vmatpush1.msra.mxu0 %v2808
        %v2810 = vand.u32 %v250, 4294901760
        %2811 = vmatprep.subr.mxu0 %v2810
        %v2812 = vand.u32 %v249, 4294901760
        %2813 = vmatpush1.msra.mxu0 %v2812
        %v2814 = vand.u32 %v252, 4294901760
        %2815 = vmatprep.subr.mxu0 %v2814
        %v2816 = vand.u32 %v251, 4294901760
        %2817 = vmatpush1.msra.mxu0 %v2816
        %v2818 = vand.u32 %v254, 4294901760
        %2819 = vmatprep.subr.mxu0 %v2818
        %v2820 = vand.u32 %v253, 4294901760
        %2821 = vmatpush1.msra.mxu0 %v2820
        %v2822 = vand.u32 %v256, 4294901760
        %2823 = vmatprep.subr.mxu0 %v2822
        %v2824 = vand.u32 %v255, 4294901760
        %2825 = vmatpush1.msra.mxu0 %v2824
        %v2826 = vand.u32 %v258, 4294901760
        %2827 = vmatprep.subr.mxu0 %v2826
        %v2828 = vand.u32 %v257, 4294901760
        %2829 = vmatpush1.msra.mxu0 %v2828
        %v2830 = vand.u32 %v260, 4294901760
        %2831 = vmatprep.subr.mxu0 %v2830
        %v2832 = vand.u32 %v259, 4294901760
        %2833 = vmatpush1.msra.mxu0 %v2832
        %v2834 = vand.u32 %v262, 4294901760
        %2835 = vmatprep.subr.mxu0 %v2834
        %v2836 = vand.u32 %v261, 4294901760
        %2837 = vmatpush1.msra.mxu0 %v2836
        %v2838 = vand.u32 %v264, 4294901760
        %2839 = vmatprep.subr.mxu0 %v2838
        %v2840 = vand.u32 %v263, 4294901760
        %2841 = vmatpush1.msra.mxu0 %v2840
        %v2842 = vand.u32 %v266, 4294901760
        %2843 = vmatprep.subr.mxu0 %v2842
        %v2844 = vand.u32 %v265, 4294901760
        %2845 = vmatpush1.msra.mxu0 %v2844
        %v2846 = vand.u32 %v268, 4294901760
        %2847 = vmatprep.subr.mxu0 %v2846
        %v2848 = vand.u32 %v267, 4294901760
        %2849 = vmatpush1.msra.mxu0 %v2848
        %v2850 = vand.u32 %v270, 4294901760
        %2851 = vmatprep.subr.mxu0 %v2850
        %v2852 = vand.u32 %v269, 4294901760
        %2853 = vmatpush1.msra.mxu0 %v2852
        %v2854 = vand.u32 %v272, 4294901760
        %2855 = vmatprep.subr.mxu0 %v2854
        %v2856 = vand.u32 %v271, 4294901760
        %2857 = vmatpush1.msra.mxu0 %v2856
        %v2858 = vand.u32 %v274, 4294901760
        %2859 = vmatprep.subr.mxu0 %v2858
        %v2860 = vand.u32 %v273, 4294901760
        %2861 = vmatpush1.msra.mxu0 %v2860
        %v2862 = vand.u32 %v276, 4294901760
        %2863 = vmatprep.subr.mxu0 %v2862
        %v2864 = vand.u32 %v275, 4294901760
        %2865 = vmatpush1.msra.mxu0 %v2864
        %v2866 = vand.u32 %v278, 4294901760
        %2867 = vmatprep.subr.mxu0 %v2866
        %v2868 = vand.u32 %v277, 4294901760
        %2869 = vmatpush1.msra.mxu0 %v2868
        %v2870 = vand.u32 %v280, 4294901760
        %2871 = vmatprep.subr.mxu0 %v2870
        %v2872 = vand.u32 %v279, 4294901760
        %2873 = vmatpush1.msra.mxu0 %v2872
        %v2874 = vand.u32 %v282, 4294901760
        %2875 = vmatprep.subr.mxu0 %v2874
        %v2876 = vand.u32 %v281, 4294901760
        %2877 = vmatpush1.msra.mxu0 %v2876
        %v2878 = vand.u32 %v284, 4294901760
        %2879 = vmatprep.subr.mxu0 %v2878
        %v2880 = vand.u32 %v283, 4294901760
        %2881 = vmatpush1.msra.mxu0 %v2880
        %v2882 = vand.u32 %v286, 4294901760
        %2883 = vmatprep.subr.mxu0 %v2882
        %v2884 = vand.u32 %v285, 4294901760
        %2885 = vmatpush1.msra.mxu0 %v2884
        %v2886 = vand.u32 %v288, 4294901760
        %2887 = vmatprep.subr.mxu0 %v2886
        %v2888 = vand.u32 %v287, 4294901760
        %2889 = vmatpush1.msra.mxu0 %v2888
        %v2890 = vand.u32 %v290, 4294901760
        %2891 = vmatprep.subr.mxu0 %v2890
        %v2892 = vand.u32 %v289, 4294901760
        %2893 = vmatpush1.msra.mxu0 %v2892
        %v2894 = vand.u32 %v292, 4294901760
        %2895 = vmatprep.subr.mxu0 %v2894
        %v2896 = vand.u32 %v291, 4294901760
        %2897 = vmatpush1.msra.mxu0 %v2896
        %v2898 = vand.u32 %v294, 4294901760
        %2899 = vmatprep.subr.mxu0 %v2898
        %v2900 = vand.u32 %v293, 4294901760
        %2901 = vmatpush1.msra.mxu0 %v2900
        %v2902 = vand.u32 %v296, 4294901760
        %2903 = vmatprep.subr.mxu0 %v2902
        %v2904 = vand.u32 %v295, 4294901760
        %2905 = vmatpush1.msra.mxu0 %v2904
        %v2906 = vand.u32 %v298, 4294901760
        %2907 = vmatprep.subr.mxu0 %v2906
        %v2908 = vand.u32 %v297, 4294901760
        %2909 = vmatpush1.msra.mxu0 %v2908
        %v2910 = vand.u32 %v300, 4294901760
        %2911 = vmatprep.subr.mxu0 %v2910
        %v2912 = vand.u32 %v299, 4294901760
        %2913 = vmatpush1.msra.mxu0 %v2912
        %v2914 = vand.u32 %v302, 4294901760
        %2915 = vmatprep.subr.mxu0 %v2914
        %v2916 = vand.u32 %v301, 4294901760
        %2917 = vmatpush1.msra.mxu0 %v2916
        %v2918 = vand.u32 %v304, 4294901760
        %2919 = vmatprep.subr.mxu0 %v2918
        %v2920 = vand.u32 %v303, 4294901760
        %2921 = vmatpush1.msra.mxu0 %v2920
        %v2922 = vand.u32 %v306, 4294901760
        %2923 = vmatprep.subr.mxu0 %v2922
        %v2924 = vand.u32 %v305, 4294901760
        %2925 = vmatpush1.msra.mxu0 %v2924
        %v2926 = vand.u32 %v308, 4294901760
        %2927 = vmatprep.subr.mxu0 %v2926
        %v2928 = vand.u32 %v307, 4294901760
        %2929 = vmatpush1.msra.mxu0 %v2928
        %v2930 = vand.u32 %v310, 4294901760
        %2931 = vmatprep.subr.mxu0 %v2930
        %v2932 = vand.u32 %v309, 4294901760
        %2933 = vmatpush1.msra.mxu0 %v2932
        %v2934 = vand.u32 %v232, 4294901760
        %2935 = vmatprep.mubr.f32.mxu0 %v2934
        %v2936 = vand.u32 %v225, 4294901760
        %2937 = vmatmul.mubr.f32.gmra.mrb[0].mxu0 %v2936
        %v2938 = vpop.f32.mrb[0].mxu0
        %v2939 = vadd.f32 %v2802, %v2938
        %v2940 = vpop.f32.mrb[0].mxu0
        %v2941 = vadd.f32 %v2804, %v2940
        %2942 = vdwg.mxu0
        %v2943 = vsub.f32 0.0, %v2939
        %v2944 = vsub.f32 0.0, %v2941
        %v2945 = vmul.f32 %v2943, 1.442695
        %v2946 = vpow.pop %v2945
        %v2947 = vmul.f32 %v2944, 1.442695
        %v2948 = vpow.pop %v2947
        %v2949 = vadd.f32 %v2946, 1.0
        %v2950 = vadd.f32 %v2948, 1.0
        %v2951 = vrcp.pop %v2949
        %v2952 = vmul.f32 1.0, %v2951
        %v2953 = vrcp.pop %v2950
        %v2954 = vmul.f32 1.0, %v2953
        %v2955 = vlaneseq
        %v2956 = vshrl.u32 %v2955, 7
        %v2957 = vsub.s32 0, %v2956
        %v2958 = vrot.slane %v2952, %v2957
        %v2959 = vlaneseq
        %v2960 = vshrl.u32 %v2959, 7
        %v2961 = vsub.s32 0, %v2960
        %v2962 = vrot.slane %v2954, %v2961
        %v2965 = vcombine.low %v2958, %v2962
        %v2967 = vmul.f32 %v214, %v2965
        %2968 = vst [vmem:[%s213] sm:$0xff] %v2967
        %s2969 = sand.u32 %s95, 1
        %s2970 = scalar_lea.sflag [#allocation4], %s2969
        %s2971 = sand.u32 %s95, 1
        %s2972 = smul.addr %s2971, 8
        %s2973 = scalar_lea.vmem [#allocation8], %s2972
        // Predicated region
        $region45: #{_spatial_attention_flat.1} parent=31 // pred_check
          %p2974 = pneg %p105
        $region46: #{_spatial_attention_flat.1} parent=31 // pred_check_branch
          %2976 = sbr.rel (%p2974) target = $region48
        $region47: #{_spatial_attention_flat.1} parent=31 // pred_region
          %s2978 = ssub.s32 128, 128
          %2979 = vsyncadd %s2970, %s2978
          %s2980 = smul.addr %s19, 2
          %s2981 = smul.addr %s2980, 64
          %s2982 = scalar_lea.hbm %s3, %s2981
          %s2984 = sshll.u32 %s2973, 4
          %s2985 = int_to_ptr.vmem [resolvable:$true] %s2984
          %2987 = dma.vmem_to_hbm [thread:$0]  %s2985, 128, %s2982, %s2970
        $region48: #{_spatial_attention_flat.1} parent=31 // pred_fallthru
          _
      $region32: #{_spatial_attention_flat.1} parent=5 // pred_fallthru
        _
      %p2988 = scmp.le.s32.totalorder 2, %s14
      // Predicated region
      $region49: #{_spatial_attention_flat.1} parent=5 // pred_check
        %p2989 = pneg %p2988
      $region50: #{_spatial_attention_flat.1} parent=5 // pred_check_branch
        %2991 = sbr.rel (%p2989) target = $region52
      $region51: #{_spatial_attention_flat.1} parent=5 // pred_region
        %s2992 = ssub.s32 %s14, 2
        // Predicated region
        $region53: #{_spatial_attention_flat.1} parent=51 // pred_check
          %p2993 = pneg %p111
        $region54: #{_spatial_attention_flat.1} parent=51 // pred_check_branch
          %2995 = sbr.rel (%p2993) target = $region56
        $region55: #{_spatial_attention_flat.1} parent=51 // pred_region
          %s2996 = sand.u32 %s96, 1
          %s2997 = scalar_lea.sflag [#allocation4], %s2996
          %s2998 = sand.u32 %s96, 1
          %s2999 = smul.addr %s2998, 8
          %s3000 = scalar_lea.vmem [#allocation8], %s2999
          %3001 = dma.done %s2997, 128
        $region56: #{_spatial_attention_flat.1} parent=51 // pred_fallthru
          _
      $region52: #{_spatial_attention_flat.1} parent=5 // pred_fallthru
        _
    $region6: #{_spatial_attention_flat.1} parent=1 // loop_footer
      %s18 = sadd.s32 1, %s14
    $region7: #{_spatial_attention_flat.1} parent=1 // loop_footer_branch
      %13 = sbr.rel target = $region3
    $region8: #{_spatial_attention_flat.1} parent=1 // loop_exit
      _
    %3002 = vsyncpa [#allocation3], 1
    %s3003 = scalar_lea.sflag [#allocation3], 1
    %3004 = vsyncpa %s3003, 1
    %3005 = vsyncpa [#allocation6], 1
    %3006 = vsyncpa [#allocation4], 1
    %s3007 = scalar_lea.sflag [#allocation4], 1
    %3008 = vsyncpa %s3007, 1

// kernel: _spatial_attention_flat.1
$region0: #{_spatial_attention_flat.1}
  #allocation0 [shape = 'u32[]', space=smem, size = 0x4, offset = 0x4, fixed_abs, tag = 'smem constant byte address 0x4 - core index']
  #allocation1 [shape = 'u32[144,128]{1,0:T(1,128)}', space=vmem, size = 0x12000, scoped, tag = 'internal scratch']
  %s0 = inlined_call_operand.hbm [shape: f32[256,256], index: 0, kind: input, shape index: {}]
  %s1 = inlined_call_operand.hbm [shape: f32[256,256], index: 1, kind: input, shape index: {}]
  %s2 = inlined_call_operand.hbm [shape: f32[2,4,256], index: 2, kind: input, shape index: {}]
  %s3 = inlined_call_operand.hbm [shape: f32[2,4,256], index: 3, kind: output, shape index: {}]
  %s4 = sld [smem:[#allocation0]]
  $region57: #{_spatial_attention_flat.1} parent=0
    _
  %s6 = ssub.s32 1, %s4
  %s7 = scalar_select 0, %s6, %s4
  $region1: #{_spatial_attention_flat.1} parent=0
    #allocation2 [shape = 'u8[262144]{0}', space=vmem, size = 0x40000, scoped, tag = 'input window, operand 0, single buffered']
    #allocation3 [shape = 's32[2]{0}', space=sflag, size = 0x8, scoped, tag = 'scoped memory for _spatial_attention_flat.1']
    #allocation4 [shape = 's32[2]{0}', space=sflag, size = 0x8, scoped, tag = 'scoped memory for _spatial_attention_flat.1']
    #allocation5 [shape = 'u8[262144]{0}', space=vmem, size = 0x40000, scoped, tag = 'input window, operand 1, single buffered']
    #allocation6 [shape = 's32[1]{0}', space=sflag, size = 0x4, scoped, tag = 'scoped memory for _spatial_attention_flat.1']
    #allocation7 [shape = 'u8[8192]{0}', space=vmem, size = 0x2000, scoped, tag = 'input window, operand 2']
    #allocation8 [shape = 'u8[8192]{0}', space=vmem, size = 0x2000, scoped, tag = 'output window, operand 0']
    %8 = vsyncpa [#allocation3], 0
    %9 = vsyncpa [#allocation6], 0
    %10 = vsyncpa [#allocation4], 0
    %s11 = scalar_lea.sflag [#allocation4], 1
    %12 = vsyncpa %s11, 0
    loop: start=0, step=1, limit=4
    $region2: #{_spatial_attention_flat.1} parent=1 // loop_pre_header
      _
    $region3: #{_spatial_attention_flat.1} parent=1 // loop_header
      %s14 = sphi 0, %s18
      %p15 = scmp.ge.s32.totalorder %s14, 4
      %s22 = sphi 0, %s22
      %s24 = sphi 0, %s22
      %s25 = sphi 0, %s24
      %s39 = sphi 0, %s25
      %s43 = sphi 0, %s43
      %s45 = sphi 0, %s43
      %s46 = sphi 0, %s45
      %s60 = sphi 0, %s46
      %s66 = sphi 0, %s68
      %s69 = sphi 0, %s66
      %s70 = sphi 0, %s69
      %s86 = sphi 0, %s70
      %s92 = sphi 0, %s94
      %s95 = sphi 0, %s92
      %s96 = sphi 0, %s95
      %s112 = sphi 0, %s96
    $region4: #{_spatial_attention_flat.1} parent=1 // loop_header_branch
      %17 = sbr.rel (%p15) target = $region8
    $region5: #{_spatial_attention_flat.1} parent=1 // loop_body
      %s19 = ssub.s32 %s14, 1
      %s20 = ssub.s32 %s14, 2
      %s21 = sadd.s32 %s14, 1
      %s23 = sadd.s32 %s22, 1
      %p26 = scmp.eq.s32.totalorder %s14, 1
      %p27 = scmp.ne.s32.totalorder %s22, %s24
      %p28 = scmp.eq.s32.totalorder %s14, 0
      %p29 = por %p27, %p28
      %p30 = scmp.ne.s32.totalorder %s22, %s24
      %p31 = scmp.eq.s32.totalorder %s19, 1
      %p32 = por %p30, %p31
      %p33 = scmp.ne.s32.totalorder %s24, %s25
      %p34 = scmp.eq.s32.totalorder %s19, 0
      %p35 = por %p33, %p34
      %p36 = scmp.ne.s32.totalorder %s24, %s25
      %p37 = scmp.eq.s32.totalorder %s20, 1
      %p38 = por %p36, %p37
      %p40 = scmp.ne.s32.totalorder %s25, %s39
      %p41 = scmp.eq.s32.totalorder %s20, 0
      %p42 = por %p40, %p41
      %s44 = sadd.s32 %s43, 1
      %p47 = scmp.eq.s32.totalorder %s14, 1
      %p48 = scmp.ne.s32.totalorder %s43, %s45
      %p49 = scmp.eq.s32.totalorder %s14, 0
      %p50 = por %p48, %p49
      %p51 = scmp.ne.s32.totalorder %s43, %s45
      %p52 = scmp.eq.s32.totalorder %s19, 1
      %p53 = por %p51, %p52
      %p54 = scmp.ne.s32.totalorder %s45, %s46
      %p55 = scmp.eq.s32.totalorder %s19, 0
      %p56 = por %p54, %p55
      %p57 = scmp.ne.s32.totalorder %s45, %s46
      %p58 = scmp.eq.s32.totalorder %s20, 1
      %p59 = por %p57, %p58
      %p61 = scmp.ne.s32.totalorder %s46, %s60
      %p62 = scmp.eq.s32.totalorder %s20, 0
      %p63 = por %p61, %p62
      %s64 = ssub.s32 %s14, %s21
      %p65 = scmp.eq.s32.totalorder %s64, 0
      %s67 = sadd.s32 %s66, 1
      %s68 = scalar_select %p65, %s66, %s67
      %p71 = pneg %p65
      %p72 = scmp.eq.s32.totalorder %s14, 1
      %p73 = por %p71, %p72
      %p74 = scmp.ne.s32.totalorder %s66, %s69
      %p75 = scmp.eq.s32.totalorder %s14, 0
      %p76 = por %p74, %p75
      %p77 = scmp.ne.s32.totalorder %s66, %s69
      %p78 = scmp.eq.s32.totalorder %s19, 1
      %p79 = por %p77, %p78
      %p80 = scmp.ne.s32.totalorder %s69, %s70
      %p81 = scmp.eq.s32.totalorder %s19, 0
      %p82 = por %p80, %p81
      %p83 = scmp.ne.s32.totalorder %s69, %s70
      %p84 = scmp.eq.s32.totalorder %s20, 1
      %p85 = por %p83, %p84
      %p87 = scmp.ne.s32.totalorder %s70, %s86
      %p88 = scmp.eq.s32.totalorder %s20, 0
      %p89 = por %p87, %p88
      %s90 = ssub.s32 %s14, %s21
      %p91 = scmp.eq.s32.totalorder %s90, 0
      %s93 = sadd.s32 %s92, 1
      %s94 = scalar_select %p91, %s92, %s93
      %p97 = pneg %p91
      %p98 = scmp.eq.s32.totalorder %s14, 1
      %p99 = por %p97, %p98
      %p100 = scmp.ne.s32.totalorder %s92, %s95
      %p101 = scmp.eq.s32.totalorder %s14, 0
      %p102 = por %p100, %p101
      %p103 = scmp.ne.s32.totalorder %s92, %s95
      %p104 = scmp.eq.s32.totalorder %s19, 1
      %p105 = por %p103, %p104
      %p106 = scmp.ne.s32.totalorder %s95, %s96
      %p107 = scmp.eq.s32.totalorder %s19, 0
      %p108 = por %p106, %p107
      %p109 = scmp.ne.s32.totalorder %s95, %s96
      %p110 = scmp.eq.s32.totalorder %s20, 1
      %p111 = por %p109, %p110
      %p113 = scmp.ne.s32.totalorder %s96, %s112
      %p114 = scmp.eq.s32.totalorder %s20, 0
      %p115 = por %p113, %p114
      %p116 = scmp.le.s32.totalorder 1, %s14
      %p117 = scmp.lt.s32.totalorder %s14, 3
      %p118 = pnand %p116, %p117
      %p119 = pneg %p118
      // Predicated region
      $region9: #{_spatial_attention_flat.1} parent=5 // pred_check
        _
      $region10: #{_spatial_attention_flat.1} parent=5 // pred_check_branch
        %121 = sbr.rel (%p118) target = $region12
      $region11: #{_spatial_attention_flat.1} parent=5 // pred_region
        %s122 = ssub.s32 %s14, 1
        // Predicated region
        $region13: #{_spatial_attention_flat.1} parent=11 // pred_check
          %p123 = pneg %p35
        $region14: #{_spatial_attention_flat.1} parent=11 // pred_check_branch
          %125 = sbr.rel (%p123) target = $region16
        $region15: #{_spatial_attention_flat.1} parent=11 // pred_region
          %s127 = ssub.s32 8192, 8192
          %128 = vsyncadd [#allocation3], %s127
          %s129 = sshll.u32 [#allocation2], 4
          %s130 = int_to_ptr.vmem [resolvable:$true] %s129
          %135 = dma.hbm_to_vmem [thread:$0]  %s0, 8192, %s130, [#allocation3], 256, 256, 16
        $region16: #{_spatial_attention_flat.1} parent=11 // pred_fallthru
          _
        // Predicated region
        $region17: #{_spatial_attention_flat.1} parent=11 // pred_check
          %p136 = pneg %p56
        $region18: #{_spatial_attention_flat.1} parent=11 // pred_check_branch
          %138 = sbr.rel (%p136) target = $region20
        $region19: #{_spatial_attention_flat.1} parent=11 // pred_region
          %s140 = ssub.s32 8192, 8192
          %141 = vsyncadd [#allocation6], %s140
          %s142 = sshll.u32 [#allocation5], 4
          %s143 = int_to_ptr.vmem [resolvable:$true] %s142
          %148 = dma.hbm_to_vmem [thread:$0]  %s1, 8192, %s143, [#allocation6], 256, 256, 16
        $region20: #{_spatial_attention_flat.1} parent=11 // pred_fallthru
          _
      $region12: #{_spatial_attention_flat.1} parent=5 // pred_fallthru
        _
      %p149 = scmp.lt.s32.totalorder %s14, 2
      // Predicated region
      $region21: #{_spatial_attention_flat.1} parent=5 // pred_check
        %p150 = pneg %p149
      $region22: #{_spatial_attention_flat.1} parent=5 // pred_check_branch
        %152 = sbr.rel (%p150) target = $region24
      $region23: #{_spatial_attention_flat.1} parent=5 // pred_region
        // Predicated region
        $region25: #{_spatial_attention_flat.1} parent=23 // pred_check
          %p153 = pneg %p76
        $region26: #{_spatial_attention_flat.1} parent=23 // pred_check_branch
          %155 = sbr.rel (%p153) target = $region28
        $region27: #{_spatial_attention_flat.1} parent=23 // pred_region
          %s156 = sand.u32 %s14, 1
          %s157 = scalar_lea.sflag [#allocation3], %s156
          %s158 = sand.u32 %s66, 1
          %s159 = smul.addr %s158, 8
          %s160 = scalar_lea.vmem [#allocation7], %s159
          %s162 = ssub.s32 128, 128
          %163 = vsyncadd %s157, %s162
          %s164 = smul.addr %s14, 2
          %s165 = smul.addr %s164, 64
          %s166 = scalar_lea.hbm %s2, %s165
          %s168 = sshll.u32 %s160, 4
          %s169 = int_to_ptr.vmem [resolvable:$true] %s168
          %171 = dma.hbm_to_vmem [thread:$0]  %s166, 128, %s169, %s157
        $region28: #{_spatial_attention_flat.1} parent=23 // pred_fallthru
          _
      $region24: #{_spatial_attention_flat.1} parent=5 // pred_fallthru
        _
      %p172 = scmp.le.s32.totalorder 1, %s14
      %p173 = scmp.lt.s32.totalorder %s14, 3
      %p174 = pnand %p172, %p173
      %p175 = pneg %p174
      // Predicated region
      $region29: #{_spatial_attention_flat.1} parent=5 // pred_check
        _
      $region30: #{_spatial_attention_flat.1} parent=5 // pred_check_branch
        %177 = sbr.rel (%p174) target = $region32
      $region31: #{_spatial_attention_flat.1} parent=5 // pred_region
        %s178 = ssub.s32 %s14, 1
        // Predicated region
        $region33: #{_spatial_attention_flat.1} parent=31 // pred_check
          %p179 = pneg %p35
        $region34: #{_spatial_attention_flat.1} parent=31 // pred_check_branch
          %181 = sbr.rel (%p179) target = $region36
        $region35: #{_spatial_attention_flat.1} parent=31 // pred_region
          %182 = dma.done [#allocation3], 8192
        $region36: #{_spatial_attention_flat.1} parent=31 // pred_fallthru
          _
        // Predicated region
        $region37: #{_spatial_attention_flat.1} parent=31 // pred_check
          %p183 = pneg %p56
        $region38: #{_spatial_attention_flat.1} parent=31 // pred_check_branch
          %185 = sbr.rel (%p183) target = $region40
        $region39: #{_spatial_attention_flat.1} parent=31 // pred_region
          %186 = dma.done [#allocation6], 8192
        $region40: #{_spatial_attention_flat.1} parent=31 // pred_fallthru
          _
        %s187 = sand.u32 %s19, 1
        %s188 = scalar_lea.sflag [#allocation3], %s187
        %s189 = sand.u32 %s69, 1
        %s190 = smul.addr %s189, 8
        %s191 = scalar_lea.vmem [#allocation7], %s190
        // Predicated region
        $region41: #{_spatial_attention_flat.1} parent=31 // pred_check
          %p192 = pneg %p82
        $region42: #{_spatial_attention_flat.1} parent=31 // pred_check_branch
          %194 = sbr.rel (%p192) target = $region44
        $region43: #{_spatial_attention_flat.1} parent=31 // pred_region
          %195 = dma.done %s188, 128
        $region44: #{_spatial_attention_flat.1} parent=31 // pred_fallthru
          _
        %p196 = pneg %p35
        %p197 = pneg %p32
        %p198 = pneg %p56
        %p199 = pneg %p53
        %s200 = sand.u32 %s19, 1
        %s201 = scalar_lea.sflag [#allocation3], %s200
        %s202 = sand.u32 %s69, 1
        %s203 = smul.addr %s202, 8
        %s204 = scalar_lea.vmem [#allocation7], %s203
        %p205 = pneg %p82
        %p206 = pneg %p79
        %p207 = pneg %p108
        %p208 = pneg %p105
        %s209 = sand.u32 %s95, 1
        %s210 = scalar_lea.sflag [#allocation4], %s209
        %s211 = sand.u32 %s95, 1
        %s212 = smul.addr %s211, 8
        %s213 = scalar_lea.vmem [#allocation8], %s212
        %v214 = vld [vmem:[%s191] sm:$0xff]
        %v216 = vcombine.high %v214, %v214
        %vm218 = vcmask 1043456
        %v219 = vsel %vm218, %v214, 0.0
        %v220 = vrot.slane %v219, 4
        %v221 = vadd.f32 %v219, %v220
        %v222 = vrot.slane %v221, 2
        %v223 = vadd.f32 %v221, %v222
        %v224 = vrot.slane %v223, 1
        %v225 = vadd.f32 %v223, %v224
        %v226 = vsel %vm218, %v216, 0.0
        %v227 = vrot.slane %v226, 4
        %v228 = vadd.f32 %v226, %v227
        %v229 = vrot.slane %v228, 2
        %v230 = vadd.f32 %v228, %v229
        %v231 = vrot.slane %v230, 1
        %v232 = vadd.f32 %v230, %v231
        %v233 = vsel %vm218, %v214, -inf
        %v234 = vrot.slane %v233, 4
        %v235 = vmax.f32 %v233, %v234
        %v236 = vrot.slane %v235, 2
        %v237 = vmax.f32 %v235, %v236
        %v238 = vrot.slane %v237, 1
        %v239 = vmax.f32 %v237, %v238
        %v240 = vsel %vm218, %v216, -inf
        %v241 = vrot.slane %v240, 4
        %v242 = vmax.f32 %v240, %v241
        %v243 = vrot.slane %v242, 2
        %v244 = vmax.f32 %v242, %v243
        %v245 = vrot.slane %v244, 1
        %v246 = vmax.f32 %v244, %v245
        %v247 = vld [vmem:[#allocation2] sm:$0xff]
        %v248 = vld [vmem:[#allocation2 + $0x8] sm:$0xff]
        %v249 = vld [vmem:[#allocation2 + $0x10] sm:$0xff]
        %v250 = vld [vmem:[#allocation2 + $0x18] sm:$0xff]
        %v251 = vld [vmem:[#allocation2 + $0x20] sm:$0xff]
        %v252 = vld [vmem:[#allocation2 + $0x28] sm:$0xff]
        %v253 = vld [vmem:[#allocation2 + $0x30] sm:$0xff]
        %v254 = vld [vmem:[#allocation2 + $0x38] sm:$0xff]
        %v255 = vld [vmem:[#allocation2 + $0x40] sm:$0xff]
        %v256 = vld [vmem:[#allocation2 + $0x48] sm:$0xff]
        %v257 = vld [vmem:[#allocation2 + $0x50] sm:$0xff]
        %v258 = vld [vmem:[#allocation2 + $0x58] sm:$0xff]
        %v259 = vld [vmem:[#allocation2 + $0x60] sm:$0xff]
        %v260 = vld [vmem:[#allocation2 + $0x68] sm:$0xff]
        %v261 = vld [vmem:[#allocation2 + $0x70] sm:$0xff]
        %v262 = vld [vmem:[#allocation2 + $0x78] sm:$0xff]
        %v263 = vld [vmem:[#allocation2 + $0x80] sm:$0xff]
        %v264 = vld [vmem:[#allocation2 + $0x88] sm:$0xff]
        %v265 = vld [vmem:[#allocation2 + $0x90] sm:$0xff]
        %v266 = vld [vmem:[#allocation2 + $0x98] sm:$0xff]
        %v267 = vld [vmem:[#allocation2 + $0xa0] sm:$0xff]
        %v268 = vld [vmem:[#allocation2 + $0xa8] sm:$0xff]
        %v269 = vld [vmem:[#allocation2 + $0xb0] sm:$0xff]
        %v270 = vld [vmem:[#allocation2 + $0xb8] sm:$0xff]
        %v271 = vld [vmem:[#allocation2 + $0xc0] sm:$0xff]
        %v272 = vld [vmem:[#allocation2 + $0xc8] sm:$0xff]
        %v273 = vld [vmem:[#allocation2 + $0xd0] sm:$0xff]
        %v274 = vld [vmem:[#allocation2 + $0xd8] sm:$0xff]
        %v275 = vld [vmem:[#allocation2 + $0xe0] sm:$0xff]
        %v276 = vld [vmem:[#allocation2 + $0xe8] sm:$0xff]
        %v277 = vld [vmem:[#allocation2 + $0xf0] sm:$0xff]
        %v278 = vld [vmem:[#allocation2 + $0xf8] sm:$0xff]
        %v279 = vld [vmem:[#allocation2 + $0x100] sm:$0xff]
        %v280 = vld [vmem:[#allocation2 + $0x108] sm:$0xff]
        %v281 = vld [vmem:[#allocation2 + $0x110] sm:$0xff]
        %v282 = vld [vmem:[#allocation2 + $0x118] sm:$0xff]
        %v283 = vld [vmem:[#allocation2 + $0x120] sm:$0xff]
        %v284 = vld [vmem:[#allocation2 + $0x128] sm:$0xff]
        %v285 = vld [vmem:[#allocation2 + $0x130] sm:$0xff]
        %v286 = vld [vmem:[#allocation2 + $0x138] sm:$0xff]
        %v287 = vld [vmem:[#allocation2 + $0x140] sm:$0xff]
        %v288 = vld [vmem:[#allocation2 + $0x148] sm:$0xff]
        %v289 = vld [vmem:[#allocation2 + $0x150] sm:$0xff]
        %v290 = vld [vmem:[#allocation2 + $0x158] sm:$0xff]
        %v291 = vld [vmem:[#allocation2 + $0x160] sm:$0xff]
        %v292 = vld [vmem:[#allocation2 + $0x168] sm:$0xff]
        %v293 = vld [vmem:[#allocation2 + $0x170] sm:$0xff]
        %v294 = vld [vmem:[#allocation2 + $0x178] sm:$0xff]
        %v295 = vld [vmem:[#allocation2 + $0x180] sm:$0xff]
        %v296 = vld [vmem:[#allocation2 + $0x188] sm:$0xff]
        %v297 = vld [vmem:[#allocation2 + $0x190] sm:$0xff]
        %v298 = vld [vmem:[#allocation2 + $0x198] sm:$0xff]
        %v299 = vld [vmem:[#allocation2 + $0x1a0] sm:$0xff]
        %v300 = vld [vmem:[#allocation2 + $0x1a8] sm:$0xff]
        %v301 = vld [vmem:[#allocation2 + $0x1b0] sm:$0xff]
        %v302 = vld [vmem:[#allocation2 + $0x1b8] sm:$0xff]
        %v303 = vld [vmem:[#allocation2 + $0x1c0] sm:$0xff]
        %v304 = vld [vmem:[#allocation2 + $0x1c8] sm:$0xff]
        %v305 = vld [vmem:[#allocation2 + $0x1d0] sm:$0xff]
        %v306 = vld [vmem:[#allocation2 + $0x1d8] sm:$0xff]
        %v307 = vld [vmem:[#allocation2 + $0x1e0] sm:$0xff]
        %v308 = vld [vmem:[#allocation2 + $0x1e8] sm:$0xff]
        %v309 = vld [vmem:[#allocation2 + $0x1f0] sm:$0xff]
        %v310 = vld [vmem:[#allocation2 + $0x1f8] sm:$0xff]
        %v311 = vld [vmem:[#allocation5] sm:$0xff]
        %v312 = vld [vmem:[#allocation5 + $0x8] sm:$0xff]
        %v313 = vld [vmem:[#allocation5 + $0x10] sm:$0xff]
        %v314 = vld [vmem:[#allocation5 + $0x18] sm:$0xff]
        %v315 = vld [vmem:[#allocation5 + $0x20] sm:$0xff]
        %v316 = vld [vmem:[#allocation5 + $0x28] sm:$0xff]
        %v317 = vld [vmem:[#allocation5 + $0x30] sm:$0xff]
        %v318 = vld [vmem:[#allocation5 + $0x38] sm:$0xff]
        %v319 = vld [vmem:[#allocation5 + $0x40] sm:$0xff]
        %v320 = vld [vmem:[#allocation5 + $0x48] sm:$0xff]
        %v321 = vld [vmem:[#allocation5 + $0x50] sm:$0xff]
        %v322 = vld [vmem:[#allocation5 + $0x58] sm:$0xff]
        %v323 = vld [vmem:[#allocation5 + $0x60] sm:$0xff]
        %v324 = vld [vmem:[#allocation5 + $0x68] sm:$0xff]
        %v325 = vld [vmem:[#allocation5 + $0x70] sm:$0xff]
        %v326 = vld [vmem:[#allocation5 + $0x78] sm:$0xff]
        %v327 = vld [vmem:[#allocation5 + $0x80] sm:$0xff]
        %v328 = vld [vmem:[#allocation5 + $0x88] sm:$0xff]
        %v329 = vld [vmem:[#allocation5 + $0x90] sm:$0xff]
        %v330 = vld [vmem:[#allocation5 + $0x98] sm:$0xff]
        %v331 = vld [vmem:[#allocation5 + $0xa0] sm:$0xff]
        %v332 = vld [vmem:[#allocation5 + $0xa8] sm:$0xff]
        %v333 = vld [vmem:[#allocation5 + $0xb0] sm:$0xff]
        %v334 = vld [vmem:[#allocation5 + $0xb8] sm:$0xff]
        %v335 = vld [vmem:[#allocation5 + $0xc0] sm:$0xff]
        %v336 = vld [vmem:[#allocation5 + $0xc8] sm:$0xff]
        %v337 = vld [vmem:[#allocation5 + $0xd0] sm:$0xff]
        %v338 = vld [vmem:[#allocation5 + $0xd8] sm:$0xff]
        %v339 = vld [vmem:[#allocation5 + $0xe0] sm:$0xff]
        %v340 = vld [vmem:[#allocation5 + $0xe8] sm:$0xff]
        %v341 = vld [vmem:[#allocation5 + $0xf0] sm:$0xff]
        %v342 = vld [vmem:[#allocation5 + $0xf8] sm:$0xff]
        %v343 = vld [vmem:[#allocation5 + $0x100] sm:$0xff]
        %v344 = vld [vmem:[#allocation5 + $0x108] sm:$0xff]
        %v345 = vld [vmem:[#allocation5 + $0x110] sm:$0xff]
        %v346 = vld [vmem:[#allocation5 + $0x118] sm:$0xff]
        %v347 = vld [vmem:[#allocation5 + $0x120] sm:$0xff]
        %v348 = vld [vmem:[#allocation5 + $0x128] sm:$0xff]
        %v349 = vld [vmem:[#allocation5 + $0x130] sm:$0xff]
        %v350 = vld [vmem:[#allocation5 + $0x138] sm:$0xff]
        %v351 = vld [vmem:[#allocation5 + $0x140] sm:$0xff]
        %v352 = vld [vmem:[#allocation5 + $0x148] sm:$0xff]
        %v353 = vld [vmem:[#allocation5 + $0x150] sm:$0xff]
        %v354 = vld [vmem:[#allocation5 + $0x158] sm:$0xff]
        %v355 = vld [vmem:[#allocation5 + $0x160] sm:$0xff]
        %v356 = vld [vmem:[#allocation5 + $0x168] sm:$0xff]
        %v357 = vld [vmem:[#allocation5 + $0x170] sm:$0xff]
        %v358 = vld [vmem:[#allocation5 + $0x178] sm:$0xff]
        %v359 = vld [vmem:[#allocation5 + $0x180] sm:$0xff]
        %v360 = vld [vmem:[#allocation5 + $0x188] sm:$0xff]
        %v361 = vld [vmem:[#allocation5 + $0x190] sm:$0xff]
        %v362 = vld [vmem:[#allocation5 + $0x198] sm:$0xff]
        %v363 = vld [vmem:[#allocation5 + $0x1a0] sm:$0xff]
        %v364 = vld [vmem:[#allocation5 + $0x1a8] sm:$0xff]
        %v365 = vld [vmem:[#allocation5 + $0x1b0] sm:$0xff]
        %v366 = vld [vmem:[#allocation5 + $0x1b8] sm:$0xff]
        %v367 = vld [vmem:[#allocation5 + $0x1c0] sm:$0xff]
        %v368 = vld [vmem:[#allocation5 + $0x1c8] sm:$0xff]
        %v369 = vld [vmem:[#allocation5 + $0x1d0] sm:$0xff]
        %v370 = vld [vmem:[#allocation5 + $0x1d8] sm:$0xff]
        %v371 = vld [vmem:[#allocation5 + $0x1e0] sm:$0xff]
        %v372 = vld [vmem:[#allocation5 + $0x1e8] sm:$0xff]
        %v373 = vld [vmem:[#allocation5 + $0x1f0] sm:$0xff]
        %v374 = vld [vmem:[#allocation5 + $0x1f8] sm:$0xff]
        %v375 = vand.u32 %v312, 4294901760
        %376 = vmatprep.subr.mxu0 %v375
        %v377 = vand.u32 %v311, 4294901760
        %378 = vmatpush1.msra.mxu0 %v377
        %v379 = vand.u32 %v314, 4294901760
        %380 = vmatprep.subr.mxu0 %v379
        %v381 = vand.u32 %v313, 4294901760
        %382 = vmatpush1.msra.mxu0 %v381
        %v383 = vand.u32 %v316, 4294901760
        %384 = vmatprep.subr.mxu0 %v383
        %v385 = vand.u32 %v315, 4294901760
        %386 = vmatpush1.msra.mxu0 %v385
        %v387 = vand.u32 %v318, 4294901760
        %388 = vmatprep.subr.mxu0 %v387
        %v389 = vand.u32 %v317, 4294901760
        %390 = vmatpush1.msra.mxu0 %v389
        %v391 = vand.u32 %v320, 4294901760
        %392 = vmatprep.subr.mxu0 %v391
        %v393 = vand.u32 %v319, 4294901760
        %394 = vmatpush1.msra.mxu0 %v393
        %v395 = vand.u32 %v322, 4294901760
        %396 = vmatprep.subr.mxu0 %v395
        %v397 = vand.u32 %v321, 4294901760
        %398 = vmatpush1.msra.mxu0 %v397
        %v399 = vand.u32 %v324, 4294901760
        %400 = vmatprep.subr.mxu0 %v399
        %v401 = vand.u32 %v323, 4294901760
        %402 = vmatpush1.msra.mxu0 %v401
        %v403 = vand.u32 %v326, 4294901760
        %404 = vmatprep.subr.mxu0 %v403
        %v405 = vand.u32 %v325, 4294901760
        %406 = vmatpush1.msra.mxu0 %v405
        %v407 = vand.u32 %v328, 4294901760
        %408 = vmatprep.subr.mxu0 %v407
        %v409 = vand.u32 %v327, 4294901760
        %410 = vmatpush1.msra.mxu0 %v409
        %v411 = vand.u32 %v330, 4294901760
        %412 = vmatprep.subr.mxu0 %v411
        %v413 = vand.u32 %v329, 4294901760
        %414 = vmatpush1.msra.mxu0 %v413
        %v415 = vand.u32 %v332, 4294901760
        %416 = vmatprep.subr.mxu0 %v415
        %v417 = vand.u32 %v331, 4294901760
        %418 = vmatpush1.msra.mxu0 %v417
        %v419 = vand.u32 %v334, 4294901760
        %420 = vmatprep.subr.mxu0 %v419
        %v421 = vand.u32 %v333, 4294901760
        %422 = vmatpush1.msra.mxu0 %v421
        %v423 = vand.u32 %v336, 4294901760
        %424 = vmatprep.subr.mxu0 %v423
        %v425 = vand.u32 %v335, 4294901760
        %426 = vmatpush1.msra.mxu0 %v425
        %v427 = vand.u32 %v338, 4294901760
        %428 = vmatprep.subr.mxu0 %v427
        %v429 = vand.u32 %v337, 4294901760
        %430 = vmatpush1.msra.mxu0 %v429
        %v431 = vand.u32 %v340, 4294901760
        %432 = vmatprep.subr.mxu0 %v431
        %v433 = vand.u32 %v339, 4294901760
        %434 = vmatpush1.msra.mxu0 %v433
        %v435 = vand.u32 %v342, 4294901760
        %436 = vmatprep.subr.mxu0 %v435
        %v437 = vand.u32 %v341, 4294901760
        %438 = vmatpush1.msra.mxu0 %v437
        %v439 = vand.u32 %v344, 4294901760
        %440 = vmatprep.subr.mxu0 %v439
        %v441 = vand.u32 %v343, 4294901760
        %442 = vmatpush1.msra.mxu0 %v441
        %v443 = vand.u32 %v346, 4294901760
        %444 = vmatprep.subr.mxu0 %v443
        %v445 = vand.u32 %v345, 4294901760
        %446 = vmatpush1.msra.mxu0 %v445
        %v447 = vand.u32 %v348, 4294901760
        %448 = vmatprep.subr.mxu0 %v447
        %v449 = vand.u32 %v347, 4294901760
        %450 = vmatpush1.msra.mxu0 %v449
        %v451 = vand.u32 %v350, 4294901760
        %452 = vmatprep.subr.mxu0 %v451
        %v453 = vand.u32 %v349, 4294901760
        %454 = vmatpush1.msra.mxu0 %v453
        %v455 = vand.u32 %v352, 4294901760
        %456 = vmatprep.subr.mxu0 %v455
        %v457 = vand.u32 %v351, 4294901760
        %458 = vmatpush1.msra.mxu0 %v457
        %v459 = vand.u32 %v354, 4294901760
        %460 = vmatprep.subr.mxu0 %v459
        %v461 = vand.u32 %v353, 4294901760
        %462 = vmatpush1.msra.mxu0 %v461
        %v463 = vand.u32 %v356, 4294901760
        %464 = vmatprep.subr.mxu0 %v463
        %v465 = vand.u32 %v355, 4294901760
        %466 = vmatpush1.msra.mxu0 %v465
        %v467 = vand.u32 %v358, 4294901760
        %468 = vmatprep.subr.mxu0 %v467
        %v469 = vand.u32 %v357, 4294901760
        %470 = vmatpush1.msra.mxu0 %v469
        %v471 = vand.u32 %v360, 4294901760
        %472 = vmatprep.subr.mxu0 %v471
        %v473 = vand.u32 %v359, 4294901760
        %474 = vmatpush1.msra.mxu0 %v473
        %v475 = vand.u32 %v362, 4294901760
        %476 = vmatprep.subr.mxu0 %v475
        %v477 = vand.u32 %v361, 4294901760
        %478 = vmatpush1.msra.mxu0 %v477
        %v479 = vand.u32 %v364, 4294901760
        %480 = vmatprep.subr.mxu0 %v479
        %v481 = vand.u32 %v363, 4294901760
        %482 = vmatpush1.msra.mxu0 %v481
        %v483 = vand.u32 %v366, 4294901760
        %484 = vmatprep.subr.mxu0 %v483
        %v485 = vand.u32 %v365, 4294901760
        %486 = vmatpush1.msra.mxu0 %v485
        %v487 = vand.u32 %v368, 4294901760
        %488 = vmatprep.subr.mxu0 %v487
        %v489 = vand.u32 %v367, 4294901760
        %490 = vmatpush1.msra.mxu0 %v489
        %v491 = vand.u32 %v370, 4294901760
        %492 = vmatprep.subr.mxu0 %v491
        %v493 = vand.u32 %v369, 4294901760
        %494 = vmatpush1.msra.mxu0 %v493
        %v495 = vand.u32 %v372, 4294901760
        %496 = vmatprep.subr.mxu0 %v495
        %v497 = vand.u32 %v371, 4294901760
        %498 = vmatpush1.msra.mxu0 %v497
        %v499 = vand.u32 %v374, 4294901760
        %500 = vmatprep.subr.mxu0 %v499
        %v501 = vand.u32 %v373, 4294901760
        %502 = vmatpush1.msra.mxu0 %v501
        %v503 = vand.u32 %v246, 4294901760
        %v504 = vsub.f32 %v246, %v503
        %v505 = vand.u32 %v504, 4294901760
        %v506 = vsub.f32 %v504, %v505
        %v507 = vand.u32 %v506, 4294901760
        %508 = vmatprep.mubr.f32.mxu0 %v507
        %v509 = vand.u32 %v239, 4294901760
        %v510 = vsub.f32 %v239, %v509
        %v511 = vand.u32 %v510, 4294901760
        %v512 = vsub.f32 %v510, %v511
        %v513 = vand.u32 %v512, 4294901760
        %514 = vmatmul.mubr.f32.gmra.mrb[0].mxu0 %v513
        %v515 = vpop.f32.mrb[0].mxu0
        %v516 = vadd.f32 0.0, %v515
        %v517 = vpop.f32.mrb[0].mxu0
        %v518 = vadd.f32 0.0, %v517
        %519 = vdwg.mxu0
        %v520 = vand.u32 %v312, 4294901760
        %v521 = vsub.f32 %v312, %v520
        %v522 = vand.u32 %v521, 4294901760
        %v523 = vsub.f32 %v521, %v522
        %v524 = vand.u32 %v523, 4294901760
        %525 = vmatprep.subr.mxu0 %v524
        %v526 = vand.u32 %v311, 4294901760
        %v527 = vsub.f32 %v311, %v526
        %v528 = vand.u32 %v527, 4294901760
        %v529 = vsub.f32 %v527, %v528
        %v530 = vand.u32 %v529, 4294901760
        %531 = vmatpush1.msra.mxu0 %v530
        %v532 = vand.u32 %v314, 4294901760
        %v533 = vsub.f32 %v314, %v532
        %v534 = vand.u32 %v533, 4294901760
        %v535 = vsub.f32 %v533, %v534
        %v536 = vand.u32 %v535, 4294901760
        %537 = vmatprep.subr.mxu0 %v536
        %v538 = vand.u32 %v313, 4294901760
        %v539 = vsub.f32 %v313, %v538
        %v540 = vand.u32 %v539, 4294901760
        %v541 = vsub.f32 %v539, %v540
        %v542 = vand.u32 %v541, 4294901760
        %543 = vmatpush1.msra.mxu0 %v542
        %v544 = vand.u32 %v316, 4294901760
        %v545 = vsub.f32 %v316, %v544
        %v546 = vand.u32 %v545, 4294901760
        %v547 = vsub.f32 %v545, %v546
        %v548 = vand.u32 %v547, 4294901760
        %549 = vmatprep.subr.mxu0 %v548
        %v550 = vand.u32 %v315, 4294901760
        %v551 = vsub.f32 %v315, %v550
        %v552 = vand.u32 %v551, 4294901760
        %v553 = vsub.f32 %v551, %v552
        %v554 = vand.u32 %v553, 4294901760
        %555 = vmatpush1.msra.mxu0 %v554
        %v556 = vand.u32 %v318, 4294901760
        %v557 = vsub.f32 %v318, %v556
        %v558 = vand.u32 %v557, 4294901760
        %v559 = vsub.f32 %v557, %v558
        %v560 = vand.u32 %v559, 4294901760
        %561 = vmatprep.subr.mxu0 %v560
        %v562 = vand.u32 %v317, 4294901760
        %v563 = vsub.f32 %v317, %v562
        %v564 = vand.u32 %v563, 4294901760
        %v565 = vsub.f32 %v563, %v564
        %v566 = vand.u32 %v565, 4294901760
        %567 = vmatpush1.msra.mxu0 %v566
        %v568 = vand.u32 %v320, 4294901760
        %v569 = vsub.f32 %v320, %v568
        %v570 = vand.u32 %v569, 4294901760
        %v571 = vsub.f32 %v569, %v570
        %v572 = vand.u32 %v571, 4294901760
        %573 = vmatprep.subr.mxu0 %v572
        %v574 = vand.u32 %v319, 4294901760
        %v575 = vsub.f32 %v319, %v574
        %v576 = vand.u32 %v575, 4294901760
        %v577 = vsub.f32 %v575, %v576
        %v578 = vand.u32 %v577, 4294901760
        %579 = vmatpush1.msra.mxu0 %v578
        %v580 = vand.u32 %v322, 4294901760
        %v581 = vsub.f32 %v322, %v580
        %v582 = vand.u32 %v581, 4294901760
        %v583 = vsub.f32 %v581, %v582
        %v584 = vand.u32 %v583, 4294901760
        %585 = vmatprep.subr.mxu0 %v584
        %v586 = vand.u32 %v321, 4294901760
        %v587 = vsub.f32 %v321, %v586
        %v588 = vand.u32 %v587, 4294901760
        %v589 = vsub.f32 %v587, %v588
        %v590 = vand.u32 %v589, 4294901760
        %591 = vmatpush1.msra.mxu0 %v590
        %v592 = vand.u32 %v324, 4294901760
        %v593 = vsub.f32 %v324, %v592
        %v594 = vand.u32 %v593, 4294901760
        %v595 = vsub.f32 %v593, %v594
        %v596 = vand.u32 %v595, 4294901760
        %597 = vmatprep.subr.mxu0 %v596
        %v598 = vand.u32 %v323, 4294901760
        %v599 = vsub.f32 %v323, %v598
        %v600 = vand.u32 %v599, 4294901760
        %v601 = vsub.f32 %v599, %v600
        %v602 = vand.u32 %v601, 4294901760
        %603 = vmatpush1.msra.mxu0 %v602
        %v604 = vand.u32 %v326, 4294901760
        %v605 = vsub.f32 %v326, %v604
        %v606 = vand.u32 %v605, 4294901760
        %v607 = vsub.f32 %v605, %v606
        %v608 = vand.u32 %v607, 4294901760
        %609 = vmatprep.subr.mxu0 %v608
        %v610 = vand.u32 %v325, 4294901760
        %v611 = vsub.f32 %v325, %v610
        %v612 = vand.u32 %v611, 4294901760
        %v613 = vsub.f32 %v611, %v612
        %v614 = vand.u32 %v613, 4294901760
        %615 = vmatpush1.msra.mxu0 %v614
        %v616 = vand.u32 %v328, 4294901760
        %v617 = vsub.f32 %v328, %v616
        %v618 = vand.u32 %v617, 4294901760
        %v619 = vsub.f32 %v617, %v618
        %v620 = vand.u32 %v619, 4294901760
        %621 = vmatprep.subr.mxu0 %v620
        %v622 = vand.u32 %v327, 4294901760
        %v623 = vsub.f32 %v327, %v622
        %v624 = vand.u32 %v623, 4294901760
        %v625 = vsub.f32 %v623, %v624
        %v626 = vand.u32 %v625, 4294901760
        %627 = vmatpush1.msra.mxu0 %v626
        %v628 = vand.u32 %v330, 4294901760
        %v629 = vsub.f32 %v330, %v628
        %v630 = vand.u32 %v629, 4294901760
        %v631 = vsub.f32 %v629, %v630
        %v632 = vand.u32 %v631, 4294901760
        %633 = vmatprep.subr.mxu0 %v632
        %v634 = vand.u32 %v329, 4294901760
        %v635 = vsub.f32 %v329, %v634
        %v636 = vand.u32 %v635, 4294901760
        %v637 = vsub.f32 %v635, %v636
        %v638 = vand.u32 %v637, 4294901760
        %639 = vmatpush1.msra.mxu0 %v638
        %v640 = vand.u32 %v332, 4294901760
        %v641 = vsub.f32 %v332, %v640
        %v642 = vand.u32 %v641, 4294901760
        %v643 = vsub.f32 %v641, %v642
        %v644 = vand.u32 %v643, 4294901760
        %645 = vmatprep.subr.mxu0 %v644
        %v646 = vand.u32 %v331, 4294901760
        %v647 = vsub.f32 %v331, %v646
        %v648 = vand.u32 %v647, 4294901760
        %v649 = vsub.f32 %v647, %v648
        %v650 = vand.u32 %v649, 4294901760
        %651 = vmatpush1.msra.mxu0 %v650
        %v652 = vand.u32 %v334, 4294901760
        %v653 = vsub.f32 %v334, %v652
        %v654 = vand.u32 %v653, 4294901760
        %v655 = vsub.f32 %v653, %v654
        %v656 = vand.u32 %v655, 4294901760
        %657 = vmatprep.subr.mxu0 %v656
        %v658 = vand.u32 %v333, 4294901760
        %v659 = vsub.f32 %v333, %v658
        %v660 = vand.u32 %v659, 4294901760
        %v661 = vsub.f32 %v659, %v660
        %v662 = vand.u32 %v661, 4294901760
        %663 = vmatpush1.msra.mxu0 %v662
        %v664 = vand.u32 %v336, 4294901760
        %v665 = vsub.f32 %v336, %v664
        %v666 = vand.u32 %v665, 4294901760
        %v667 = vsub.f32 %v665, %v666
        %v668 = vand.u32 %v667, 4294901760
        %669 = vmatprep.subr.mxu0 %v668
        %v670 = vand.u32 %v335, 4294901760
        %v671 = vsub.f32 %v335, %v670
        %v672 = vand.u32 %v671, 4294901760
        %v673 = vsub.f32 %v671, %v672
        %v674 = vand.u32 %v673, 4294901760
        %675 = vmatpush1.msra.mxu0 %v674
        %v676 = vand.u32 %v338, 4294901760
        %v677 = vsub.f32 %v338, %v676
        %v678 = vand.u32 %v677, 4294901760
        %v679 = vsub.f32 %v677, %v678
        %v680 = vand.u32 %v679, 4294901760
        %681 = vmatprep.subr.mxu0 %v680
        %v682 = vand.u32 %v337, 4294901760
        %v683 = vsub.f32 %v337, %v682
        %v684 = vand.u32 %v683, 4294901760
        %v685 = vsub.f32 %v683, %v684
        %v686 = vand.u32 %v685, 4294901760
        %687 = vmatpush1.msra.mxu0 %v686
        %v688 = vand.u32 %v340, 4294901760
        %v689 = vsub.f32 %v340, %v688
        %v690 = vand.u32 %v689, 4294901760
        %v691 = vsub.f32 %v689, %v690
        %v692 = vand.u32 %v691, 4294901760
        %693 = vmatprep.subr.mxu0 %v692
        %v694 = vand.u32 %v339, 4294901760
        %v695 = vsub.f32 %v339, %v694
        %v696 = vand.u32 %v695, 4294901760
        %v697 = vsub.f32 %v695, %v696
        %v698 = vand.u32 %v697, 4294901760
        %699 = vmatpush1.msra.mxu0 %v698
        %v700 = vand.u32 %v342, 4294901760
        %v701 = vsub.f32 %v342, %v700
        %v702 = vand.u32 %v701, 4294901760
        %v703 = vsub.f32 %v701, %v702
        %v704 = vand.u32 %v703, 4294901760
        %705 = vmatprep.subr.mxu0 %v704
        %v706 = vand.u32 %v341, 4294901760
        %v707 = vsub.f32 %v341, %v706
        %v708 = vand.u32 %v707, 4294901760
        %v709 = vsub.f32 %v707, %v708
        %v710 = vand.u32 %v709, 4294901760
        %711 = vmatpush1.msra.mxu0 %v710
        %v712 = vand.u32 %v344, 4294901760
        %v713 = vsub.f32 %v344, %v712
        %v714 = vand.u32 %v713, 4294901760
        %v715 = vsub.f32 %v713, %v714
        %v716 = vand.u32 %v715, 4294901760
        %717 = vmatprep.subr.mxu0 %v716
        %v718 = vand.u32 %v343, 4294901760
        %v719 = vsub.f32 %v343, %v718
        %v720 = vand.u32 %v719, 4294901760
        %v721 = vsub.f32 %v719, %v720
        %v722 = vand.u32 %v721, 4294901760
        %723 = vmatpush1.msra.mxu0 %v722
        %v724 = vand.u32 %v346, 4294901760
        %v725 = vsub.f32 %v346, %v724
        %v726 = vand.u32 %v725, 4294901760
        %v727 = vsub.f32 %v725, %v726
        %v728 = vand.u32 %v727, 4294901760
        %729 = vmatprep.subr.mxu0 %v728
        %v730 = vand.u32 %v345, 4294901760
        %v731 = vsub.f32 %v345, %v730
        %v732 = vand.u32 %v731, 4294901760
        %v733 = vsub.f32 %v731, %v732
        %v734 = vand.u32 %v733, 4294901760
        %735 = vmatpush1.msra.mxu0 %v734
        %v736 = vand.u32 %v348, 4294901760
        %v737 = vsub.f32 %v348, %v736
        %v738 = vand.u32 %v737, 4294901760
        %v739 = vsub.f32 %v737, %v738
        %v740 = vand.u32 %v739, 4294901760
        %741 = vmatprep.subr.mxu0 %v740
        %v742 = vand.u32 %v347, 4294901760
        %v743 = vsub.f32 %v347, %v742
        %v744 = vand.u32 %v743, 4294901760
        %v745 = vsub.f32 %v743, %v744
        %v746 = vand.u32 %v745, 4294901760
        %747 = vmatpush1.msra.mxu0 %v746
        %v748 = vand.u32 %v350, 4294901760
        %v749 = vsub.f32 %v350, %v748
        %v750 = vand.u32 %v749, 4294901760
        %v751 = vsub.f32 %v749, %v750
        %v752 = vand.u32 %v751, 4294901760
        %753 = vmatprep.subr.mxu0 %v752
        %v754 = vand.u32 %v349, 4294901760
        %v755 = vsub.f32 %v349, %v754
        %v756 = vand.u32 %v755, 4294901760
        %v757 = vsub.f32 %v755, %v756
        %v758 = vand.u32 %v757, 4294901760
        %759 = vmatpush1.msra.mxu0 %v758
        %v760 = vand.u32 %v352, 4294901760
        %v761 = vsub.f32 %v352, %v760
        %v762 = vand.u32 %v761, 4294901760
        %v763 = vsub.f32 %v761, %v762
        %v764 = vand.u32 %v763, 4294901760
        %765 = vmatprep.subr.mxu0 %v764
        %v766 = vand.u32 %v351, 4294901760
        %v767 = vsub.f32 %v351, %v766
        %v768 = vand.u32 %v767, 4294901760
        %v769 = vsub.f32 %v767, %v768
        %v770 = vand.u32 %v769, 4294901760
        %771 = vmatpush1.msra.mxu0 %v770
        %v772 = vand.u32 %v354, 4294901760
        %v773 = vsub.f32 %v354, %v772
        %v774 = vand.u32 %v773, 4294901760
        %v775 = vsub.f32 %v773, %v774
        %v776 = vand.u32 %v775, 4294901760
        %777 = vmatprep.subr.mxu0 %v776
        %v778 = vand.u32 %v353, 4294901760
        %v779 = vsub.f32 %v353, %v778
        %v780 = vand.u32 %v779, 4294901760
        %v781 = vsub.f32 %v779, %v780
        %v782 = vand.u32 %v781, 4294901760
        %783 = vmatpush1.msra.mxu0 %v782
        %v784 = vand.u32 %v356, 4294901760
        %v785 = vsub.f32 %v356, %v784
        %v786 = vand.u32 %v785, 4294901760
        %v787 = vsub.f32 %v785, %v786
        %v788 = vand.u32 %v787, 4294901760
        %789 = vmatprep.subr.mxu0 %v788
        %v790 = vand.u32 %v355, 4294901760
        %v791 = vsub.f32 %v355, %v790
        %v792 = vand.u32 %v791, 4294901760
        %v793 = vsub.f32 %v791, %v792
        %v794 = vand.u32 %v793, 4294901760
        %795 = vmatpush1.msra.mxu0 %v794
        %v796 = vand.u32 %v358, 4294901760
        %v797 = vsub.f32 %v358, %v796
        %v798 = vand.u32 %v797, 4294901760
        %v799 = vsub.f32 %v797, %v798
        %v800 = vand.u32 %v799, 4294901760
        %801 = vmatprep.subr.mxu0 %v800
        %v802 = vand.u32 %v357, 4294901760
        %v803 = vsub.f32 %v357, %v802
        %v804 = vand.u32 %v803, 4294901760
        %v805 = vsub.f32 %v803, %v804
        %v806 = vand.u32 %v805, 4294901760
        %807 = vmatpush1.msra.mxu0 %v806
        %v808 = vand.u32 %v360, 4294901760
        %v809 = vsub.f32 %v360, %v808
        %v810 = vand.u32 %v809, 4294901760
        %v811 = vsub.f32 %v809, %v810
        %v812 = vand.u32 %v811, 4294901760
        %813 = vmatprep.subr.mxu0 %v812
        %v814 = vand.u32 %v359, 4294901760
        %v815 = vsub.f32 %v359, %v814
        %v816 = vand.u32 %v815, 4294901760
        %v817 = vsub.f32 %v815, %v816
        %v818 = vand.u32 %v817, 4294901760
        %819 = vmatpush1.msra.mxu0 %v818
        %v820 = vand.u32 %v362, 4294901760
        %v821 = vsub.f32 %v362, %v820
        %v822 = vand.u32 %v821, 4294901760
        %v823 = vsub.f32 %v821, %v822
        %v824 = vand.u32 %v823, 4294901760
        %825 = vmatprep.subr.mxu0 %v824
        %v826 = vand.u32 %v361, 4294901760
        %v827 = vsub.f32 %v361, %v826
        %v828 = vand.u32 %v827, 4294901760
        %v829 = vsub.f32 %v827, %v828
        %v830 = vand.u32 %v829, 4294901760
        %831 = vmatpush1.msra.mxu0 %v830
        %v832 = vand.u32 %v364, 4294901760
        %v833 = vsub.f32 %v364, %v832
        %v834 = vand.u32 %v833, 4294901760
        %v835 = vsub.f32 %v833, %v834
        %v836 = vand.u32 %v835, 4294901760
        %837 = vmatprep.subr.mxu0 %v836
        %v838 = vand.u32 %v363, 4294901760
        %v839 = vsub.f32 %v363, %v838
        %v840 = vand.u32 %v839, 4294901760
        %v841 = vsub.f32 %v839, %v840
        %v842 = vand.u32 %v841, 4294901760
        %843 = vmatpush1.msra.mxu0 %v842
        %v844 = vand.u32 %v366, 4294901760
        %v845 = vsub.f32 %v366, %v844
        %v846 = vand.u32 %v845, 4294901760
        %v847 = vsub.f32 %v845, %v846
        %v848 = vand.u32 %v847, 4294901760
        %849 = vmatprep.subr.mxu0 %v848
        %v850 = vand.u32 %v365, 4294901760
        %v851 = vsub.f32 %v365, %v850
        %v852 = vand.u32 %v851, 4294901760
        %v853 = vsub.f32 %v851, %v852
        %v854 = vand.u32 %v853, 4294901760
        %855 = vmatpush1.msra.mxu0 %v854
        %v856 = vand.u32 %v368, 4294901760
        %v857 = vsub.f32 %v368, %v856
        %v858 = vand.u32 %v857, 4294901760
        %v859 = vsub.f32 %v857, %v858
        %v860 = vand.u32 %v859, 4294901760
        %861 = vmatprep.subr.mxu0 %v860
        %v862 = vand.u32 %v367, 4294901760
        %v863 = vsub.f32 %v367, %v862
        %v864 = vand.u32 %v863, 4294901760
        %v865 = vsub.f32 %v863, %v864
        %v866 = vand.u32 %v865, 4294901760
        %867 = vmatpush1.msra.mxu0 %v866
        %v868 = vand.u32 %v370, 4294901760
        %v869 = vsub.f32 %v370, %v868
        %v870 = vand.u32 %v869, 4294901760
        %v871 = vsub.f32 %v869, %v870
        %v872 = vand.u32 %v871, 4294901760
        %873 = vmatprep.subr.mxu0 %v872
        %v874 = vand.u32 %v369, 4294901760
        %v875 = vsub.f32 %v369, %v874
        %v876 = vand.u32 %v875, 4294901760
        %v877 = vsub.f32 %v875, %v876
        %v878 = vand.u32 %v877, 4294901760
        %879 = vmatpush1.msra.mxu0 %v878
        %v880 = vand.u32 %v372, 4294901760
        %v881 = vsub.f32 %v372, %v880
        %v882 = vand.u32 %v881, 4294901760
        %v883 = vsub.f32 %v881, %v882
        %v884 = vand.u32 %v883, 4294901760
        %885 = vmatprep.subr.mxu0 %v884
        %v886 = vand.u32 %v371, 4294901760
        %v887 = vsub.f32 %v371, %v886
        %v888 = vand.u32 %v887, 4294901760
        %v889 = vsub.f32 %v887, %v888
        %v890 = vand.u32 %v889, 4294901760
        %891 = vmatpush1.msra.mxu0 %v890
        %v892 = vand.u32 %v374, 4294901760
        %v893 = vsub.f32 %v374, %v892
        %v894 = vand.u32 %v893, 4294901760
        %v895 = vsub.f32 %v893, %v894
        %v896 = vand.u32 %v895, 4294901760
        %897 = vmatprep.subr.mxu0 %v896
        %v898 = vand.u32 %v373, 4294901760
        %v899 = vsub.f32 %v373, %v898
        %v900 = vand.u32 %v899, 4294901760
        %v901 = vsub.f32 %v899, %v900
        %v902 = vand.u32 %v901, 4294901760
        %903 = vmatpush1.msra.mxu0 %v902
        %v904 = vand.u32 %v246, 4294901760
        %905 = vmatprep.mubr.f32.mxu0 %v904
        %v906 = vand.u32 %v239, 4294901760
        %907 = vmatmul.mubr.f32.gmra.mrb[0].mxu0 %v906
        %v908 = vpop.f32.mrb[0].mxu0
        %v909 = vadd.f32 %v516, %v908
        %v910 = vpop.f32.mrb[0].mxu0
        %v911 = vadd.f32 %v518, %v910
        %912 = vdwg.mxu0
        %v913 = vand.u32 %v312, 4294901760
        %v914 = vsub.f32 %v312, %v913
        %915 = vmatprep.subr.mxu0 %v914
        %v916 = vand.u32 %v311, 4294901760
        %v917 = vsub.f32 %v311, %v916
        %918 = vmatpush1.msra.mxu0 %v917
        %v919 = vand.u32 %v314, 4294901760
        %v920 = vsub.f32 %v314, %v919
        %921 = vmatprep.subr.mxu0 %v920
        %v922 = vand.u32 %v313, 4294901760
        %v923 = vsub.f32 %v313, %v922
        %924 = vmatpush1.msra.mxu0 %v923
        %v925 = vand.u32 %v316, 4294901760
        %v926 = vsub.f32 %v316, %v925
        %927 = vmatprep.subr.mxu0 %v926
        %v928 = vand.u32 %v315, 4294901760
        %v929 = vsub.f32 %v315, %v928
        %930 = vmatpush1.msra.mxu0 %v929
        %v931 = vand.u32 %v318, 4294901760
        %v932 = vsub.f32 %v318, %v931
        %933 = vmatprep.subr.mxu0 %v932
        %v934 = vand.u32 %v317, 4294901760
        %v935 = vsub.f32 %v317, %v934
        %936 = vmatpush1.msra.mxu0 %v935
        %v937 = vand.u32 %v320, 4294901760
        %v938 = vsub.f32 %v320, %v937
        %939 = vmatprep.subr.mxu0 %v938
        %v940 = vand.u32 %v319, 4294901760
        %v941 = vsub.f32 %v319, %v940
        %942 = vmatpush1.msra.mxu0 %v941
        %v943 = vand.u32 %v322, 4294901760
        %v944 = vsub.f32 %v322, %v943
        %945 = vmatprep.subr.mxu0 %v944
        %v946 = vand.u32 %v321, 4294901760
        %v947 = vsub.f32 %v321, %v946
        %948 = vmatpush1.msra.mxu0 %v947
        %v949 = vand.u32 %v324, 4294901760
        %v950 = vsub.f32 %v324, %v949
        %951 = vmatprep.subr.mxu0 %v950
        %v952 = vand.u32 %v323, 4294901760
        %v953 = vsub.f32 %v323, %v952
        %954 = vmatpush1.msra.mxu0 %v953
        %v955 = vand.u32 %v326, 4294901760
        %v956 = vsub.f32 %v326, %v955
        %957 = vmatprep.subr.mxu0 %v956
        %v958 = vand.u32 %v325, 4294901760
        %v959 = vsub.f32 %v325, %v958
        %960 = vmatpush1.msra.mxu0 %v959
        %v961 = vand.u32 %v328, 4294901760
        %v962 = vsub.f32 %v328, %v961
        %963 = vmatprep.subr.mxu0 %v962
        %v964 = vand.u32 %v327, 4294901760
        %v965 = vsub.f32 %v327, %v964
        %966 = vmatpush1.msra.mxu0 %v965
        %v967 = vand.u32 %v330, 4294901760
        %v968 = vsub.f32 %v330, %v967
        %969 = vmatprep.subr.mxu0 %v968
        %v970 = vand.u32 %v329, 4294901760
        %v971 = vsub.f32 %v329, %v970
        %972 = vmatpush1.msra.mxu0 %v971
        %v973 = vand.u32 %v332, 4294901760
        %v974 = vsub.f32 %v332, %v973
        %975 = vmatprep.subr.mxu0 %v974
        %v976 = vand.u32 %v331, 4294901760
        %v977 = vsub.f32 %v331, %v976
        %978 = vmatpush1.msra.mxu0 %v977
        %v979 = vand.u32 %v334, 4294901760
        %v980 = vsub.f32 %v334, %v979
        %981 = vmatprep.subr.mxu0 %v980
        %v982 = vand.u32 %v333, 4294901760
        %v983 = vsub.f32 %v333, %v982
        %984 = vmatpush1.msra.mxu0 %v983
        %v985 = vand.u32 %v336, 4294901760
        %v986 = vsub.f32 %v336, %v985
        %987 = vmatprep.subr.mxu0 %v986
        %v988 = vand.u32 %v335, 4294901760
        %v989 = vsub.f32 %v335, %v988
        %990 = vmatpush1.msra.mxu0 %v989
        %v991 = vand.u32 %v338, 4294901760
        %v992 = vsub.f32 %v338, %v991
        %993 = vmatprep.subr.mxu0 %v992
        %v994 = vand.u32 %v337, 4294901760
        %v995 = vsub.f32 %v337, %v994
        %996 = vmatpush1.msra.mxu0 %v995
        %v997 = vand.u32 %v340, 4294901760
        %v998 = vsub.f32 %v340, %v997
        %999 = vmatprep.subr.mxu0 %v998
        %v1000 = vand.u32 %v339, 4294901760
        %v1001 = vsub.f32 %v339, %v1000
        %1002 = vmatpush1.msra.mxu0 %v1001
        %v1003 = vand.u32 %v342, 4294901760
        %v1004 = vsub.f32 %v342, %v1003
        %1005 = vmatprep.subr.mxu0 %v1004
        %v1006 = vand.u32 %v341, 4294901760
        %v1007 = vsub.f32 %v341, %v1006
        %1008 = vmatpush1.msra.mxu0 %v1007
        %v1009 = vand.u32 %v344, 4294901760
        %v1010 = vsub.f32 %v344, %v1009
        %1011 = vmatprep.subr.mxu0 %v1010
        %v1012 = vand.u32 %v343, 4294901760
        %v1013 = vsub.f32 %v343, %v1012
        %1014 = vmatpush1.msra.mxu0 %v1013
        %v1015 = vand.u32 %v346, 4294901760
        %v1016 = vsub.f32 %v346, %v1015
        %1017 = vmatprep.subr.mxu0 %v1016
        %v1018 = vand.u32 %v345, 4294901760
        %v1019 = vsub.f32 %v345, %v1018
        %1020 = vmatpush1.msra.mxu0 %v1019
        %v1021 = vand.u32 %v348, 4294901760
        %v1022 = vsub.f32 %v348, %v1021
        %1023 = vmatprep.subr.mxu0 %v1022
        %v1024 = vand.u32 %v347, 4294901760
        %v1025 = vsub.f32 %v347, %v1024
        %1026 = vmatpush1.msra.mxu0 %v1025
        %v1027 = vand.u32 %v350, 4294901760
        %v1028 = vsub.f32 %v350, %v1027
        %1029 = vmatprep.subr.mxu0 %v1028
        %v1030 = vand.u32 %v349, 4294901760
        %v1031 = vsub.f32 %v349, %v1030
        %1032 = vmatpush1.msra.mxu0 %v1031
        %v1033 = vand.u32 %v352, 4294901760
        %v1034 = vsub.f32 %v352, %v1033
        %1035 = vmatprep.subr.mxu0 %v1034
        %v1036 = vand.u32 %v351, 4294901760
        %v1037 = vsub.f32 %v351, %v1036
        %1038 = vmatpush1.msra.mxu0 %v1037
        %v1039 = vand.u32 %v354, 4294901760
        %v1040 = vsub.f32 %v354, %v1039
        %1041 = vmatprep.subr.mxu0 %v1040
        %v1042 = vand.u32 %v353, 4294901760
        %v1043 = vsub.f32 %v353, %v1042
        %1044 = vmatpush1.msra.mxu0 %v1043
        %v1045 = vand.u32 %v356, 4294901760
        %v1046 = vsub.f32 %v356, %v1045
        %1047 = vmatprep.subr.mxu0 %v1046
        %v1048 = vand.u32 %v355, 4294901760
        %v1049 = vsub.f32 %v355, %v1048
        %1050 = vmatpush1.msra.mxu0 %v1049
        %v1051 = vand.u32 %v358, 4294901760
        %v1052 = vsub.f32 %v358, %v1051
        %1053 = vmatprep.subr.mxu0 %v1052
        %v1054 = vand.u32 %v357, 4294901760
        %v1055 = vsub.f32 %v357, %v1054
        %1056 = vmatpush1.msra.mxu0 %v1055
        %v1057 = vand.u32 %v360, 4294901760
        %v1058 = vsub.f32 %v360, %v1057
        %1059 = vmatprep.subr.mxu0 %v1058
        %v1060 = vand.u32 %v359, 4294901760
        %v1061 = vsub.f32 %v359, %v1060
        %1062 = vmatpush1.msra.mxu0 %v1061
        %v1063 = vand.u32 %v362, 4294901760
        %v1064 = vsub.f32 %v362, %v1063
        %1065 = vmatprep.subr.mxu0 %v1064
        %v1066 = vand.u32 %v361, 4294901760
        %v1067 = vsub.f32 %v361, %v1066
        %1068 = vmatpush1.msra.mxu0 %v1067
        %v1069 = vand.u32 %v364, 4294901760
        %v1070 = vsub.f32 %v364, %v1069
        %1071 = vmatprep.subr.mxu0 %v1070
        %v1072 = vand.u32 %v363, 4294901760
        %v1073 = vsub.f32 %v363, %v1072
        %1074 = vmatpush1.msra.mxu0 %v1073
        %v1075 = vand.u32 %v366, 4294901760
        %v1076 = vsub.f32 %v366, %v1075
        %1077 = vmatprep.subr.mxu0 %v1076
        %v1078 = vand.u32 %v365, 4294901760
        %v1079 = vsub.f32 %v365, %v1078
        %1080 = vmatpush1.msra.mxu0 %v1079
        %v1081 = vand.u32 %v368, 4294901760
        %v1082 = vsub.f32 %v368, %v1081
        %1083 = vmatprep.subr.mxu0 %v1082
        %v1084 = vand.u32 %v367, 4294901760
        %v1085 = vsub.f32 %v367, %v1084
        %1086 = vmatpush1.msra.mxu0 %v1085
        %v1087 = vand.u32 %v370, 4294901760
        %v1088 = vsub.f32 %v370, %v1087
        %1089 = vmatprep.subr.mxu0 %v1088
        %v1090 = vand.u32 %v369, 4294901760
        %v1091 = vsub.f32 %v369, %v1090
        %1092 = vmatpush1.msra.mxu0 %v1091
        %v1093 = vand.u32 %v372, 4294901760
        %v1094 = vsub.f32 %v372, %v1093
        %1095 = vmatprep.subr.mxu0 %v1094
        %v1096 = vand.u32 %v371, 4294901760
        %v1097 = vsub.f32 %v371, %v1096
        %1098 = vmatpush1.msra.mxu0 %v1097
        %v1099 = vand.u32 %v374, 4294901760
        %v1100 = vsub.f32 %v374, %v1099
        %1101 = vmatprep.subr.mxu0 %v1100
        %v1102 = vand.u32 %v373, 4294901760
        %v1103 = vsub.f32 %v373, %v1102
        %1104 = vmatpush1.msra.mxu0 %v1103
        %v1105 = vand.u32 %v246, 4294901760
        %v1106 = vsub.f32 %v246, %v1105
        %1107 = vmatprep.mubr.f32.mxu0 %v1106
        %v1108 = vand.u32 %v239, 4294901760
        %v1109 = vsub.f32 %v239, %v1108
        %1110 = vmatmul.mubr.f32.gmra.mrb[0].mxu0 %v1109
        %v1111 = vpop.f32.mrb[0].mxu0
        %v1112 = vadd.f32 %v909, %v1111
        %v1113 = vpop.f32.mrb[0].mxu0
        %v1114 = vadd.f32 %v911, %v1113
        %1115 = vdwg.mxu0
        %v1116 = vand.u32 %v312, 4294901760
        %1117 = vmatprep.subr.mxu0 %v1116
        %v1118 = vand.u32 %v311, 4294901760
        %1119 = vmatpush1.msra.mxu0 %v1118
        %v1120 = vand.u32 %v314, 4294901760
        %1121 = vmatprep.subr.mxu0 %v1120
        %v1122 = vand.u32 %v313, 4294901760
        %1123 = vmatpush1.msra.mxu0 %v1122
        %v1124 = vand.u32 %v316, 4294901760
        %1125 = vmatprep.subr.mxu0 %v1124
        %v1126 = vand.u32 %v315, 4294901760
        %1127 = vmatpush1.msra.mxu0 %v1126
        %v1128 = vand.u32 %v318, 4294901760
        %1129 = vmatprep.subr.mxu0 %v1128
        %v1130 = vand.u32 %v317, 4294901760
        %1131 = vmatpush1.msra.mxu0 %v1130
        %v1132 = vand.u32 %v320, 4294901760
        %1133 = vmatprep.subr.mxu0 %v1132
        %v1134 = vand.u32 %v319, 4294901760
        %1135 = vmatpush1.msra.mxu0 %v1134
        %v1136 = vand.u32 %v322, 4294901760
        %1137 = vmatprep.subr.mxu0 %v1136
        %v1138 = vand.u32 %v321, 4294901760
        %1139 = vmatpush1.msra.mxu0 %v1138
        %v1140 = vand.u32 %v324, 4294901760
        %1141 = vmatprep.subr.mxu0 %v1140
        %v1142 = vand.u32 %v323, 4294901760
        %1143 = vmatpush1.msra.mxu0 %v1142
        %v1144 = vand.u32 %v326, 4294901760
        %1145 = vmatprep.subr.mxu0 %v1144
        %v1146 = vand.u32 %v325, 4294901760
        %1147 = vmatpush1.msra.mxu0 %v1146
        %v1148 = vand.u32 %v328, 4294901760
        %1149 = vmatprep.subr.mxu0 %v1148
        %v1150 = vand.u32 %v327, 4294901760
        %1151 = vmatpush1.msra.mxu0 %v1150
        %v1152 = vand.u32 %v330, 4294901760
        %1153 = vmatprep.subr.mxu0 %v1152
        %v1154 = vand.u32 %v329, 4294901760
        %1155 = vmatpush1.msra.mxu0 %v1154
        %v1156 = vand.u32 %v332, 4294901760
        %1157 = vmatprep.subr.mxu0 %v1156
        %v1158 = vand.u32 %v331, 4294901760
        %1159 = vmatpush1.msra.mxu0 %v1158
        %v1160 = vand.u32 %v334, 4294901760
        %1161 = vmatprep.subr.mxu0 %v1160
        %v1162 = vand.u32 %v333, 4294901760
        %1163 = vmatpush1.msra.mxu0 %v1162
        %v1164 = vand.u32 %v336, 4294901760
        %1165 = vmatprep.subr.mxu0 %v1164
        %v1166 = vand.u32 %v335, 4294901760
        %1167 = vmatpush1.msra.mxu0 %v1166
        %v1168 = vand.u32 %v338, 4294901760
        %1169 = vmatprep.subr.mxu0 %v1168
        %v1170 = vand.u32 %v337, 4294901760
        %1171 = vmatpush1.msra.mxu0 %v1170
        %v1172 = vand.u32 %v340, 4294901760
        %1173 = vmatprep.subr.mxu0 %v1172
        %v1174 = vand.u32 %v339, 4294901760
        %1175 = vmatpush1.msra.mxu0 %v1174
        %v1176 = vand.u32 %v342, 4294901760
        %1177 = vmatprep.subr.mxu0 %v1176
        %v1178 = vand.u32 %v341, 4294901760
        %1179 = vmatpush1.msra.mxu0 %v1178
        %v1180 = vand.u32 %v344, 4294901760
        %1181 = vmatprep.subr.mxu0 %v1180
        %v1182 = vand.u32 %v343, 4294901760
        %1183 = vmatpush1.msra.mxu0 %v1182
        %v1184 = vand.u32 %v346, 4294901760
        %1185 = vmatprep.subr.mxu0 %v1184
        %v1186 = vand.u32 %v345, 4294901760
        %1187 = vmatpush1.msra.mxu0 %v1186
        %v1188 = vand.u32 %v348, 4294901760
        %1189 = vmatprep.subr.mxu0 %v1188
        %v1190 = vand.u32 %v347, 4294901760
        %1191 = vmatpush1.msra.mxu0 %v1190
        %v1192 = vand.u32 %v350, 4294901760
        %1193 = vmatprep.subr.mxu0 %v1192
        %v1194 = vand.u32 %v349, 4294901760
        %1195 = vmatpush1.msra.mxu0 %v1194
        %v1196 = vand.u32 %v352, 4294901760
        %1197 = vmatprep.subr.mxu0 %v1196
        %v1198 = vand.u32 %v351, 4294901760
        %1199 = vmatpush1.msra.mxu0 %v1198
        %v1200 = vand.u32 %v354, 4294901760
        %1201 = vmatprep.subr.mxu0 %v1200
        %v1202 = vand.u32 %v353, 4294901760
        %1203 = vmatpush1.msra.mxu0 %v1202
        %v1204 = vand.u32 %v356, 4294901760
        %1205 = vmatprep.subr.mxu0 %v1204
        %v1206 = vand.u32 %v355, 4294901760
        %1207 = vmatpush1.msra.mxu0 %v1206
        %v1208 = vand.u32 %v358, 4294901760
        %1209 = vmatprep.subr.mxu0 %v1208
        %v1210 = vand.u32 %v357, 4294901760
        %1211 = vmatpush1.msra.mxu0 %v1210
        %v1212 = vand.u32 %v360, 4294901760
        %1213 = vmatprep.subr.mxu0 %v1212
        %v1214 = vand.u32 %v359, 4294901760
        %1215 = vmatpush1.msra.mxu0 %v1214
        %v1216 = vand.u32 %v362, 4294901760
        %1217 = vmatprep.subr.mxu0 %v1216
        %v1218 = vand.u32 %v361, 4294901760
        %1219 = vmatpush1.msra.mxu0 %v1218
        %v1220 = vand.u32 %v364, 4294901760
        %1221 = vmatprep.subr.mxu0 %v1220
        %v1222 = vand.u32 %v363, 4294901760
        %1223 = vmatpush1.msra.mxu0 %v1222
        %v1224 = vand.u32 %v366, 4294901760
        %1225 = vmatprep.subr.mxu0 %v1224
        %v1226 = vand.u32 %v365, 4294901760
        %1227 = vmatpush1.msra.mxu0 %v1226
        %v1228 = vand.u32 %v368, 4294901760
        %1229 = vmatprep.subr.mxu0 %v1228
        %v1230 = vand.u32 %v367, 4294901760
        %1231 = vmatpush1.msra.mxu0 %v1230
        %v1232 = vand.u32 %v370, 4294901760
        %1233 = vmatprep.subr.mxu0 %v1232
        %v1234 = vand.u32 %v369, 4294901760
        %1235 = vmatpush1.msra.mxu0 %v1234
        %v1236 = vand.u32 %v372, 4294901760
        %1237 = vmatprep.subr.mxu0 %v1236
        %v1238 = vand.u32 %v371, 4294901760
        %1239 = vmatpush1.msra.mxu0 %v1238
        %v1240 = vand.u32 %v374, 4294901760
        %1241 = vmatprep.subr.mxu0 %v1240
        %v1242 = vand.u32 %v373, 4294901760
        %1243 = vmatpush1.msra.mxu0 %v1242
        %v1244 = vand.u32 %v246, 4294901760
        %v1245 = vsub.f32 %v246, %v1244
        %v1246 = vand.u32 %v1245, 4294901760
        %1247 = vmatprep.mubr.f32.mxu0 %v1246
        %v1248 = vand.u32 %v239, 4294901760
        %v1249 = vsub.f32 %v239, %v1248
        %v1250 = vand.u32 %v1249, 4294901760
        %1251 = vmatmul.mubr.f32.gmra.mrb[0].mxu0 %v1250
        %v1252 = vpop.f32.mrb[0].mxu0
        %v1253 = vadd.f32 %v1112, %v1252
        %v1254 = vpop.f32.mrb[0].mxu0
        %v1255 = vadd.f32 %v1114, %v1254
        %1256 = vdwg.mxu0
        %v1257 = vand.u32 %v312, 4294901760
        %v1258 = vsub.f32 %v312, %v1257
        %v1259 = vand.u32 %v1258, 4294901760
        %1260 = vmatprep.subr.mxu0 %v1259
        %v1261 = vand.u32 %v311, 4294901760
        %v1262 = vsub.f32 %v311, %v1261
        %v1263 = vand.u32 %v1262, 4294901760
        %1264 = vmatpush1.msra.mxu0 %v1263
        %v1265 = vand.u32 %v314, 4294901760
        %v1266 = vsub.f32 %v314, %v1265
        %v1267 = vand.u32 %v1266, 4294901760
        %1268 = vmatprep.subr.mxu0 %v1267
        %v1269 = vand.u32 %v313, 4294901760
        %v1270 = vsub.f32 %v313, %v1269
        %v1271 = vand.u32 %v1270, 4294901760
        %1272 = vmatpush1.msra.mxu0 %v1271
        %v1273 = vand.u32 %v316, 4294901760
        %v1274 = vsub.f32 %v316, %v1273
        %v1275 = vand.u32 %v1274, 4294901760
        %1276 = vmatprep.subr.mxu0 %v1275
        %v1277 = vand.u32 %v315, 4294901760
        %v1278 = vsub.f32 %v315, %v1277
        %v1279 = vand.u32 %v1278, 4294901760
        %1280 = vmatpush1.msra.mxu0 %v1279
        %v1281 = vand.u32 %v318, 4294901760
        %v1282 = vsub.f32 %v318, %v1281
        %v1283 = vand.u32 %v1282, 4294901760
        %1284 = vmatprep.subr.mxu0 %v1283
        %v1285 = vand.u32 %v317, 4294901760
        %v1286 = vsub.f32 %v317, %v1285
        %v1287 = vand.u32 %v1286, 4294901760
        %1288 = vmatpush1.msra.mxu0 %v1287
        %v1289 = vand.u32 %v320, 4294901760
        %v1290 = vsub.f32 %v320, %v1289
        %v1291 = vand.u32 %v1290, 4294901760
        %1292 = vmatprep.subr.mxu0 %v1291
        %v1293 = vand.u32 %v319, 4294901760
        %v1294 = vsub.f32 %v319, %v1293
        %v1295 = vand.u32 %v1294, 4294901760
        %1296 = vmatpush1.msra.mxu0 %v1295
        %v1297 = vand.u32 %v322, 4294901760
        %v1298 = vsub.f32 %v322, %v1297
        %v1299 = vand.u32 %v1298, 4294901760
        %1300 = vmatprep.subr.mxu0 %v1299
        %v1301 = vand.u32 %v321, 4294901760
        %v1302 = vsub.f32 %v321, %v1301
        %v1303 = vand.u32 %v1302, 4294901760
        %1304 = vmatpush1.msra.mxu0 %v1303
        %v1305 = vand.u32 %v324, 4294901760
        %v1306 = vsub.f32 %v324, %v1305
        %v1307 = vand.u32 %v1306, 4294901760
        %1308 = vmatprep.subr.mxu0 %v1307
        %v1309 = vand.u32 %v323, 4294901760
        %v1310 = vsub.f32 %v323, %v1309
        %v1311 = vand.u32 %v1310, 4294901760
        %1312 = vmatpush1.msra.mxu0 %v1311
        %v1313 = vand.u32 %v326, 4294901760
        %v1314 = vsub.f32 %v326, %v1313
        %v1315 = vand.u32 %v1314, 4294901760
        %1316 = vmatprep.subr.mxu0 %v1315
        %v1317 = vand.u32 %v325, 4294901760
        %v1318 = vsub.f32 %v325, %v1317
        %v1319 = vand.u32 %v1318, 4294901760
        %1320 = vmatpush1.msra.mxu0 %v1319
        %v1321 = vand.u32 %v328, 4294901760
        %v1322 = vsub.f32 %v328, %v1321
        %v1323 = vand.u32 %v1322, 4294901760
        %1324 = vmatprep.subr.mxu0 %v1323
        %v1325 = vand.u32 %v327, 4294901760
        %v1326 = vsub.f32 %v327, %v1325
        %v1327 = vand.u32 %v1326, 4294901760
        %1328 = vmatpush1.msra.mxu0 %v1327
        %v1329 = vand.u32 %v330, 4294901760
        %v1330 = vsub.f32 %v330, %v1329
        %v1331 = vand.u32 %v1330, 4294901760
        %1332 = vmatprep.subr.mxu0 %v1331
        %v1333 = vand.u32 %v329, 4294901760
        %v1334 = vsub.f32 %v329, %v1333
        %v1335 = vand.u32 %v1334, 4294901760
        %1336 = vmatpush1.msra.mxu0 %v1335
        %v1337 = vand.u32 %v332, 4294901760
        %v1338 = vsub.f32 %v332, %v1337
        %v1339 = vand.u32 %v1338, 4294901760
        %1340 = vmatprep.subr.mxu0 %v1339
        %v1341 = vand.u32 %v331, 4294901760
        %v1342 = vsub.f32 %v331, %v1341
        %v1343 = vand.u32 %v1342, 4294901760
        %1344 = vmatpush1.msra.mxu0 %v1343
        %v1345 = vand.u32 %v334, 4294901760
        %v1346 = vsub.f32 %v334, %v1345
        %v1347 = vand.u32 %v1346, 4294901760
        %1348 = vmatprep.subr.mxu0 %v1347
        %v1349 = vand.u32 %v333, 4294901760
        %v1350 = vsub.f32 %v333, %v1349
        %v1351 = vand.u32 %v1350, 4294901760
        %1352 = vmatpush1.msra.mxu0 %v1351
        %v1353 = vand.u32 %v336, 4294901760
        %v1354 = vsub.f32 %v336, %v1353
        %v1355 = vand.u32 %v1354, 4294901760
        %1356 = vmatprep.subr.mxu0 %v1355
        %v1357 = vand.u32 %v335, 4294901760
        %v1358 = vsub.f32 %v335, %v1357
        %v1359 = vand.u32 %v1358, 4294901760
        %1360 = vmatpush1.msra.mxu0 %v1359
        %v1361 = vand.u32 %v338, 4294901760
        %v1362 = vsub.f32 %v338, %v1361
        %v1363 = vand.u32 %v1362, 4294901760
        %1364 = vmatprep.subr.mxu0 %v1363
        %v1365 = vand.u32 %v337, 4294901760
        %v1366 = vsub.f32 %v337, %v1365
        %v1367 = vand.u32 %v1366, 4294901760
        %1368 = vmatpush1.msra.mxu0 %v1367
        %v1369 = vand.u32 %v340, 4294901760
        %v1370 = vsub.f32 %v340, %v1369
        %v1371 = vand.u32 %v1370, 4294901760
        %1372 = vmatprep.subr.mxu0 %v1371
        %v1373 = vand.u32 %v339, 4294901760
        %v1374 = vsub.f32 %v339, %v1373
        %v1375 = vand.u32 %v1374, 4294901760
        %1376 = vmatpush1.msra.mxu0 %v1375
        %v1377 = vand.u32 %v342, 4294901760
        %v1378 = vsub.f32 %v342, %v1377
        %v1379 = vand.u32 %v1378, 4294901760
        %1380 = vmatprep.subr.mxu0 %v1379
        %v1381 = vand.u32 %v341, 4294901760
        %v1382 = vsub.f32 %v341, %v1381
        %v1383 = vand.u32 %v1382, 4294901760
        %1384 = vmatpush1.msra.mxu0 %v1383
        %v1385 = vand.u32 %v344, 4294901760
        %v1386 = vsub.f32 %v344, %v1385
        %v1387 = vand.u32 %v1386, 4294901760
        %1388 = vmatprep.subr.mxu0 %v1387
        %v1389 = vand.u32 %v343, 4294901760
        %v1390 = vsub.f32 %v343, %v1389
        %v1391 = vand.u32 %v1390, 4294901760
        %1392 = vmatpush1.msra.mxu0 %v1391
        %v1393 = vand.u32 %v346, 4294901760
        %v1394 = vsub.f32 %v346, %v1393
        %v1395 = vand.u32 %v1394, 4294901760
        %1396 = vmatprep.subr.mxu0 %v1395
        %v1397 = vand.u32 %v345, 4294901760
        %v1398 = vsub.f32 %v345, %v1397
        %v1399 = vand.u32 %v1398, 4294901760
        %1400 = vmatpush1.msra.mxu0 %v1399
        %v1401 = vand.u32 %v348, 4294901760
        %v1402 = vsub.f32 %v348, %v1401
        %v1403 = vand.u32 %v1402, 4294901760
        %1404 = vmatprep.subr.mxu0 %v1403
        %v1405 = vand.u32 %v347, 4294901760
        %v1406 = vsub.f32 %v347, %v1405
        %v1407 = vand.u32 %v1406, 4294901760
        %1408 = vmatpush1.msra.mxu0 %v1407
        %v1409 = vand.u32 %v350, 4294901760
        %v1410 = vsub.f32 %v350, %v1409
        %v1411 = vand.u32 %v1410, 4294901760
        %1412 = vmatprep.subr.mxu0 %v1411
        %v1413 = vand.u32 %v349, 4294901760
        %v1414 = vsub.f32 %v349, %v1413
        %v1415 = vand.u32 %v1414, 4294901760
        %1416 = vmatpush1.msra.mxu0 %v1415
        %v1417 = vand.u32 %v352, 4294901760
        %v1418 = vsub.f32 %v352, %v1417
        %v1419 = vand.u32 %v1418, 4294901760
        %1420 = vmatprep.subr.mxu0 %v1419
        %v1421 = vand.u32 %v351, 4294901760
        %v1422 = vsub.f32 %v351, %v1421
        %v1423 = vand.u32 %v1422, 4294901760
        %1424 = vmatpush1.msra.mxu0 %v1423
        %v1425 = vand.u32 %v354, 4294901760
        %v1426 = vsub.f32 %v354, %v1425
        %v1427 = vand.u32 %v1426, 4294901760
        %1428 = vmatprep.subr.mxu0 %v1427
        %v1429 = vand.u32 %v353, 4294901760
        %v1430 = vsub.f32 %v353, %v1429
        %v1431 = vand.u32 %v1430, 4294901760
        %1432 = vmatpush1.msra.mxu0 %v1431
        %v1433 = vand.u32 %v356, 4294901760
        %v1434 = vsub.f32 %v356, %v1433
        %v1435 = vand.u32 %v1434, 4294901760
        %1436 = vmatprep.subr.mxu0 %v1435
        %v1437 = vand.u32 %v355, 4294901760
        %v1438 = vsub.f32 %v355, %v1437
        %v1439 = vand.u32 %v1438, 4294901760
        %1440 = vmatpush1.msra.mxu0 %v1439
        %v1441 = vand.u32 %v358, 4294901760
        %v1442 = vsub.f32 %v358, %v1441
        %v1443 = vand.u32 %v1442, 4294901760
        %1444 = vmatprep.subr.mxu0 %v1443
        %v1445 = vand.u32 %v357, 4294901760
        %v1446 = vsub.f32 %v357, %v1445
        %v1447 = vand.u32 %v1446, 4294901760
        %1448 = vmatpush1.msra.mxu0 %v1447
        %v1449 = vand.u32 %v360, 4294901760
        %v1450 = vsub.f32 %v360, %v1449
        %v1451 = vand.u32 %v1450, 4294901760
        %1452 = vmatprep.subr.mxu0 %v1451
        %v1453 = vand.u32 %v359, 4294901760
        %v1454 = vsub.f32 %v359, %v1453
        %v1455 = vand.u32 %v1454, 4294901760
        %1456 = vmatpush1.msra.mxu0 %v1455
        %v1457 = vand.u32 %v362, 4294901760
        %v1458 = vsub.f32 %v362, %v1457
        %v1459 = vand.u32 %v1458, 4294901760
        %1460 = vmatprep.subr.mxu0 %v1459
        %v1461 = vand.u32 %v361, 4294901760
        %v1462 = vsub.f32 %v361, %v1461
        %v1463 = vand.u32 %v1462, 4294901760
        %1464 = vmatpush1.msra.mxu0 %v1463
        %v1465 = vand.u32 %v364, 4294901760
        %v1466 = vsub.f32 %v364, %v1465
        %v1467 = vand.u32 %v1466, 4294901760
        %1468 = vmatprep.subr.mxu0 %v1467
        %v1469 = vand.u32 %v363, 4294901760
        %v1470 = vsub.f32 %v363, %v1469
        %v1471 = vand.u32 %v1470, 4294901760
        %1472 = vmatpush1.msra.mxu0 %v1471
        %v1473 = vand.u32 %v366, 4294901760
        %v1474 = vsub.f32 %v366, %v1473
        %v1475 = vand.u32 %v1474, 4294901760
        %1476 = vmatprep.subr.mxu0 %v1475
        %v1477 = vand.u32 %v365, 4294901760
        %v1478 = vsub.f32 %v365, %v1477
        %v1479 = vand.u32 %v1478, 4294901760
        %1480 = vmatpush1.msra.mxu0 %v1479
        %v1481 = vand.u32 %v368, 4294901760
        %v1482 = vsub.f32 %v368, %v1481
        %v1483 = vand.u32 %v1482, 4294901760
        %1484 = vmatprep.subr.mxu0 %v1483
        %v1485 = vand.u32 %v367, 4294901760
        %v1486 = vsub.f32 %v367, %v1485
        %v1487 = vand.u32 %v1486, 4294901760
        %1488 = vmatpush1.msra.mxu0 %v1487
        %v1489 = vand.u32 %v370, 4294901760
        %v1490 = vsub.f32 %v370, %v1489
        %v1491 = vand.u32 %v1490, 4294901760
        %1492 = vmatprep.subr.mxu0 %v1491
        %v1493 = vand.u32 %v369, 4294901760
        %v1494 = vsub.f32 %v369, %v1493
        %v1495 = vand.u32 %v1494, 4294901760
        %1496 = vmatpush1.msra.mxu0 %v1495
        %v1497 = vand.u32 %v372, 4294901760
        %v1498 = vsub.f32 %v372, %v1497
        %v1499 = vand.u32 %v1498, 4294901760
        %1500 = vmatprep.subr.mxu0 %v1499
        %v1501 = vand.u32 %v371, 4294901760
        %v1502 = vsub.f32 %v371, %v1501
        %v1503 = vand.u32 %v1502, 4294901760
        %1504 = vmatpush1.msra.mxu0 %v1503
        %v1505 = vand.u32 %v374, 4294901760
        %v1506 = vsub.f32 %v374, %v1505
        %v1507 = vand.u32 %v1506, 4294901760
        %1508 = vmatprep.subr.mxu0 %v1507
        %v1509 = vand.u32 %v373, 4294901760
        %v1510 = vsub.f32 %v373, %v1509
        %v1511 = vand.u32 %v1510, 4294901760
        %1512 = vmatpush1.msra.mxu0 %v1511
        %v1513 = vand.u32 %v246, 4294901760
        %1514 = vmatprep.mubr.f32.mxu0 %v1513
        %v1515 = vand.u32 %v239, 4294901760
        %1516 = vmatmul.mubr.f32.gmra.mrb[0].mxu0 %v1515
        %v1517 = vpop.f32.mrb[0].mxu0
        %v1518 = vadd.f32 %v1253, %v1517
        %v1519 = vpop.f32.mrb[0].mxu0
        %v1520 = vadd.f32 %v1255, %v1519
        %1521 = vdwg.mxu0
        %v1522 = vand.u32 %v312, 4294901760
        %1523 = vmatprep.subr.mxu0 %v1522
        %v1524 = vand.u32 %v311, 4294901760
        %1525 = vmatpush1.msra.mxu0 %v1524
        %v1526 = vand.u32 %v314, 4294901760
        %1527 = vmatprep.subr.mxu0 %v1526
        %v1528 = vand.u32 %v313, 4294901760
        %1529 = vmatpush1.msra.mxu0 %v1528
        %v1530 = vand.u32 %v316, 4294901760
        %1531 = vmatprep.subr.mxu0 %v1530
        %v1532 = vand.u32 %v315, 4294901760
        %1533 = vmatpush1.msra.mxu0 %v1532
        %v1534 = vand.u32 %v318, 4294901760
        %1535 = vmatprep.subr.mxu0 %v1534
        %v1536 = vand.u32 %v317, 4294901760
        %1537 = vmatpush1.msra.mxu0 %v1536
        %v1538 = vand.u32 %v320, 4294901760
        %1539 = vmatprep.subr.mxu0 %v1538
        %v1540 = vand.u32 %v319, 4294901760
        %1541 = vmatpush1.msra.mxu0 %v1540
        %v1542 = vand.u32 %v322, 4294901760
        %1543 = vmatprep.subr.mxu0 %v1542
        %v1544 = vand.u32 %v321, 4294901760
        %1545 = vmatpush1.msra.mxu0 %v1544
        %v1546 = vand.u32 %v324, 4294901760
        %1547 = vmatprep.subr.mxu0 %v1546
        %v1548 = vand.u32 %v323, 4294901760
        %1549 = vmatpush1.msra.mxu0 %v1548
        %v1550 = vand.u32 %v326, 4294901760
        %1551 = vmatprep.subr.mxu0 %v1550
        %v1552 = vand.u32 %v325, 4294901760
        %1553 = vmatpush1.msra.mxu0 %v1552
        %v1554 = vand.u32 %v328, 4294901760
        %1555 = vmatprep.subr.mxu0 %v1554
        %v1556 = vand.u32 %v327, 4294901760
        %1557 = vmatpush1.msra.mxu0 %v1556
        %v1558 = vand.u32 %v330, 4294901760
        %1559 = vmatprep.subr.mxu0 %v1558
        %v1560 = vand.u32 %v329, 4294901760
        %1561 = vmatpush1.msra.mxu0 %v1560
        %v1562 = vand.u32 %v332, 4294901760
        %1563 = vmatprep.subr.mxu0 %v1562
        %v1564 = vand.u32 %v331, 4294901760
        %1565 = vmatpush1.msra.mxu0 %v1564
        %v1566 = vand.u32 %v334, 4294901760
        %1567 = vmatprep.subr.mxu0 %v1566
        %v1568 = vand.u32 %v333, 4294901760
        %1569 = vmatpush1.msra.mxu0 %v1568
        %v1570 = vand.u32 %v336, 4294901760
        %1571 = vmatprep.subr.mxu0 %v1570
        %v1572 = vand.u32 %v335, 4294901760
        %1573 = vmatpush1.msra.mxu0 %v1572
        %v1574 = vand.u32 %v338, 4294901760
        %1575 = vmatprep.subr.mxu0 %v1574
        %v1576 = vand.u32 %v337, 4294901760
        %1577 = vmatpush1.msra.mxu0 %v1576
        %v1578 = vand.u32 %v340, 4294901760
        %1579 = vmatprep.subr.mxu0 %v1578
        %v1580 = vand.u32 %v339, 4294901760
        %1581 = vmatpush1.msra.mxu0 %v1580
        %v1582 = vand.u32 %v342, 4294901760
        %1583 = vmatprep.subr.mxu0 %v1582
        %v1584 = vand.u32 %v341, 4294901760
        %1585 = vmatpush1.msra.mxu0 %v1584
        %v1586 = vand.u32 %v344, 4294901760
        %1587 = vmatprep.subr.mxu0 %v1586
        %v1588 = vand.u32 %v343, 4294901760
        %1589 = vmatpush1.msra.mxu0 %v1588
        %v1590 = vand.u32 %v346, 4294901760
        %1591 = vmatprep.subr.mxu0 %v1590
        %v1592 = vand.u32 %v345, 4294901760
        %1593 = vmatpush1.msra.mxu0 %v1592
        %v1594 = vand.u32 %v348, 4294901760
        %1595 = vmatprep.subr.mxu0 %v1594
        %v1596 = vand.u32 %v347, 4294901760
        %1597 = vmatpush1.msra.mxu0 %v1596
        %v1598 = vand.u32 %v350, 4294901760
        %1599 = vmatprep.subr.mxu0 %v1598
        %v1600 = vand.u32 %v349, 4294901760
        %1601 = vmatpush1.msra.mxu0 %v1600
        %v1602 = vand.u32 %v352, 4294901760
        %1603 = vmatprep.subr.mxu0 %v1602
        %v1604 = vand.u32 %v351, 4294901760
        %1605 = vmatpush1.msra.mxu0 %v1604
        %v1606 = vand.u32 %v354, 4294901760
        %1607 = vmatprep.subr.mxu0 %v1606
        %v1608 = vand.u32 %v353, 4294901760
        %1609 = vmatpush1.msra.mxu0 %v1608
        %v1610 = vand.u32 %v356, 4294901760
        %1611 = vmatprep.subr.mxu0 %v1610
        %v1612 = vand.u32 %v355, 4294901760
        %1613 = vmatpush1.msra.mxu0 %v1612
        %v1614 = vand.u32 %v358, 4294901760
        %1615 = vmatprep.subr.mxu0 %v1614
        %v1616 = vand.u32 %v357, 4294901760
        %1617 = vmatpush1.msra.mxu0 %v1616
        %v1618 = vand.u32 %v360, 4294901760
        %1619 = vmatprep.subr.mxu0 %v1618
        %v1620 = vand.u32 %v359, 4294901760
        %1621 = vmatpush1.msra.mxu0 %v1620
        %v1622 = vand.u32 %v362, 4294901760
        %1623 = vmatprep.subr.mxu0 %v1622
        %v1624 = vand.u32 %v361, 4294901760
        %1625 = vmatpush1.msra.mxu0 %v1624
        %v1626 = vand.u32 %v364, 4294901760
        %1627 = vmatprep.subr.mxu0 %v1626
        %v1628 = vand.u32 %v363, 4294901760
        %1629 = vmatpush1.msra.mxu0 %v1628
        %v1630 = vand.u32 %v366, 4294901760
        %1631 = vmatprep.subr.mxu0 %v1630
        %v1632 = vand.u32 %v365, 4294901760
        %1633 = vmatpush1.msra.mxu0 %v1632
        %v1634 = vand.u32 %v368, 4294901760
        %1635 = vmatprep.subr.mxu0 %v1634
        %v1636 = vand.u32 %v367, 4294901760
        %1637 = vmatpush1.msra.mxu0 %v1636
        %v1638 = vand.u32 %v370, 4294901760
        %1639 = vmatprep.subr.mxu0 %v1638
        %v1640 = vand.u32 %v369, 4294901760
        %1641 = vmatpush1.msra.mxu0 %v1640
        %v1642 = vand.u32 %v372, 4294901760
        %1643 = vmatprep.subr.mxu0 %v1642
        %v1644 = vand.u32 %v371, 4294901760
        %1645 = vmatpush1.msra.mxu0 %v1644
        %v1646 = vand.u32 %v374, 4294901760
        %1647 = vmatprep.subr.mxu0 %v1646
        %v1648 = vand.u32 %v373, 4294901760
        %1649 = vmatpush1.msra.mxu0 %v1648
        %v1650 = vand.u32 %v246, 4294901760
        %1651 = vmatprep.mubr.f32.mxu0 %v1650
        %v1652 = vand.u32 %v239, 4294901760
        %1653 = vmatmul.mubr.f32.gmra.mrb[0].mxu0 %v1652
        %v1654 = vpop.f32.mrb[0].mxu0
        %v1655 = vadd.f32 %v1518, %v1654
        %v1656 = vpop.f32.mrb[0].mxu0
        %v1657 = vadd.f32 %v1520, %v1656
        %1658 = vdwg.mxu0
        %v1659 = vand.u32 %v248, 4294901760
        %1660 = vmatprep.subr.mxu0 %v1659
        %v1661 = vand.u32 %v247, 4294901760
        %1662 = vmatpush1.msra.mxu0 %v1661
        %v1663 = vand.u32 %v250, 4294901760
        %1664 = vmatprep.subr.mxu0 %v1663
        %v1665 = vand.u32 %v249, 4294901760
        %1666 = vmatpush1.msra.mxu0 %v1665
        %v1667 = vand.u32 %v252, 4294901760
        %1668 = vmatprep.subr.mxu0 %v1667
        %v1669 = vand.u32 %v251, 4294901760
        %1670 = vmatpush1.msra.mxu0 %v1669
        %v1671 = vand.u32 %v254, 4294901760
        %1672 = vmatprep.subr.mxu0 %v1671
        %v1673 = vand.u32 %v253, 4294901760
        %1674 = vmatpush1.msra.mxu0 %v1673
        %v1675 = vand.u32 %v256, 4294901760
        %1676 = vmatprep.subr.mxu0 %v1675
        %v1677 = vand.u32 %v255, 4294901760
        %1678 = vmatpush1.msra.mxu0 %v1677
        %v1679 = vand.u32 %v258, 4294901760
        %1680 = vmatprep.subr.mxu0 %v1679
        %v1681 = vand.u32 %v257, 4294901760
        %1682 = vmatpush1.msra.mxu0 %v1681
        %v1683 = vand.u32 %v260, 4294901760
        %1684 = vmatprep.subr.mxu0 %v1683
        %v1685 = vand.u32 %v259, 4294901760
        %1686 = vmatpush1.msra.mxu0 %v1685
        %v1687 = vand.u32 %v262, 4294901760
        %1688 = vmatprep.subr.mxu0 %v1687
        %v1689 = vand.u32 %v261, 4294901760
        %1690 = vmatpush1.msra.mxu0 %v1689
        %v1691 = vand.u32 %v264, 4294901760
        %1692 = vmatprep.subr.mxu0 %v1691
        %v1693 = vand.u32 %v263, 4294901760
        %1694 = vmatpush1.msra.mxu0 %v1693
        %v1695 = vand.u32 %v266, 4294901760
        %1696 = vmatprep.subr.mxu0 %v1695
        %v1697 = vand.u32 %v265, 4294901760
        %1698 = vmatpush1.msra.mxu0 %v1697
        %v1699 = vand.u32 %v268, 4294901760
        %1700 = vmatprep.subr.mxu0 %v1699
        %v1701 = vand.u32 %v267, 4294901760
        %1702 = vmatpush1.msra.mxu0 %v1701
        %v1703 = vand.u32 %v270, 4294901760
        %1704 = vmatprep.subr.mxu0 %v1703
        %v1705 = vand.u32 %v269, 4294901760
        %1706 = vmatpush1.msra.mxu0 %v1705
        %v1707 = vand.u32 %v272, 4294901760
        %1708 = vmatprep.subr.mxu0 %v1707
        %v1709 = vand.u32 %v271, 4294901760
        %1710 = vmatpush1.msra.mxu0 %v1709
        %v1711 = vand.u32 %v274, 4294901760
        %1712 = vmatprep.subr.mxu0 %v1711
        %v1713 = vand.u32 %v273, 4294901760
        %1714 = vmatpush1.msra.mxu0 %v1713
        %v1715 = vand.u32 %v276, 4294901760
        %1716 = vmatprep.subr.mxu0 %v1715
        %v1717 = vand.u32 %v275, 4294901760
        %1718 = vmatpush1.msra.mxu0 %v1717
        %v1719 = vand.u32 %v278, 4294901760
        %1720 = vmatprep.subr.mxu0 %v1719
        %v1721 = vand.u32 %v277, 4294901760
        %1722 = vmatpush1.msra.mxu0 %v1721
        %v1723 = vand.u32 %v280, 4294901760
        %1724 = vmatprep.subr.mxu0 %v1723
        %v1725 = vand.u32 %v279, 4294901760
        %1726 = vmatpush1.msra.mxu0 %v1725
        %v1727 = vand.u32 %v282, 4294901760
        %1728 = vmatprep.subr.mxu0 %v1727
        %v1729 = vand.u32 %v281, 4294901760
        %1730 = vmatpush1.msra.mxu0 %v1729
        %v1731 = vand.u32 %v284, 4294901760
        %1732 = vmatprep.subr.mxu0 %v1731
        %v1733 = vand.u32 %v283, 4294901760
        %1734 = vmatpush1.msra.mxu0 %v1733
        %v1735 = vand.u32 %v286, 4294901760
        %1736 = vmatprep.subr.mxu0 %v1735
        %v1737 = vand.u32 %v285, 4294901760
        %1738 = vmatpush1.msra.mxu0 %v1737
        %v1739 = vand.u32 %v288, 4294901760
        %1740 = vmatprep.subr.mxu0 %v1739
        %v1741 = vand.u32 %v287, 4294901760
        %1742 = vmatpush1.msra.mxu0 %v1741
        %v1743 = vand.u32 %v290, 4294901760
        %1744 = vmatprep.subr.mxu0 %v1743
        %v1745 = vand.u32 %v289, 4294901760
        %1746 = vmatpush1.msra.mxu0 %v1745
        %v1747 = vand.u32 %v292, 4294901760
        %1748 = vmatprep.subr.mxu0 %v1747
        %v1749 = vand.u32 %v291, 4294901760
        %1750 = vmatpush1.msra.mxu0 %v1749
        %v1751 = vand.u32 %v294, 4294901760
        %1752 = vmatprep.subr.mxu0 %v1751
        %v1753 = vand.u32 %v293, 4294901760
        %1754 = vmatpush1.msra.mxu0 %v1753
        %v1755 = vand.u32 %v296, 4294901760
        %1756 = vmatprep.subr.mxu0 %v1755
        %v1757 = vand.u32 %v295, 4294901760
        %1758 = vmatpush1.msra.mxu0 %v1757
        %v1759 = vand.u32 %v298, 4294901760
        %1760 = vmatprep.subr.mxu0 %v1759
        %v1761 = vand.u32 %v297, 4294901760
        %1762 = vmatpush1.msra.mxu0 %v1761
        %v1763 = vand.u32 %v300, 4294901760
        %1764 = vmatprep.subr.mxu0 %v1763
        %v1765 = vand.u32 %v299, 4294901760
        %1766 = vmatpush1.msra.mxu0 %v1765
        %v1767 = vand.u32 %v302, 4294901760
        %1768 = vmatprep.subr.mxu0 %v1767
        %v1769 = vand.u32 %v301, 4294901760
        %1770 = vmatpush1.msra.mxu0 %v1769
        %v1771 = vand.u32 %v304, 4294901760
        %1772 = vmatprep.subr.mxu0 %v1771
        %v1773 = vand.u32 %v303, 4294901760
        %1774 = vmatpush1.msra.mxu0 %v1773
        %v1775 = vand.u32 %v306, 4294901760
        %1776 = vmatprep.subr.mxu0 %v1775
        %v1777 = vand.u32 %v305, 4294901760
        %1778 = vmatpush1.msra.mxu0 %v1777
        %v1779 = vand.u32 %v308, 4294901760
        %1780 = vmatprep.subr.mxu0 %v1779
        %v1781 = vand.u32 %v307, 4294901760
        %1782 = vmatpush1.msra.mxu0 %v1781
        %v1783 = vand.u32 %v310, 4294901760
        %1784 = vmatprep.subr.mxu0 %v1783
        %v1785 = vand.u32 %v309, 4294901760
        %1786 = vmatpush1.msra.mxu0 %v1785
        %v1787 = vand.u32 %v232, 4294901760
        %v1788 = vsub.f32 %v232, %v1787
        %v1789 = vand.u32 %v1788, 4294901760
        %v1790 = vsub.f32 %v1788, %v1789
        %v1791 = vand.u32 %v1790, 4294901760
        %1792 = vmatprep.mubr.f32.mxu0 %v1791
        %v1793 = vand.u32 %v225, 4294901760
        %v1794 = vsub.f32 %v225, %v1793
        %v1795 = vand.u32 %v1794, 4294901760
        %v1796 = vsub.f32 %v1794, %v1795
        %v1797 = vand.u32 %v1796, 4294901760
        %1798 = vmatmul.mubr.f32.gmra.mrb[0].mxu0 %v1797
        %v1799 = vpop.f32.mrb[0].mxu0
        %v1800 = vadd.f32 %v1655, %v1799
        %v1801 = vpop.f32.mrb[0].mxu0
        %v1802 = vadd.f32 %v1657, %v1801
        %1803 = vdwg.mxu0
        %v1804 = vand.u32 %v248, 4294901760
        %v1805 = vsub.f32 %v248, %v1804
        %v1806 = vand.u32 %v1805, 4294901760
        %v1807 = vsub.f32 %v1805, %v1806
        %v1808 = vand.u32 %v1807, 4294901760
        %1809 = vmatprep.subr.mxu0 %v1808
        %v1810 = vand.u32 %v247, 4294901760
        %v1811 = vsub.f32 %v247, %v1810
        %v1812 = vand.u32 %v1811, 4294901760
        %v1813 = vsub.f32 %v1811, %v1812
        %v1814 = vand.u32 %v1813, 4294901760
        %1815 = vmatpush1.msra.mxu0 %v1814
        %v1816 = vand.u32 %v250, 4294901760
        %v1817 = vsub.f32 %v250, %v1816
        %v1818 = vand.u32 %v1817, 4294901760
        %v1819 = vsub.f32 %v1817, %v1818
        %v1820 = vand.u32 %v1819, 4294901760
        %1821 = vmatprep.subr.mxu0 %v1820
        %v1822 = vand.u32 %v249, 4294901760
        %v1823 = vsub.f32 %v249, %v1822
        %v1824 = vand.u32 %v1823, 4294901760
        %v1825 = vsub.f32 %v1823, %v1824
        %v1826 = vand.u32 %v1825, 4294901760
        %1827 = vmatpush1.msra.mxu0 %v1826
        %v1828 = vand.u32 %v252, 4294901760
        %v1829 = vsub.f32 %v252, %v1828
        %v1830 = vand.u32 %v1829, 4294901760
        %v1831 = vsub.f32 %v1829, %v1830
        %v1832 = vand.u32 %v1831, 4294901760
        %1833 = vmatprep.subr.mxu0 %v1832
        %v1834 = vand.u32 %v251, 4294901760
        %v1835 = vsub.f32 %v251, %v1834
        %v1836 = vand.u32 %v1835, 4294901760
        %v1837 = vsub.f32 %v1835, %v1836
        %v1838 = vand.u32 %v1837, 4294901760
        %1839 = vmatpush1.msra.mxu0 %v1838
        %v1840 = vand.u32 %v254, 4294901760
        %v1841 = vsub.f32 %v254, %v1840
        %v1842 = vand.u32 %v1841, 4294901760
        %v1843 = vsub.f32 %v1841, %v1842
        %v1844 = vand.u32 %v1843, 4294901760
        %1845 = vmatprep.subr.mxu0 %v1844
        %v1846 = vand.u32 %v253, 4294901760
        %v1847 = vsub.f32 %v253, %v1846
        %v1848 = vand.u32 %v1847, 4294901760
        %v1849 = vsub.f32 %v1847, %v1848
        %v1850 = vand.u32 %v1849, 4294901760
        %1851 = vmatpush1.msra.mxu0 %v1850
        %v1852 = vand.u32 %v256, 4294901760
        %v1853 = vsub.f32 %v256, %v1852
        %v1854 = vand.u32 %v1853, 4294901760
        %v1855 = vsub.f32 %v1853, %v1854
        %v1856 = vand.u32 %v1855, 4294901760
        %1857 = vmatprep.subr.mxu0 %v1856
        %v1858 = vand.u32 %v255, 4294901760
        %v1859 = vsub.f32 %v255, %v1858
        %v1860 = vand.u32 %v1859, 4294901760
        %v1861 = vsub.f32 %v1859, %v1860
        %v1862 = vand.u32 %v1861, 4294901760
        %1863 = vmatpush1.msra.mxu0 %v1862
        %v1864 = vand.u32 %v258, 4294901760
        %v1865 = vsub.f32 %v258, %v1864
        %v1866 = vand.u32 %v1865, 4294901760
        %v1867 = vsub.f32 %v1865, %v1866
        %v1868 = vand.u32 %v1867, 4294901760
        %1869 = vmatprep.subr.mxu0 %v1868
        %v1870 = vand.u32 %v257, 4294901760
        %v1871 = vsub.f32 %v257, %v1870
        %v1872 = vand.u32 %v1871, 4294901760
        %v1873 = vsub.f32 %v1871, %v1872
        %v1874 = vand.u32 %v1873, 4294901760
        %1875 = vmatpush1.msra.mxu0 %v1874
        %v1876 = vand.u32 %v260, 4294901760
        %v1877 = vsub.f32 %v260, %v1876
        %v1878 = vand.u32 %v1877, 4294901760
        %v1879 = vsub.f32 %v1877, %v1878
        %v1880 = vand.u32 %v1879, 4294901760
        %1881 = vmatprep.subr.mxu0 %v1880
        %v1882 = vand.u32 %v259, 4294901760
        %v1883 = vsub.f32 %v259, %v1882
        %v1884 = vand.u32 %v1883, 4294901760
        %v1885 = vsub.f32 %v1883, %v1884
        %v1886 = vand.u32 %v1885, 4294901760
        %1887 = vmatpush1.msra.mxu0 %v1886
        %v1888 = vand.u32 %v262, 4294901760
        %v1889 = vsub.f32 %v262, %v1888
        %v1890 = vand.u32 %v1889, 4294901760
        %v1891 = vsub.f32 %v1889, %v1890
        %v1892 = vand.u32 %v1891, 4294901760
        %1893 = vmatprep.subr.mxu0 %v1892
        %v1894 = vand.u32 %v261, 4294901760
        %v1895 = vsub.f32 %v261, %v1894
        %v1896 = vand.u32 %v1895, 4294901760
        %v1897 = vsub.f32 %v1895, %v1896
        %v1898 = vand.u32 %v1897, 4294901760
        %1899 = vmatpush1.msra.mxu0 %v1898
        %v1900 = vand.u32 %v264, 4294901760
        %v1901 = vsub.f32 %v264, %v1900
        %v1902 = vand.u32 %v1901, 4294901760
        %v1903 = vsub.f32 %v1901, %v1902
        %v1904 = vand.u32 %v1903, 4294901760
        %1905 = vmatprep.subr.mxu0 %v1904
        %v1906 = vand.u32 %v263, 4294901760
        %v1907 = vsub.f32 %v263, %v1906
        %v1908 = vand.u32 %v1907, 4294901760
        %v1909 = vsub.f32 %v1907, %v1908
        %v1910 = vand.u32 %v1909, 4294901760
        %1911 = vmatpush1.msra.mxu0 %v1910
        %v1912 = vand.u32 %v266, 4294901760
        %v1913 = vsub.f32 %v266, %v1912
        %v1914 = vand.u32 %v1913, 4294901760
        %v1915 = vsub.f32 %v1913, %v1914
        %v1916 = vand.u32 %v1915, 4294901760
        %1917 = vmatprep.subr.mxu0 %v1916
        %v1918 = vand.u32 %v265, 4294901760
        %v1919 = vsub.f32 %v265, %v1918
        %v1920 = vand.u32 %v1919, 4294901760
        %v1921 = vsub.f32 %v1919, %v1920
        %v1922 = vand.u32 %v1921, 4294901760
        %1923 = vmatpush1.msra.mxu0 %v1922
        %v1924 = vand.u32 %v268, 4294901760
        %v1925 = vsub.f32 %v268, %v1924
        %v1926 = vand.u32 %v1925, 4294901760
        %v1927 = vsub.f32 %v1925, %v1926
        %v1928 = vand.u32 %v1927, 4294901760
        %1929 = vmatprep.subr.mxu0 %v1928
        %v1930 = vand.u32 %v267, 4294901760
        %v1931 = vsub.f32 %v267, %v1930
        %v1932 = vand.u32 %v1931, 4294901760
        %v1933 = vsub.f32 %v1931, %v1932
        %v1934 = vand.u32 %v1933, 4294901760
        %1935 = vmatpush1.msra.mxu0 %v1934
        %v1936 = vand.u32 %v270, 4294901760
        %v1937 = vsub.f32 %v270, %v1936
        %v1938 = vand.u32 %v1937, 4294901760
        %v1939 = vsub.f32 %v1937, %v1938
        %v1940 = vand.u32 %v1939, 4294901760
        %1941 = vmatprep.subr.mxu0 %v1940
        %v1942 = vand.u32 %v269, 4294901760
        %v1943 = vsub.f32 %v269, %v1942
        %v1944 = vand.u32 %v1943, 4294901760
        %v1945 = vsub.f32 %v1943, %v1944
        %v1946 = vand.u32 %v1945, 4294901760
        %1947 = vmatpush1.msra.mxu0 %v1946
        %v1948 = vand.u32 %v272, 4294901760
        %v1949 = vsub.f32 %v272, %v1948
        %v1950 = vand.u32 %v1949, 4294901760
        %v1951 = vsub.f32 %v1949, %v1950
        %v1952 = vand.u32 %v1951, 4294901760
        %1953 = vmatprep.subr.mxu0 %v1952
        %v1954 = vand.u32 %v271, 4294901760
        %v1955 = vsub.f32 %v271, %v1954
        %v1956 = vand.u32 %v1955, 4294901760
        %v1957 = vsub.f32 %v1955, %v1956
        %v1958 = vand.u32 %v1957, 4294901760
        %1959 = vmatpush1.msra.mxu0 %v1958
        %v1960 = vand.u32 %v274, 4294901760
        %v1961 = vsub.f32 %v274, %v1960
        %v1962 = vand.u32 %v1961, 4294901760
        %v1963 = vsub.f32 %v1961, %v1962
        %v1964 = vand.u32 %v1963, 4294901760
        %1965 = vmatprep.subr.mxu0 %v1964
        %v1966 = vand.u32 %v273, 4294901760
        %v1967 = vsub.f32 %v273, %v1966
        %v1968 = vand.u32 %v1967, 4294901760
        %v1969 = vsub.f32 %v1967, %v1968
        %v1970 = vand.u32 %v1969, 4294901760
        %1971 = vmatpush1.msra.mxu0 %v1970
        %v1972 = vand.u32 %v276, 4294901760
        %v1973 = vsub.f32 %v276, %v1972
        %v1974 = vand.u32 %v1973, 4294901760
        %v1975 = vsub.f32 %v1973, %v1974
        %v1976 = vand.u32 %v1975, 4294901760
        %1977 = vmatprep.subr.mxu0 %v1976
        %v1978 = vand.u32 %v275, 4294901760
        %v1979 = vsub.f32 %v275, %v1978
        %v1980 = vand.u32 %v1979, 4294901760
        %v1981 = vsub.f32 %v1979, %v1980
        %v1982 = vand.u32 %v1981, 4294901760
        %1983 = vmatpush1.msra.mxu0 %v1982
        %v1984 = vand.u32 %v278, 4294901760
        %v1985 = vsub.f32 %v278, %v1984
        %v1986 = vand.u32 %v1985, 4294901760
        %v1987 = vsub.f32 %v1985, %v1986
        %v1988 = vand.u32 %v1987, 4294901760
        %1989 = vmatprep.subr.mxu0 %v1988
        %v1990 = vand.u32 %v277, 4294901760
        %v1991 = vsub.f32 %v277, %v1990
        %v1992 = vand.u32 %v1991, 4294901760
        %v1993 = vsub.f32 %v1991, %v1992
        %v1994 = vand.u32 %v1993, 4294901760
        %1995 = vmatpush1.msra.mxu0 %v1994
        %v1996 = vand.u32 %v280, 4294901760
        %v1997 = vsub.f32 %v280, %v1996
        %v1998 = vand.u32 %v1997, 4294901760
        %v1999 = vsub.f32 %v1997, %v1998
        %v2000 = vand.u32 %v1999, 4294901760
        %2001 = vmatprep.subr.mxu0 %v2000
        %v2002 = vand.u32 %v279, 4294901760
        %v2003 = vsub.f32 %v279, %v2002
        %v2004 = vand.u32 %v2003, 4294901760
        %v2005 = vsub.f32 %v2003, %v2004
        %v2006 = vand.u32 %v2005, 4294901760
        %2007 = vmatpush1.msra.mxu0 %v2006
        %v2008 = vand.u32 %v282, 4294901760
        %v2009 = vsub.f32 %v282, %v2008
        %v2010 = vand.u32 %v2009, 4294901760
        %v2011 = vsub.f32 %v2009, %v2010
        %v2012 = vand.u32 %v2011, 4294901760
        %2013 = vmatprep.subr.mxu0 %v2012
        %v2014 = vand.u32 %v281, 4294901760
        %v2015 = vsub.f32 %v281, %v2014
        %v2016 = vand.u32 %v2015, 4294901760
        %v2017 = vsub.f32 %v2015, %v2016
        %v2018 = vand.u32 %v2017, 4294901760
        %2019 = vmatpush1.msra.mxu0 %v2018
        %v2020 = vand.u32 %v284, 4294901760
        %v2021 = vsub.f32 %v284, %v2020
        %v2022 = vand.u32 %v2021, 4294901760
        %v2023 = vsub.f32 %v2021, %v2022
        %v2024 = vand.u32 %v2023, 4294901760
        %2025 = vmatprep.subr.mxu0 %v2024
        %v2026 = vand.u32 %v283, 4294901760
        %v2027 = vsub.f32 %v283, %v2026
        %v2028 = vand.u32 %v2027, 4294901760
        %v2029 = vsub.f32 %v2027, %v2028
        %v2030 = vand.u32 %v2029, 4294901760
        %2031 = vmatpush1.msra.mxu0 %v2030
        %v2032 = vand.u32 %v286, 4294901760
        %v2033 = vsub.f32 %v286, %v2032
        %v2034 = vand.u32 %v2033, 4294901760
        %v2035 = vsub.f32 %v2033, %v2034
        %v2036 = vand.u32 %v2035, 4294901760
        %2037 = vmatprep.subr.mxu0 %v2036
        %v2038 = vand.u32 %v285, 4294901760
        %v2039 = vsub.f32 %v285, %v2038
        %v2040 = vand.u32 %v2039, 4294901760
        %v2041 = vsub.f32 %v2039, %v2040
        %v2042 = vand.u32 %v2041, 4294901760
        %2043 = vmatpush1.msra.mxu0 %v2042
        %v2044 = vand.u32 %v288, 4294901760
        %v2045 = vsub.f32 %v288, %v2044
        %v2046 = vand.u32 %v2045, 4294901760
        %v2047 = vsub.f32 %v2045, %v2046
        %v2048 = vand.u32 %v2047, 4294901760
        %2049 = vmatprep.subr.mxu0 %v2048
        %v2050 = vand.u32 %v287, 4294901760
        %v2051 = vsub.f32 %v287, %v2050
        %v2052 = vand.u32 %v2051, 4294901760
        %v2053 = vsub.f32 %v2051, %v2052
        %v2054 = vand.u32 %v2053, 4294901760
        %2055 = vmatpush1.msra.mxu0 %v2054
        %v2056 = vand.u32 %v290, 4294901760
        %v2057 = vsub.f32 %v290, %v2056
        %v2058 = vand.u32 %v2057, 4294901760
        %v2059 = vsub.f32 %v2057, %v2058
        %v2060 = vand.u32 %v2059, 4294901760
        %2061 = vmatprep.subr.mxu0 %v2060
        %v2062 = vand.u32 %v289, 4294901760
        %v2063 = vsub.f32 %v289, %v2062
        %v2064 = vand.u32 %v2063, 4294901760
        %v2065 = vsub.f32 %v2063, %v2064
        %v2066 = vand.u32 %v2065, 4294901760
        %2067 = vmatpush1.msra.mxu0 %v2066
        %v2068 = vand.u32 %v292, 4294901760
        %v2069 = vsub.f32 %v292, %v2068
        %v2070 = vand.u32 %v2069, 4294901760
        %v2071 = vsub.f32 %v2069, %v2070
        %v2072 = vand.u32 %v2071, 4294901760
        %2073 = vmatprep.subr.mxu0 %v2072
        %v2074 = vand.u32 %v291, 4294901760
        %v2075 = vsub.f32 %v291, %v2074
        %v2076 = vand.u32 %v2075, 4294901760
        %v2077 = vsub.f32 %v2075, %v2076
        %v2078 = vand.u32 %v2077, 4294901760
        %2079 = vmatpush1.msra.mxu0 %v2078
        %v2080 = vand.u32 %v294, 4294901760
        %v2081 = vsub.f32 %v294, %v2080
        %v2082 = vand.u32 %v2081, 4294901760
        %v2083 = vsub.f32 %v2081, %v2082
        %v2084 = vand.u32 %v2083, 4294901760
        %2085 = vmatprep.subr.mxu0 %v2084
        %v2086 = vand.u32 %v293, 4294901760
        %v2087 = vsub.f32 %v293, %v2086
        %v2088 = vand.u32 %v2087, 4294901760
        %v2089 = vsub.f32 %v2087, %v2088
        %v2090 = vand.u32 %v2089, 4294901760
        %2091 = vmatpush1.msra.mxu0 %v2090
        %v2092 = vand.u32 %v296, 4294901760
        %v2093 = vsub.f32 %v296, %v2092
        %v2094 = vand.u32 %v2093, 4294901760
        %v2095 = vsub.f32 %v2093, %v2094
        %v2096 = vand.u32 %v2095, 4294901760
        %2097 = vmatprep.subr.mxu0 %v2096
        %v2098 = vand.u32 %v295, 4294901760
        %v2099 = vsub.f32 %v295, %v2098
        %v2100 = vand.u32 %v2099, 4294901760
        %v2101 = vsub.f32 %v2099, %v2100
        %v2102 = vand.u32 %v2101, 4294901760
        %2103 = vmatpush1.msra.mxu0 %v2102
        %v2104 = vand.u32 %v298, 4294901760
        %v2105 = vsub.f32 %v298, %v2104
        %v2106 = vand.u32 %v2105, 4294901760
        %v2107 = vsub.f32 %v2105, %v2106
        %v2108 = vand.u32 %v2107, 4294901760
        %2109 = vmatprep.subr.mxu0 %v2108
        %v2110 = vand.u32 %v297, 4294901760
        %v2111 = vsub.f32 %v297, %v2110
        %v2112 = vand.u32 %v2111, 4294901760
        %v2113 = vsub.f32 %v2111, %v2112
        %v2114 = vand.u32 %v2113, 4294901760
        %2115 = vmatpush1.msra.mxu0 %v2114
        %v2116 = vand.u32 %v300, 4294901760
        %v2117 = vsub.f32 %v300, %v2116
        %v2118 = vand.u32 %v2117, 4294901760
        %v2119 = vsub.f32 %v2117, %v2118
        %v2120 = vand.u32 %v2119, 4294901760
        %2121 = vmatprep.subr.mxu0 %v2120
        %v2122 = vand.u32 %v299, 4294901760
        %v2123 = vsub.f32 %v299, %v2122
        %v2124 = vand.u32 %v2123, 4294901760
        %v2125 = vsub.f32 %v2123, %v2124
        %v2126 = vand.u32 %v2125, 4294901760
        %2127 = vmatpush1.msra.mxu0 %v2126
        %v2128 = vand.u32 %v302, 4294901760
        %v2129 = vsub.f32 %v302, %v2128
        %v2130 = vand.u32 %v2129, 4294901760
        %v2131 = vsub.f32 %v2129, %v2130
        %v2132 = vand.u32 %v2131, 4294901760
        %2133 = vmatprep.subr.mxu0 %v2132
        %v2134 = vand.u32 %v301, 4294901760
        %v2135 = vsub.f32 %v301, %v2134
        %v2136 = vand.u32 %v2135, 4294901760
        %v2137 = vsub.f32 %v2135, %v2136
        %v2138 = vand.u32 %v2137, 4294901760
        %2139 = vmatpush1.msra.mxu0 %v2138
        %v2140 = vand.u32 %v304, 4294901760
        %v2141 = vsub.f32 %v304, %v2140
        %v2142 = vand.u32 %v2141, 4294901760
        %v2143 = vsub.f32 %v2141, %v2142
        %v2144 = vand.u32 %v2143, 4294901760
        %2145 = vmatprep.subr.mxu0 %v2144
        %v2146 = vand.u32 %v303, 4294901760
        %v2147 = vsub.f32 %v303, %v2146
        %v2148 = vand.u32 %v2147, 4294901760
        %v2149 = vsub.f32 %v2147, %v2148
        %v2150 = vand.u32 %v2149, 4294901760
        %2151 = vmatpush1.msra.mxu0 %v2150
        %v2152 = vand.u32 %v306, 4294901760
        %v2153 = vsub.f32 %v306, %v2152
        %v2154 = vand.u32 %v2153, 4294901760
        %v2155 = vsub.f32 %v2153, %v2154
        %v2156 = vand.u32 %v2155, 4294901760
        %2157 = vmatprep.subr.mxu0 %v2156
        %v2158 = vand.u32 %v305, 4294901760
        %v2159 = vsub.f32 %v305, %v2158
        %v2160 = vand.u32 %v2159, 4294901760
        %v2161 = vsub.f32 %v2159, %v2160
        %v2162 = vand.u32 %v2161, 4294901760
        %2163 = vmatpush1.msra.mxu0 %v2162
        %v2164 = vand.u32 %v308, 4294901760
        %v2165 = vsub.f32 %v308, %v2164
        %v2166 = vand.u32 %v2165, 4294901760
        %v2167 = vsub.f32 %v2165, %v2166
        %v2168 = vand.u32 %v2167, 4294901760
        %2169 = vmatprep.subr.mxu0 %v2168
        %v2170 = vand.u32 %v307, 4294901760
        %v2171 = vsub.f32 %v307, %v2170
        %v2172 = vand.u32 %v2171, 4294901760
        %v2173 = vsub.f32 %v2171, %v2172
        %v2174 = vand.u32 %v2173, 4294901760
        %2175 = vmatpush1.msra.mxu0 %v2174
        %v2176 = vand.u32 %v310, 4294901760
        %v2177 = vsub.f32 %v310, %v2176
        %v2178 = vand.u32 %v2177, 4294901760
        %v2179 = vsub.f32 %v2177, %v2178
        %v2180 = vand.u32 %v2179, 4294901760
        %2181 = vmatprep.subr.mxu0 %v2180
        %v2182 = vand.u32 %v309, 4294901760
        %v2183 = vsub.f32 %v309, %v2182
        %v2184 = vand.u32 %v2183, 4294901760
        %v2185 = vsub.f32 %v2183, %v2184
        %v2186 = vand.u32 %v2185, 4294901760
        %2187 = vmatpush1.msra.mxu0 %v2186
        %v2188 = vand.u32 %v232, 4294901760
        %2189 = vmatprep.mubr.f32.mxu0 %v2188
        %v2190 = vand.u32 %v225, 4294901760
        %2191 = vmatmul.mubr.f32.gmra.mrb[0].mxu0 %v2190
        %v2192 = vpop.f32.mrb[0].mxu0
        %v2193 = vadd.f32 %v1800, %v2192
        %v2194 = vpop.f32.mrb[0].mxu0
        %v2195 = vadd.f32 %v1802, %v2194
        %2196 = vdwg.mxu0
        %v2197 = vand.u32 %v248, 4294901760
        %v2198 = vsub.f32 %v248, %v2197
        %2199 = vmatprep.subr.mxu0 %v2198
        %v2200 = vand.u32 %v247, 4294901760
        %v2201 = vsub.f32 %v247, %v2200
        %2202 = vmatpush1.msra.mxu0 %v2201
        %v2203 = vand.u32 %v250, 4294901760
        %v2204 = vsub.f32 %v250, %v2203
        %2205 = vmatprep.subr.mxu0 %v2204
        %v2206 = vand.u32 %v249, 4294901760
        %v2207 = vsub.f32 %v249, %v2206
        %2208 = vmatpush1.msra.mxu0 %v2207
        %v2209 = vand.u32 %v252, 4294901760
        %v2210 = vsub.f32 %v252, %v2209
        %2211 = vmatprep.subr.mxu0 %v2210
        %v2212 = vand.u32 %v251, 4294901760
        %v2213 = vsub.f32 %v251, %v2212
        %2214 = vmatpush1.msra.mxu0 %v2213
        %v2215 = vand.u32 %v254, 4294901760
        %v2216 = vsub.f32 %v254, %v2215
        %2217 = vmatprep.subr.mxu0 %v2216
        %v2218 = vand.u32 %v253, 4294901760
        %v2219 = vsub.f32 %v253, %v2218
        %2220 = vmatpush1.msra.mxu0 %v2219
        %v2221 = vand.u32 %v256, 4294901760
        %v2222 = vsub.f32 %v256, %v2221
        %2223 = vmatprep.subr.mxu0 %v2222
        %v2224 = vand.u32 %v255, 4294901760
        %v2225 = vsub.f32 %v255, %v2224
        %2226 = vmatpush1.msra.mxu0 %v2225
        %v2227 = vand.u32 %v258, 4294901760
        %v2228 = vsub.f32 %v258, %v2227
        %2229 = vmatprep.subr.mxu0 %v2228
        %v2230 = vand.u32 %v257, 4294901760
        %v2231 = vsub.f32 %v257, %v2230
        %2232 = vmatpush1.msra.mxu0 %v2231
        %v2233 = vand.u32 %v260, 4294901760
        %v2234 = vsub.f32 %v260, %v2233
        %2235 = vmatprep.subr.mxu0 %v2234
        %v2236 = vand.u32 %v259, 4294901760
        %v2237 = vsub.f32 %v259, %v2236
        %2238 = vmatpush1.msra.mxu0 %v2237
        %v2239 = vand.u32 %v262, 4294901760
        %v2240 = vsub.f32 %v262, %v2239
        %2241 = vmatprep.subr.mxu0 %v2240
        %v2242 = vand.u32 %v261, 4294901760
        %v2243 = vsub.f32 %v261, %v2242
        %2244 = vmatpush1.msra.mxu0 %v2243
        %v2245 = vand.u32 %v264, 4294901760
        %v2246 = vsub.f32 %v264, %v2245
        %2247 = vmatprep.subr.mxu0 %v2246
        %v2248 = vand.u32 %v263, 4294901760
        %v2249 = vsub.f32 %v263, %v2248
        %2250 = vmatpush1.msra.mxu0 %v2249
        %v2251 = vand.u32 %v266, 4294901760
        %v2252 = vsub.f32 %v266, %v2251
        %2253 = vmatprep.subr.mxu0 %v2252
        %v2254 = vand.u32 %v265, 4294901760
        %v2255 = vsub.f32 %v265, %v2254
        %2256 = vmatpush1.msra.mxu0 %v2255
        %v2257 = vand.u32 %v268, 4294901760
        %v2258 = vsub.f32 %v268, %v2257
        %2259 = vmatprep.subr.mxu0 %v2258
        %v2260 = vand.u32 %v267, 4294901760
        %v2261 = vsub.f32 %v267, %v2260
        %2262 = vmatpush1.msra.mxu0 %v2261
        %v2263 = vand.u32 %v270, 4294901760
        %v2264 = vsub.f32 %v270, %v2263
        %2265 = vmatprep.subr.mxu0 %v2264
        %v2266 = vand.u32 %v269, 4294901760
        %v2267 = vsub.f32 %v269, %v2266
        %2268 = vmatpush1.msra.mxu0 %v2267
        %v2269 = vand.u32 %v272, 4294901760
        %v2270 = vsub.f32 %v272, %v2269
        %2271 = vmatprep.subr.mxu0 %v2270
        %v2272 = vand.u32 %v271, 4294901760
        %v2273 = vsub.f32 %v271, %v2272
        %2274 = vmatpush1.msra.mxu0 %v2273
        %v2275 = vand.u32 %v274, 4294901760
        %v2276 = vsub.f32 %v274, %v2275
        %2277 = vmatprep.subr.mxu0 %v2276
        %v2278 = vand.u32 %v273, 4294901760
        %v2279 = vsub.f32 %v273, %v2278
        %2280 = vmatpush1.msra.mxu0 %v2279
        %v2281 = vand.u32 %v276, 4294901760
        %v2282 = vsub.f32 %v276, %v2281
        %2283 = vmatprep.subr.mxu0 %v2282
        %v2284 = vand.u32 %v275, 4294901760
        %v2285 = vsub.f32 %v275, %v2284
        %2286 = vmatpush1.msra.mxu0 %v2285
        %v2287 = vand.u32 %v278, 4294901760
        %v2288 = vsub.f32 %v278, %v2287
        %2289 = vmatprep.subr.mxu0 %v2288
        %v2290 = vand.u32 %v277, 4294901760
        %v2291 = vsub.f32 %v277, %v2290
        %2292 = vmatpush1.msra.mxu0 %v2291
        %v2293 = vand.u32 %v280, 4294901760
        %v2294 = vsub.f32 %v280, %v2293
        %2295 = vmatprep.subr.mxu0 %v2294
        %v2296 = vand.u32 %v279, 4294901760
        %v2297 = vsub.f32 %v279, %v2296
        %2298 = vmatpush1.msra.mxu0 %v2297
        %v2299 = vand.u32 %v282, 4294901760
        %v2300 = vsub.f32 %v282, %v2299
        %2301 = vmatprep.subr.mxu0 %v2300
        %v2302 = vand.u32 %v281, 4294901760
        %v2303 = vsub.f32 %v281, %v2302
        %2304 = vmatpush1.msra.mxu0 %v2303
        %v2305 = vand.u32 %v284, 4294901760
        %v2306 = vsub.f32 %v284, %v2305
        %2307 = vmatprep.subr.mxu0 %v2306
        %v2308 = vand.u32 %v283, 4294901760
        %v2309 = vsub.f32 %v283, %v2308
        %2310 = vmatpush1.msra.mxu0 %v2309
        %v2311 = vand.u32 %v286, 4294901760
        %v2312 = vsub.f32 %v286, %v2311
        %2313 = vmatprep.subr.mxu0 %v2312
        %v2314 = vand.u32 %v285, 4294901760
        %v2315 = vsub.f32 %v285, %v2314
        %2316 = vmatpush1.msra.mxu0 %v2315
        %v2317 = vand.u32 %v288, 4294901760
        %v2318 = vsub.f32 %v288, %v2317
        %2319 = vmatprep.subr.mxu0 %v2318
        %v2320 = vand.u32 %v287, 4294901760
        %v2321 = vsub.f32 %v287, %v2320
        %2322 = vmatpush1.msra.mxu0 %v2321
        %v2323 = vand.u32 %v290, 4294901760
        %v2324 = vsub.f32 %v290, %v2323
        %2325 = vmatprep.subr.mxu0 %v2324
        %v2326 = vand.u32 %v289, 4294901760
        %v2327 = vsub.f32 %v289, %v2326
        %2328 = vmatpush1.msra.mxu0 %v2327
        %v2329 = vand.u32 %v292, 4294901760
        %v2330 = vsub.f32 %v292, %v2329
        %2331 = vmatprep.subr.mxu0 %v2330
        %v2332 = vand.u32 %v291, 4294901760
        %v2333 = vsub.f32 %v291, %v2332
        %2334 = vmatpush1.msra.mxu0 %v2333
        %v2335 = vand.u32 %v294, 4294901760
        %v2336 = vsub.f32 %v294, %v2335
        %2337 = vmatprep.subr.mxu0 %v2336
        %v2338 = vand.u32 %v293, 4294901760
        %v2339 = vsub.f32 %v293, %v2338
        %2340 = vmatpush1.msra.mxu0 %v2339
        %v2341 = vand.u32 %v296, 4294901760
        %v2342 = vsub.f32 %v296, %v2341
        %2343 = vmatprep.subr.mxu0 %v2342
        %v2344 = vand.u32 %v295, 4294901760
        %v2345 = vsub.f32 %v295, %v2344
        %2346 = vmatpush1.msra.mxu0 %v2345
        %v2347 = vand.u32 %v298, 4294901760
        %v2348 = vsub.f32 %v298, %v2347
        %2349 = vmatprep.subr.mxu0 %v2348
        %v2350 = vand.u32 %v297, 4294901760
        %v2351 = vsub.f32 %v297, %v2350
        %2352 = vmatpush1.msra.mxu0 %v2351
        %v2353 = vand.u32 %v300, 4294901760
        %v2354 = vsub.f32 %v300, %v2353
        %2355 = vmatprep.subr.mxu0 %v2354
        %v2356 = vand.u32 %v299, 4294901760
        %v2357 = vsub.f32 %v299, %v2356
        %2358 = vmatpush1.msra.mxu0 %v2357
        %v2359 = vand.u32 %v302, 4294901760
        %v2360 = vsub.f32 %v302, %v2359
        %2361 = vmatprep.subr.mxu0 %v2360
        %v2362 = vand.u32 %v301, 4294901760
        %v2363 = vsub.f32 %v301, %v2362
        %2364 = vmatpush1.msra.mxu0 %v2363
        %v2365 = vand.u32 %v304, 4294901760
        %v2366 = vsub.f32 %v304, %v2365
        %2367 = vmatprep.subr.mxu0 %v2366
        %v2368 = vand.u32 %v303, 4294901760
        %v2369 = vsub.f32 %v303, %v2368
        %2370 = vmatpush1.msra.mxu0 %v2369
        %v2371 = vand.u32 %v306, 4294901760
        %v2372 = vsub.f32 %v306, %v2371
        %2373 = vmatprep.subr.mxu0 %v2372
        %v2374 = vand.u32 %v305, 4294901760
        %v2375 = vsub.f32 %v305, %v2374
        %2376 = vmatpush1.msra.mxu0 %v2375
        %v2377 = vand.u32 %v308, 4294901760
        %v2378 = vsub.f32 %v308, %v2377
        %2379 = vmatprep.subr.mxu0 %v2378
        %v2380 = vand.u32 %v307, 4294901760
        %v2381 = vsub.f32 %v307, %v2380
        %2382 = vmatpush1.msra.mxu0 %v2381
        %v2383 = vand.u32 %v310, 4294901760
        %v2384 = vsub.f32 %v310, %v2383
        %2385 = vmatprep.subr.mxu0 %v2384
        %v2386 = vand.u32 %v309, 4294901760
        %v2387 = vsub.f32 %v309, %v2386
        %2388 = vmatpush1.msra.mxu0 %v2387
        %v2389 = vand.u32 %v232, 4294901760
        %v2390 = vsub.f32 %v232, %v2389
        %2391 = vmatprep.mubr.f32.mxu0 %v2390
        %v2392 = vand.u32 %v225, 4294901760
        %v2393 = vsub.f32 %v225, %v2392
        %2394 = vmatmul.mubr.f32.gmra.mrb[0].mxu0 %v2393
        %v2395 = vpop.f32.mrb[0].mxu0
        %v2396 = vadd.f32 %v2193, %v2395
        %v2397 = vpop.f32.mrb[0].mxu0
        %v2398 = vadd.f32 %v2195, %v2397
        %2399 = vdwg.mxu0
        %v2400 = vand.u32 %v248, 4294901760
        %2401 = vmatprep.subr.mxu0 %v2400
        %v2402 = vand.u32 %v247, 4294901760
        %2403 = vmatpush1.msra.mxu0 %v2402
        %v2404 = vand.u32 %v250, 4294901760
        %2405 = vmatprep.subr.mxu0 %v2404
        %v2406 = vand.u32 %v249, 4294901760
        %2407 = vmatpush1.msra.mxu0 %v2406
        %v2408 = vand.u32 %v252, 4294901760
        %2409 = vmatprep.subr.mxu0 %v2408
        %v2410 = vand.u32 %v251, 4294901760
        %2411 = vmatpush1.msra.mxu0 %v2410
        %v2412 = vand.u32 %v254, 4294901760
        %2413 = vmatprep.subr.mxu0 %v2412
        %v2414 = vand.u32 %v253, 4294901760
        %2415 = vmatpush1.msra.mxu0 %v2414
        %v2416 = vand.u32 %v256, 4294901760
        %2417 = vmatprep.subr.mxu0 %v2416
        %v2418 = vand.u32 %v255, 4294901760
        %2419 = vmatpush1.msra.mxu0 %v2418
        %v2420 = vand.u32 %v258, 4294901760
        %2421 = vmatprep.subr.mxu0 %v2420
        %v2422 = vand.u32 %v257, 4294901760
        %2423 = vmatpush1.msra.mxu0 %v2422
        %v2424 = vand.u32 %v260, 4294901760
        %2425 = vmatprep.subr.mxu0 %v2424
        %v2426 = vand.u32 %v259, 4294901760
        %2427 = vmatpush1.msra.mxu0 %v2426
        %v2428 = vand.u32 %v262, 4294901760
        %2429 = vmatprep.subr.mxu0 %v2428
        %v2430 = vand.u32 %v261, 4294901760
        %2431 = vmatpush1.msra.mxu0 %v2430
        %v2432 = vand.u32 %v264, 4294901760
        %2433 = vmatprep.subr.mxu0 %v2432
        %v2434 = vand.u32 %v263, 4294901760
        %2435 = vmatpush1.msra.mxu0 %v2434
        %v2436 = vand.u32 %v266, 4294901760
        %2437 = vmatprep.subr.mxu0 %v2436
        %v2438 = vand.u32 %v265, 4294901760
        %2439 = vmatpush1.msra.mxu0 %v2438
        %v2440 = vand.u32 %v268, 4294901760
        %2441 = vmatprep.subr.mxu0 %v2440
        %v2442 = vand.u32 %v267, 4294901760
        %2443 = vmatpush1.msra.mxu0 %v2442
        %v2444 = vand.u32 %v270, 4294901760
        %2445 = vmatprep.subr.mxu0 %v2444
        %v2446 = vand.u32 %v269, 4294901760
        %2447 = vmatpush1.msra.mxu0 %v2446
        %v2448 = vand.u32 %v272, 4294901760
        %2449 = vmatprep.subr.mxu0 %v2448
        %v2450 = vand.u32 %v271, 4294901760
        %2451 = vmatpush1.msra.mxu0 %v2450
        %v2452 = vand.u32 %v274, 4294901760
        %2453 = vmatprep.subr.mxu0 %v2452
        %v2454 = vand.u32 %v273, 4294901760
        %2455 = vmatpush1.msra.mxu0 %v2454
        %v2456 = vand.u32 %v276, 4294901760
        %2457 = vmatprep.subr.mxu0 %v2456
        %v2458 = vand.u32 %v275, 4294901760
        %2459 = vmatpush1.msra.mxu0 %v2458
        %v2460 = vand.u32 %v278, 4294901760
        %2461 = vmatprep.subr.mxu0 %v2460
        %v2462 = vand.u32 %v277, 4294901760
        %2463 = vmatpush1.msra.mxu0 %v2462
        %v2464 = vand.u32 %v280, 4294901760
        %2465 = vmatprep.subr.mxu0 %v2464
        %v2466 = vand.u32 %v279, 4294901760
        %2467 = vmatpush1.msra.mxu0 %v2466
        %v2468 = vand.u32 %v282, 4294901760
        %2469 = vmatprep.subr.mxu0 %v2468
        %v2470 = vand.u32 %v281, 4294901760
        %2471 = vmatpush1.msra.mxu0 %v2470
        %v2472 = vand.u32 %v284, 4294901760
        %2473 = vmatprep.subr.mxu0 %v2472
        %v2474 = vand.u32 %v283, 4294901760
        %2475 = vmatpush1.msra.mxu0 %v2474
        %v2476 = vand.u32 %v286, 4294901760
        %2477 = vmatprep.subr.mxu0 %v2476
        %v2478 = vand.u32 %v285, 4294901760
        %2479 = vmatpush1.msra.mxu0 %v2478
        %v2480 = vand.u32 %v288, 4294901760
        %2481 = vmatprep.subr.mxu0 %v2480
        %v2482 = vand.u32 %v287, 4294901760
        %2483 = vmatpush1.msra.mxu0 %v2482
        %v2484 = vand.u32 %v290, 4294901760
        %2485 = vmatprep.subr.mxu0 %v2484
        %v2486 = vand.u32 %v289, 4294901760
        %2487 = vmatpush1.msra.mxu0 %v2486
        %v2488 = vand.u32 %v292, 4294901760
        %2489 = vmatprep.subr.mxu0 %v2488
        %v2490 = vand.u32 %v291, 4294901760
        %2491 = vmatpush1.msra.mxu0 %v2490
        %v2492 = vand.u32 %v294, 4294901760
        %2493 = vmatprep.subr.mxu0 %v2492
        %v2494 = vand.u32 %v293, 4294901760
        %2495 = vmatpush1.msra.mxu0 %v2494
        %v2496 = vand.u32 %v296, 4294901760
        %2497 = vmatprep.subr.mxu0 %v2496
        %v2498 = vand.u32 %v295, 4294901760
        %2499 = vmatpush1.msra.mxu0 %v2498
        %v2500 = vand.u32 %v298, 4294901760
        %2501 = vmatprep.subr.mxu0 %v2500
        %v2502 = vand.u32 %v297, 4294901760
        %2503 = vmatpush1.msra.mxu0 %v2502
        %v2504 = vand.u32 %v300, 4294901760
        %2505 = vmatprep.subr.mxu0 %v2504
        %v2506 = vand.u32 %v299, 4294901760
        %2507 = vmatpush1.msra.mxu0 %v2506
        %v2508 = vand.u32 %v302, 4294901760
        %2509 = vmatprep.subr.mxu0 %v2508
        %v2510 = vand.u32 %v301, 4294901760
        %2511 = vmatpush1.msra.mxu0 %v2510
        %v2512 = vand.u32 %v304, 4294901760
        %2513 = vmatprep.subr.mxu0 %v2512
        %v2514 = vand.u32 %v303, 4294901760
        %2515 = vmatpush1.msra.mxu0 %v2514
        %v2516 = vand.u32 %v306, 4294901760
        %2517 = vmatprep.subr.mxu0 %v2516
        %v2518 = vand.u32 %v305, 4294901760
        %2519 = vmatpush1.msra.mxu0 %v2518
        %v2520 = vand.u32 %v308, 4294901760
        %2521 = vmatprep.subr.mxu0 %v2520
        %v2522 = vand.u32 %v307, 4294901760
        %2523 = vmatpush1.msra.mxu0 %v2522
        %v2524 = vand.u32 %v310, 4294901760
        %2525 = vmatprep.subr.mxu0 %v2524
        %v2526 = vand.u32 %v309, 4294901760
        %2527 = vmatpush1.msra.mxu0 %v2526
        %v2528 = vand.u32 %v232, 4294901760
        %v2529 = vsub.f32 %v232, %v2528
        %v2530 = vand.u32 %v2529, 4294901760
        %2531 = vmatprep.mubr.f32.mxu0 %v2530
        %v2532 = vand.u32 %v225, 4294901760
        %v2533 = vsub.f32 %v225, %v2532
        %v2534 = vand.u32 %v2533, 4294901760
        %2535 = vmatmul.mubr.f32.gmra.mrb[0].mxu0 %v2534
        %v2536 = vpop.f32.mrb[0].mxu0
        %v2537 = vadd.f32 %v2396, %v2536
        %v2538 = vpop.f32.mrb[0].mxu0
        %v2539 = vadd.f32 %v2398, %v2538
        %2540 = vdwg.mxu0
        %v2541 = vand.u32 %v248, 4294901760
        %v2542 = vsub.f32 %v248, %v2541
        %v2543 = vand.u32 %v2542, 4294901760
        %2544 = vmatprep.subr.mxu0 %v2543
        %v2545 = vand.u32 %v247, 4294901760
        %v2546 = vsub.f32 %v247, %v2545
        %v2547 = vand.u32 %v2546, 4294901760
        %2548 = vmatpush1.msra.mxu0 %v2547
        %v2549 = vand.u32 %v250, 4294901760
        %v2550 = vsub.f32 %v250, %v2549
        %v2551 = vand.u32 %v2550, 4294901760
        %2552 = vmatprep.subr.mxu0 %v2551
        %v2553 = vand.u32 %v249, 4294901760
        %v2554 = vsub.f32 %v249, %v2553
        %v2555 = vand.u32 %v2554, 4294901760
        %2556 = vmatpush1.msra.mxu0 %v2555
        %v2557 = vand.u32 %v252, 4294901760
        %v2558 = vsub.f32 %v252, %v2557
        %v2559 = vand.u32 %v2558, 4294901760
        %2560 = vmatprep.subr.mxu0 %v2559
        %v2561 = vand.u32 %v251, 4294901760
        %v2562 = vsub.f32 %v251, %v2561
        %v2563 = vand.u32 %v2562, 4294901760
        %2564 = vmatpush1.msra.mxu0 %v2563
        %v2565 = vand.u32 %v254, 4294901760
        %v2566 = vsub.f32 %v254, %v2565
        %v2567 = vand.u32 %v2566, 4294901760
        %2568 = vmatprep.subr.mxu0 %v2567
        %v2569 = vand.u32 %v253, 4294901760
        %v2570 = vsub.f32 %v253, %v2569
        %v2571 = vand.u32 %v2570, 4294901760
        %2572 = vmatpush1.msra.mxu0 %v2571
        %v2573 = vand.u32 %v256, 4294901760
        %v2574 = vsub.f32 %v256, %v2573
        %v2575 = vand.u32 %v2574, 4294901760
        %2576 = vmatprep.subr.mxu0 %v2575
        %v2577 = vand.u32 %v255, 4294901760
        %v2578 = vsub.f32 %v255, %v2577
        %v2579 = vand.u32 %v2578, 4294901760
        %2580 = vmatpush1.msra.mxu0 %v2579
        %v2581 = vand.u32 %v258, 4294901760
        %v2582 = vsub.f32 %v258, %v2581
        %v2583 = vand.u32 %v2582, 4294901760
        %2584 = vmatprep.subr.mxu0 %v2583
        %v2585 = vand.u32 %v257, 4294901760
        %v2586 = vsub.f32 %v257, %v2585
        %v2587 = vand.u32 %v2586, 4294901760
        %2588 = vmatpush1.msra.mxu0 %v2587
        %v2589 = vand.u32 %v260, 4294901760
        %v2590 = vsub.f32 %v260, %v2589
        %v2591 = vand.u32 %v2590, 4294901760
        %2592 = vmatprep.subr.mxu0 %v2591
        %v2593 = vand.u32 %v259, 4294901760
        %v2594 = vsub.f32 %v259, %v2593
        %v2595 = vand.u32 %v2594, 4294901760
        %2596 = vmatpush1.msra.mxu0 %v2595
        %v2597 = vand.u32 %v262, 4294901760
        %v2598 = vsub.f32 %v262, %v2597
        %v2599 = vand.u32 %v2598, 4294901760
        %2600 = vmatprep.subr.mxu0 %v2599
        %v2601 = vand.u32 %v261, 4294901760
        %v2602 = vsub.f32 %v261, %v2601
        %v2603 = vand.u32 %v2602, 4294901760
        %2604 = vmatpush1.msra.mxu0 %v2603
        %v2605 = vand.u32 %v264, 4294901760
        %v2606 = vsub.f32 %v264, %v2605
        %v2607 = vand.u32 %v2606, 4294901760
        %2608 = vmatprep.subr.mxu0 %v2607
        %v2609 = vand.u32 %v263, 4294901760
        %v2610 = vsub.f32 %v263, %v2609
        %v2611 = vand.u32 %v2610, 4294901760
        %2612 = vmatpush1.msra.mxu0 %v2611
        %v2613 = vand.u32 %v266, 4294901760
        %v2614 = vsub.f32 %v266, %v2613
        %v2615 = vand.u32 %v2614, 4294901760
        %2616 = vmatprep.subr.mxu0 %v2615
        %v2617 = vand.u32 %v265, 4294901760
        %v2618 = vsub.f32 %v265, %v2617
        %v2619 = vand.u32 %v2618, 4294901760
        %2620 = vmatpush1.msra.mxu0 %v2619
        %v2621 = vand.u32 %v268, 4294901760
        %v2622 = vsub.f32 %v268, %v2621
        %v2623 = vand.u32 %v2622, 4294901760
        %2624 = vmatprep.subr.mxu0 %v2623
        %v2625 = vand.u32 %v267, 4294901760
        %v2626 = vsub.f32 %v267, %v2625
        %v2627 = vand.u32 %v2626, 4294901760
        %2628 = vmatpush1.msra.mxu0 %v2627
        %v2629 = vand.u32 %v270, 4294901760
        %v2630 = vsub.f32 %v270, %v2629
        %v2631 = vand.u32 %v2630, 4294901760
        %2632 = vmatprep.subr.mxu0 %v2631
        %v2633 = vand.u32 %v269, 4294901760
        %v2634 = vsub.f32 %v269, %v2633
        %v2635 = vand.u32 %v2634, 4294901760
        %2636 = vmatpush1.msra.mxu0 %v2635
        %v2637 = vand.u32 %v272, 4294901760
        %v2638 = vsub.f32 %v272, %v2637
        %v2639 = vand.u32 %v2638, 4294901760
        %2640 = vmatprep.subr.mxu0 %v2639
        %v2641 = vand.u32 %v271, 4294901760
        %v2642 = vsub.f32 %v271, %v2641
        %v2643 = vand.u32 %v2642, 4294901760
        %2644 = vmatpush1.msra.mxu0 %v2643
        %v2645 = vand.u32 %v274, 4294901760
        %v2646 = vsub.f32 %v274, %v2645
        %v2647 = vand.u32 %v2646, 4294901760
        %2648 = vmatprep.subr.mxu0 %v2647
        %v2649 = vand.u32 %v273, 4294901760
        %v2650 = vsub.f32 %v273, %v2649
        %v2651 = vand.u32 %v2650, 4294901760
        %2652 = vmatpush1.msra.mxu0 %v2651
        %v2653 = vand.u32 %v276, 4294901760
        %v2654 = vsub.f32 %v276, %v2653
        %v2655 = vand.u32 %v2654, 4294901760
        %2656 = vmatprep.subr.mxu0 %v2655
        %v2657 = vand.u32 %v275, 4294901760
        %v2658 = vsub.f32 %v275, %v2657
        %v2659 = vand.u32 %v2658, 4294901760
        %2660 = vmatpush1.msra.mxu0 %v2659
        %v2661 = vand.u32 %v278, 4294901760
        %v2662 = vsub.f32 %v278, %v2661
        %v2663 = vand.u32 %v2662, 4294901760
        %2664 = vmatprep.subr.mxu0 %v2663
        %v2665 = vand.u32 %v277, 4294901760
        %v2666 = vsub.f32 %v277, %v2665
        %v2667 = vand.u32 %v2666, 4294901760
        %2668 = vmatpush1.msra.mxu0 %v2667
        %v2669 = vand.u32 %v280, 4294901760
        %v2670 = vsub.f32 %v280, %v2669
        %v2671 = vand.u32 %v2670, 4294901760
        %2672 = vmatprep.subr.mxu0 %v2671
        %v2673 = vand.u32 %v279, 4294901760
        %v2674 = vsub.f32 %v279, %v2673
        %v2675 = vand.u32 %v2674, 4294901760
        %2676 = vmatpush1.msra.mxu0 %v2675
        %v2677 = vand.u32 %v282, 4294901760
        %v2678 = vsub.f32 %v282, %v2677
        %v2679 = vand.u32 %v2678, 4294901760
        %2680 = vmatprep.subr.mxu0 %v2679
        %v2681 = vand.u32 %v281, 4294901760
        %v2682 = vsub.f32 %v281, %v2681
        %v2683 = vand.u32 %v2682, 4294901760
        %2684 = vmatpush1.msra.mxu0 %v2683
        %v2685 = vand.u32 %v284, 4294901760
        %v2686 = vsub.f32 %v284, %v2685
        %v2687 = vand.u32 %v2686, 4294901760
        %2688 = vmatprep.subr.mxu0 %v2687
        %v2689 = vand.u32 %v283, 4294901760
        %v2690 = vsub.f32 %v283, %v2689
        %v2691 = vand.u32 %v2690, 4294901760
        %2692 = vmatpush1.msra.mxu0 %v2691
        %v2693 = vand.u32 %v286, 4294901760
        %v2694 = vsub.f32 %v286, %v2693
        %v2695 = vand.u32 %v2694, 4294901760
        %2696 = vmatprep.subr.mxu0 %v2695
        %v2697 = vand.u32 %v285, 4294901760
        %v2698 = vsub.f32 %v285, %v2697
        %v2699 = vand.u32 %v2698, 4294901760
        %2700 = vmatpush1.msra.mxu0 %v2699
        %v2701 = vand.u32 %v288, 4294901760
        %v2702 = vsub.f32 %v288, %v2701
        %v2703 = vand.u32 %v2702, 4294901760
        %2704 = vmatprep.subr.mxu0 %v2703
        %v2705 = vand.u32 %v287, 4294901760
        %v2706 = vsub.f32 %v287, %v2705
        %v2707 = vand.u32 %v2706, 4294901760
        %2708 = vmatpush1.msra.mxu0 %v2707
        %v2709 = vand.u32 %v290, 4294901760
        %v2710 = vsub.f32 %v290, %v2709
        %v2711 = vand.u32 %v2710, 4294901760
        %2712 = vmatprep.subr.mxu0 %v2711
        %v2713 = vand.u32 %v289, 4294901760
        %v2714 = vsub.f32 %v289, %v2713
        %v2715 = vand.u32 %v2714, 4294901760
        %2716 = vmatpush1.msra.mxu0 %v2715
        %v2717 = vand.u32 %v292, 4294901760
        %v2718 = vsub.f32 %v292, %v2717
        %v2719 = vand.u32 %v2718, 4294901760
        %2720 = vmatprep.subr.mxu0 %v2719
        %v2721 = vand.u32 %v291, 4294901760
        %v2722 = vsub.f32 %v291, %v2721
        %v2723 = vand.u32 %v2722, 4294901760
        %2724 = vmatpush1.msra.mxu0 %v2723
        %v2725 = vand.u32 %v294, 4294901760
        %v2726 = vsub.f32 %v294, %v2725
        %v2727 = vand.u32 %v2726, 4294901760
        %2728 = vmatprep.subr.mxu0 %v2727
        %v2729 = vand.u32 %v293, 4294901760
        %v2730 = vsub.f32 %v293, %v2729
        %v2731 = vand.u32 %v2730, 4294901760
        %2732 = vmatpush1.msra.mxu0 %v2731
        %v2733 = vand.u32 %v296, 4294901760
        %v2734 = vsub.f32 %v296, %v2733
        %v2735 = vand.u32 %v2734, 4294901760
        %2736 = vmatprep.subr.mxu0 %v2735
        %v2737 = vand.u32 %v295, 4294901760
        %v2738 = vsub.f32 %v295, %v2737
        %v2739 = vand.u32 %v2738, 4294901760
        %2740 = vmatpush1.msra.mxu0 %v2739
        %v2741 = vand.u32 %v298, 4294901760
        %v2742 = vsub.f32 %v298, %v2741
        %v2743 = vand.u32 %v2742, 4294901760
        %2744 = vmatprep.subr.mxu0 %v2743
        %v2745 = vand.u32 %v297, 4294901760
        %v2746 = vsub.f32 %v297, %v2745
        %v2747 = vand.u32 %v2746, 4294901760
        %2748 = vmatpush1.msra.mxu0 %v2747
        %v2749 = vand.u32 %v300, 4294901760
        %v2750 = vsub.f32 %v300, %v2749
        %v2751 = vand.u32 %v2750, 4294901760
        %2752 = vmatprep.subr.mxu0 %v2751
        %v2753 = vand.u32 %v299, 4294901760
        %v2754 = vsub.f32 %v299, %v2753
        %v2755 = vand.u32 %v2754, 4294901760
        %2756 = vmatpush1.msra.mxu0 %v2755
        %v2757 = vand.u32 %v302, 4294901760
        %v2758 = vsub.f32 %v302, %v2757
        %v2759 = vand.u32 %v2758, 4294901760
        %2760 = vmatprep.subr.mxu0 %v2759
        %v2761 = vand.u32 %v301, 4294901760
        %v2762 = vsub.f32 %v301, %v2761
        %v2763 = vand.u32 %v2762, 4294901760
        %2764 = vmatpush1.msra.mxu0 %v2763
        %v2765 = vand.u32 %v304, 4294901760
        %v2766 = vsub.f32 %v304, %v2765
        %v2767 = vand.u32 %v2766, 4294901760
        %2768 = vmatprep.subr.mxu0 %v2767
        %v2769 = vand.u32 %v303, 4294901760
        %v2770 = vsub.f32 %v303, %v2769
        %v2771 = vand.u32 %v2770, 4294901760
        %2772 = vmatpush1.msra.mxu0 %v2771
        %v2773 = vand.u32 %v306, 4294901760
        %v2774 = vsub.f32 %v306, %v2773
        %v2775 = vand.u32 %v2774, 4294901760
        %2776 = vmatprep.subr.mxu0 %v2775
        %v2777 = vand.u32 %v305, 4294901760
        %v2778 = vsub.f32 %v305, %v2777
        %v2779 = vand.u32 %v2778, 4294901760
        %2780 = vmatpush1.msra.mxu0 %v2779
        %v2781 = vand.u32 %v308, 4294901760
        %v2782 = vsub.f32 %v308, %v2781
        %v2783 = vand.u32 %v2782, 4294901760
        %2784 = vmatprep.subr.mxu0 %v2783
        %v2785 = vand.u32 %v307, 4294901760
        %v2786 = vsub.f32 %v307, %v2785
        %v2787 = vand.u32 %v2786, 4294901760
        %2788 = vmatpush1.msra.mxu0 %v2787
        %v2789 = vand.u32 %v310, 4294901760
        %v2790 = vsub.f32 %v310, %v2789
        %v2791 = vand.u32 %v2790, 4294901760
        %2792 = vmatprep.subr.mxu0 %v2791
        %v2793 = vand.u32 %v309, 4294901760
        %v2794 = vsub.f32 %v309, %v2793
        %v2795 = vand.u32 %v2794, 4294901760
        %2796 = vmatpush1.msra.mxu0 %v2795
        %v2797 = vand.u32 %v232, 4294901760
        %2798 = vmatprep.mubr.f32.mxu0 %v2797
        %v2799 = vand.u32 %v225, 4294901760
        %2800 = vmatmul.mubr.f32.gmra.mrb[0].mxu0 %v2799
        %v2801 = vpop.f32.mrb[0].mxu0
        %v2802 = vadd.f32 %v2537, %v2801
        %v2803 = vpop.f32.mrb[0].mxu0
        %v2804 = vadd.f32 %v2539, %v2803
        %2805 = vdwg.mxu0
        %v2806 = vand.u32 %v248, 4294901760
        %2807 = vmatprep.subr.mxu0 %v2806
        %v2808 = vand.u32 %v247, 4294901760
        %2809 = vmatpush1.msra.mxu0 %v2808
        %v2810 = vand.u32 %v250, 4294901760
        %2811 = vmatprep.subr.mxu0 %v2810
        %v2812 = vand.u32 %v249, 4294901760
        %2813 = vmatpush1.msra.mxu0 %v2812
        %v2814 = vand.u32 %v252, 4294901760
        %2815 = vmatprep.subr.mxu0 %v2814
        %v2816 = vand.u32 %v251, 4294901760
        %2817 = vmatpush1.msra.mxu0 %v2816
        %v2818 = vand.u32 %v254, 4294901760
        %2819 = vmatprep.subr.mxu0 %v2818
        %v2820 = vand.u32 %v253, 4294901760
        %2821 = vmatpush1.msra.mxu0 %v2820
        %v2822 = vand.u32 %v256, 4294901760
        %2823 = vmatprep.subr.mxu0 %v2822
        %v2824 = vand.u32 %v255, 4294901760
        %2825 = vmatpush1.msra.mxu0 %v2824
        %v2826 = vand.u32 %v258, 4294901760
        %2827 = vmatprep.subr.mxu0 %v2826
        %v2828 = vand.u32 %v257, 4294901760
        %2829 = vmatpush1.msra.mxu0 %v2828
        %v2830 = vand.u32 %v260, 4294901760
        %2831 = vmatprep.subr.mxu0 %v2830
        %v2832 = vand.u32 %v259, 4294901760
        %2833 = vmatpush1.msra.mxu0 %v2832
        %v2834 = vand.u32 %v262, 4294901760
        %2835 = vmatprep.subr.mxu0 %v2834
        %v2836 = vand.u32 %v261, 4294901760
        %2837 = vmatpush1.msra.mxu0 %v2836
        %v2838 = vand.u32 %v264, 4294901760
        %2839 = vmatprep.subr.mxu0 %v2838
        %v2840 = vand.u32 %v263, 4294901760
        %2841 = vmatpush1.msra.mxu0 %v2840
        %v2842 = vand.u32 %v266, 4294901760
        %2843 = vmatprep.subr.mxu0 %v2842
        %v2844 = vand.u32 %v265, 4294901760
        %2845 = vmatpush1.msra.mxu0 %v2844
        %v2846 = vand.u32 %v268, 4294901760
        %2847 = vmatprep.subr.mxu0 %v2846
        %v2848 = vand.u32 %v267, 4294901760
        %2849 = vmatpush1.msra.mxu0 %v2848
        %v2850 = vand.u32 %v270, 4294901760
        %2851 = vmatprep.subr.mxu0 %v2850
        %v2852 = vand.u32 %v269, 4294901760
        %2853 = vmatpush1.msra.mxu0 %v2852
        %v2854 = vand.u32 %v272, 4294901760
        %2855 = vmatprep.subr.mxu0 %v2854
        %v2856 = vand.u32 %v271, 4294901760
        %2857 = vmatpush1.msra.mxu0 %v2856
        %v2858 = vand.u32 %v274, 4294901760
        %2859 = vmatprep.subr.mxu0 %v2858
        %v2860 = vand.u32 %v273, 4294901760
        %2861 = vmatpush1.msra.mxu0 %v2860
        %v2862 = vand.u32 %v276, 4294901760
        %2863 = vmatprep.subr.mxu0 %v2862
        %v2864 = vand.u32 %v275, 4294901760
        %2865 = vmatpush1.msra.mxu0 %v2864
        %v2866 = vand.u32 %v278, 4294901760
        %2867 = vmatprep.subr.mxu0 %v2866
        %v2868 = vand.u32 %v277, 4294901760
        %2869 = vmatpush1.msra.mxu0 %v2868
        %v2870 = vand.u32 %v280, 4294901760
        %2871 = vmatprep.subr.mxu0 %v2870
        %v2872 = vand.u32 %v279, 4294901760
        %2873 = vmatpush1.msra.mxu0 %v2872
        %v2874 = vand.u32 %v282, 4294901760
        %2875 = vmatprep.subr.mxu0 %v2874
        %v2876 = vand.u32 %v281, 4294901760
        %2877 = vmatpush1.msra.mxu0 %v2876
        %v2878 = vand.u32 %v284, 4294901760
        %2879 = vmatprep.subr.mxu0 %v2878
        %v2880 = vand.u32 %v283, 4294901760
        %2881 = vmatpush1.msra.mxu0 %v2880
        %v2882 = vand.u32 %v286, 4294901760
        %2883 = vmatprep.subr.mxu0 %v2882
        %v2884 = vand.u32 %v285, 4294901760
        %2885 = vmatpush1.msra.mxu0 %v2884
        %v2886 = vand.u32 %v288, 4294901760
        %2887 = vmatprep.subr.mxu0 %v2886
        %v2888 = vand.u32 %v287, 4294901760
        %2889 = vmatpush1.msra.mxu0 %v2888
        %v2890 = vand.u32 %v290, 4294901760
        %2891 = vmatprep.subr.mxu0 %v2890
        %v2892 = vand.u32 %v289, 4294901760
        %2893 = vmatpush1.msra.mxu0 %v2892
        %v2894 = vand.u32 %v292, 4294901760
        %2895 = vmatprep.subr.mxu0 %v2894
        %v2896 = vand.u32 %v291, 4294901760
        %2897 = vmatpush1.msra.mxu0 %v2896
        %v2898 = vand.u32 %v294, 4294901760
        %2899 = vmatprep.subr.mxu0 %v2898
        %v2900 = vand.u32 %v293, 4294901760
        %2901 = vmatpush1.msra.mxu0 %v2900
        %v2902 = vand.u32 %v296, 4294901760
        %2903 = vmatprep.subr.mxu0 %v2902
        %v2904 = vand.u32 %v295, 4294901760
        %2905 = vmatpush1.msra.mxu0 %v2904
        %v2906 = vand.u32 %v298, 4294901760
        %2907 = vmatprep.subr.mxu0 %v2906
        %v2908 = vand.u32 %v297, 4294901760
        %2909 = vmatpush1.msra.mxu0 %v2908
        %v2910 = vand.u32 %v300, 4294901760
        %2911 = vmatprep.subr.mxu0 %v2910
        %v2912 = vand.u32 %v299, 4294901760
        %2913 = vmatpush1.msra.mxu0 %v2912
        %v2914 = vand.u32 %v302, 4294901760
        %2915 = vmatprep.subr.mxu0 %v2914
        %v2916 = vand.u32 %v301, 4294901760
        %2917 = vmatpush1.msra.mxu0 %v2916
        %v2918 = vand.u32 %v304, 4294901760
        %2919 = vmatprep.subr.mxu0 %v2918
        %v2920 = vand.u32 %v303, 4294901760
        %2921 = vmatpush1.msra.mxu0 %v2920
        %v2922 = vand.u32 %v306, 4294901760
        %2923 = vmatprep.subr.mxu0 %v2922
        %v2924 = vand.u32 %v305, 4294901760
        %2925 = vmatpush1.msra.mxu0 %v2924
        %v2926 = vand.u32 %v308, 4294901760
        %2927 = vmatprep.subr.mxu0 %v2926
        %v2928 = vand.u32 %v307, 4294901760
        %2929 = vmatpush1.msra.mxu0 %v2928
        %v2930 = vand.u32 %v310, 4294901760
        %2931 = vmatprep.subr.mxu0 %v2930
        %v2932 = vand.u32 %v309, 4294901760
        %2933 = vmatpush1.msra.mxu0 %v2932
        %v2934 = vand.u32 %v232, 4294901760
        %2935 = vmatprep.mubr.f32.mxu0 %v2934
        %v2936 = vand.u32 %v225, 4294901760
        %2937 = vmatmul.mubr.f32.gmra.mrb[0].mxu0 %v2936
        %v2938 = vpop.f32.mrb[0].mxu0
        %v2939 = vadd.f32 %v2802, %v2938
        %v2940 = vpop.f32.mrb[0].mxu0
        %v2941 = vadd.f32 %v2804, %v2940
        %2942 = vdwg.mxu0
        %v2943 = vsub.f32 0.0, %v2939
        %v2944 = vsub.f32 0.0, %v2941
        %v2945 = vmul.f32 %v2943, 1.442695
        %v2946 = vpow.pop %v2945
        %v2947 = vmul.f32 %v2944, 1.442695
        %v2948 = vpow.pop %v2947
        %v2949 = vadd.f32 %v2946, 1.0
        %v2950 = vadd.f32 %v2948, 1.0
        %v2951 = vrcp.pop %v2949
        %v2952 = vmul.f32 1.0, %v2951
        %v2953 = vrcp.pop %v2950
        %v2954 = vmul.f32 1.0, %v2953
        %v2955 = vlaneseq
        %v2956 = vshrl.u32 %v2955, 7
        %v2957 = vsub.s32 0, %v2956
        %v2958 = vrot.slane %v2952, %v2957
        %v2959 = vlaneseq
        %v2960 = vshrl.u32 %v2959, 7
        %v2961 = vsub.s32 0, %v2960
        %v2962 = vrot.slane %v2954, %v2961
        %v2965 = vcombine.low %v2958, %v2962
        %v2967 = vmul.f32 %v214, %v2965
        %2968 = vst [vmem:[%s213] sm:$0xff] %v2967
        %s2969 = sand.u32 %s95, 1
        %s2970 = scalar_lea.sflag [#allocation4], %s2969
        %s2971 = sand.u32 %s95, 1
        %s2972 = smul.addr %s2971, 8
        %s2973 = scalar_lea.vmem [#allocation8], %s2972
        // Predicated region
        $region45: #{_spatial_attention_flat.1} parent=31 // pred_check
          %p2974 = pneg %p105
        $region46: #{_spatial_attention_flat.1} parent=31 // pred_check_branch
          %2976 = sbr.rel (%p2974) target = $region48
        $region47: #{_spatial_attention_flat.1} parent=31 // pred_region
          %s2978 = ssub.s32 128, 128
          %2979 = vsyncadd %s2970, %s2978
          %s2980 = smul.addr %s19, 2
          %s2981 = smul.addr %s2980, 64
          %s2982 = scalar_lea.hbm %s3, %s2981
          %s2984 = sshll.u32 %s2973, 4
          %s2985 = int_to_ptr.vmem [resolvable:$true] %s2984
          %2987 = dma.vmem_to_hbm [thread:$0]  %s2985, 128, %s2982, %s2970
        $region48: #{_spatial_attention_flat.1} parent=31 // pred_fallthru
          _
      $region32: #{_spatial_attention_flat.1} parent=5 // pred_fallthru
        _
      %p2988 = scmp.le.s32.totalorder 2, %s14
      // Predicated region
      $region49: #{_spatial_attention_flat.1} parent=5 // pred_check
        %p2989 = pneg %p2988
      $region50: #{_spatial_attention_flat.1} parent=5 // pred_check_branch
        %2991 = sbr.rel (%p2989) target = $region52
      $region51: #{_spatial_attention_flat.1} parent=5 // pred_region
        %s2992 = ssub.s32 %s14, 2
        // Predicated region
        $region53: #{_spatial_attention_flat.1} parent=51 // pred_check
          %p2993 = pneg %p111
        $region54: #{_spatial_attention_flat.1} parent=51 // pred_check_branch
          %2995 = sbr.rel (%p2993) target = $region56
        $region55: #{_spatial_attention_flat.1} parent=51 // pred_region
          %s2996 = sand.u32 %s96, 1
          %s2997 = scalar_lea.sflag [#allocation4], %s2996
          %s2998 = sand.u32 %s96, 1
          %s2999 = smul.addr %s2998, 8
          %s3000 = scalar_lea.vmem [#allocation8], %s2999
          %3001 = dma.done %s2997, 128
        $region56: #{_spatial_attention_flat.1} parent=51 // pred_fallthru
          _
      $region52: #{_spatial_attention_flat.1} parent=5 // pred_fallthru
        _
    $region6: #{_spatial_attention_flat.1} parent=1 // loop_footer
      %s18 = sadd.s32 1, %s14
    $region7: #{_spatial_attention_flat.1} parent=1 // loop_footer_branch
      %13 = sbr.rel target = $region3
    $region8: #{_spatial_attention_flat.1} parent=1 // loop_exit
      _
    %3002 = vsyncpa [#allocation3], 1
    %s3003 = scalar_lea.sflag [#allocation3], 1
    %3004 = vsyncpa %s3003, 1
    %3005 = vsyncpa [#allocation6], 1
    %3006 = vsyncpa [#allocation4], 1
    %s3007 = scalar_lea.sflag [#allocation4], 1
    %3008 = vsyncpa %s3007, 1

</llo_original>
